<compile_context>
chip_gen: v7x
topology: tpu7x:2x2x1
jax: 0.10.0
libtpu: 0.0.40
codegen_flags: <defaults>
</compile_context>

<pallas_src>
import jax
import jax.numpy as jnp
from jax import lax
from jax.experimental import pallas as pl
from jax.experimental.pallas import tpu as pltpu

_VMEM_LIMIT = 48 * 1024 * 1024


# ---------------------------------------------------------------------------
# conv1: 1 -> 8 channels, 3x3 valid, ReLU.  Pure VPU broadcast-FMA (Cin = 1).
# ---------------------------------------------------------------------------
def _conv1_kernel(x_ref, w_ref, b_ref, o_ref):
    # x_ref: [28, 28, 1] f32   w_ref: [9, 8] f32   b_ref: [1, 8] f32
    # o_ref: [26, 26, 8] bf16
    w = w_ref[...]
    b = b_ref[...]

    @pl.loop(0, 26)
    def _(i):
        acc = jnp.zeros((26, 8), jnp.float32)
        for k in range(9):                      # unrolled 3x3 taps (in-kernel im2col)
            kh, kw = k // 3, k % 3
            xs = x_ref[i + kh, pl.ds(kw, 26), :]        # [26, 1]  static sublane slice
            acc = acc + xs * w[k]                       # broadcast -> [26, 8] on VPU
        o_ref[i] = jnp.maximum(acc + b, 0.0).astype(o_ref.dtype)


def conv1_relu(x, w, b):
    n = x.shape[0]
    return pl.pallas_call(
        _conv1_kernel,
        out_shape=jax.ShapeDtypeStruct((n, 26, 26, 8), jnp.bfloat16),
        grid=(n,),
        in_specs=[pl.BlockSpec((None, 28, 28, 1), lambda i: (i, 0, 0, 0)),
                  pl.BlockSpec((9, 8), lambda i: (0, 0)),
                  pl.BlockSpec((1, 8), lambda i: (0, 0))],
        out_specs=pl.BlockSpec((None, 26, 26, 8), lambda i: (i, 0, 0, 0)),
        compiler_params=pltpu.CompilerParams(
            dimension_semantics=("parallel",), vmem_limit_bytes=_VMEM_LIMIT),
    )(x, w, b)


# ---------------------------------------------------------------------------
# conv2: 8 -> 16 channels, 3x3 valid, ReLU, fused 2x2 max-pool.
# ---------------------------------------------------------------------------
def _conv2_pool_kernel(x_ref, w_ref, b_ref, o_ref):
    # x_ref: [26, 26, 8] bf16   w_ref: [9, 8, 16] bf16   b_ref: [1, 16] f32
    # o_ref: [12, 12, 16] bf16   (already 2x2 max-pooled)
    w = w_ref[...]
    b = b_ref[...]
    # Constant selection matrices that pick even / odd W columns (W-pooling on the MXU
    # instead of strided sublane extraction).
    rows = lax.broadcasted_iota(jnp.int32, (12, 24), 0)
    cols = lax.broadcasted_iota(jnp.int32, (12, 24), 1)
    sel_even = (cols == 2 * rows).astype(jnp.float32)
    sel_odd = (cols == 2 * rows + 1).astype(jnp.float32)

    def conv_row(h):
        acc = jnp.zeros((24, 16), jnp.float32)
        for k in range(9):                      # unrolled 3x3 taps (in-kernel im2col)
            kh, kw = k // 3, k % 3
            xs = x_ref[h + kh, pl.ds(kw, 24), :]                 # [24, 8]
            acc = acc + jnp.dot(xs, w[k], preferred_element_type=jnp.float32)
        return acc

    @pl.loop(0, 12)
    def _(i):
        r = jnp.maximum(conv_row(2 * i), conv_row(2 * i + 1))    # pool over H
        p = jnp.maximum(                                         # pool over W
            jnp.dot(sel_even, r, preferred_element_type=jnp.float32),
            jnp.dot(sel_odd, r, preferred_element_type=jnp.float32))
        # bias + ReLU commute with max-pool (per-channel constant, monotone)
        o_ref[i] = jnp.maximum(p + b, 0.0).astype(o_ref.dtype)


def conv2_relu_pool(x, w, b):
    n = x.shape[0]
    return pl.pallas_call(
        _conv2_pool_kernel,
        out_shape=jax.ShapeDtypeStruct((n, 12, 12, 16), jnp.bfloat16),
        grid=(n,),
        in_specs=[pl.BlockSpec((None, 26, 26, 8), lambda i: (i, 0, 0, 0)),
                  pl.BlockSpec((9, 8, 16), lambda i: (0, 0, 0)),
                  pl.BlockSpec((1, 16), lambda i: (0, 0))],
        out_specs=pl.BlockSpec((None, 12, 12, 16), lambda i: (i, 0, 0, 0)),
        compiler_params=pltpu.CompilerParams(
            dimension_semantics=("parallel",), vmem_limit_bytes=_VMEM_LIMIT),
    )(x, w, b)


# ---------------------------------------------------------------------------
# Fused FC head: fc1 + ReLU + fc2 + log_softmax, tiled over the batch (M) dim.
# ---------------------------------------------------------------------------
def _fc_head_kernel(x_ref, w1_ref, b1_ref, w2_ref, b2_ref, o_ref):
    # x_ref: [tm, 2304] bf16   w1: [2304, 32] bf16   w2: [32, 10] bf16
    x = x_ref[...]
    h = jnp.dot(x, w1_ref[...], preferred_element_type=jnp.float32) + b1_ref[...]
    h = jnp.maximum(h, 0.0)
    y = jnp.dot(h.astype(jnp.bfloat16), w2_ref[...],
                preferred_element_type=jnp.float32) + b2_ref[...]
    m = jnp.max(y, axis=-1, keepdims=True)
    s = y - m
    lse = jnp.log(jnp.sum(jnp.exp(s), axis=-1, keepdims=True))
    o_ref[...] = (s - lse).astype(o_ref.dtype)


def fc_head(x, w1, b1, w2, b2):
    n, k = x.shape
    tm = min(256, ((n + 7) // 8) * 8)
    n_pad = ((n + tm - 1) // tm) * tm
    if n_pad != n:
        x = jnp.pad(x, ((0, n_pad - n), (0, 0)))
    out = pl.pallas_call(
        _fc_head_kernel,
        out_shape=jax.ShapeDtypeStruct((n_pad, 10), jnp.float32),
        grid=(n_pad // tm,),
        in_specs=[pl.BlockSpec((tm, k), lambda i: (i, 0)),
                  pl.BlockSpec((k, 32), lambda i: (0, 0)),
                  pl.BlockSpec((1, 32), lambda i: (0, 0)),
                  pl.BlockSpec((32, 10), lambda i: (0, 0)),
                  pl.BlockSpec((1, 10), lambda i: (0, 0))],
        out_specs=pl.BlockSpec((tm, 10), lambda i: (i, 0)),
        compiler_params=pltpu.CompilerParams(
            dimension_semantics=("parallel",), vmem_limit_bytes=_VMEM_LIMIT),
    )(x.astype(jnp.bfloat16), w1, b1, w2, b2)
    return out[:n]


# ---------------------------------------------------------------------------
# Parameters (PyTorch-style layouts) and one-time layout preparation.
# ---------------------------------------------------------------------------
def init_params(key):
    ks = jax.random.split(key, 8)

    def p(k, shape, fan_in):
        return (jax.random.normal(k, shape, jnp.float32) / jnp.sqrt(fan_in)).astype(jnp.float32)

    return {
        "conv1_w": p(ks[0], (8, 1, 3, 3), 9),            # [Cout, Cin, kH, kW]
        "conv1_b": p(ks[1], (8,), 9),
        "conv2_w": p(ks[2], (16, 8, 3, 3), 72),
        "conv2_b": p(ks[3], (16,), 72),
        "fc1_w":   p(ks[4], (32, 16 * 12 * 12), 2304),   # PyTorch Linear: [out, in], in = C*H*W
        "fc1_b":   p(ks[5], (32,), 2304),
        "fc2_w":   p(ks[6], (10, 32), 32),
        "fc2_b":   p(ks[7], (10,), 32),
    }


def prepare_params(params):
    """One-time (hoisted) weight layout transforms: no per-forward transposes."""
    w1 = jnp.transpose(params["conv1_w"], (2, 3, 1, 0)).reshape(9, 8).astype(jnp.float32)
    b1 = params["conv1_b"].reshape(1, 8).astype(jnp.float32)
    w2 = jnp.transpose(params["conv2_w"], (2, 3, 1, 0)).reshape(9, 8, 16).astype(jnp.bfloat16)
    b2 = params["conv2_b"].reshape(1, 16).astype(jnp.float32)
    # fc1 in-features are ordered (C, H, W) in PyTorch; our pooled activations are (H, W, C).
    fc1 = params["fc1_w"].reshape(32, 16, 12, 12)
    fc1 = jnp.transpose(fc1, (0, 2, 3, 1)).reshape(32, 2304)
    fc1 = jnp.transpose(fc1, (1, 0)).astype(jnp.bfloat16)          # [2304, 32]
    fb1 = params["fc1_b"].reshape(1, 32).astype(jnp.float32)
    fc2 = jnp.transpose(params["fc2_w"], (1, 0)).astype(jnp.bfloat16)  # [32, 10]
    fb2 = params["fc2_b"].reshape(1, 10).astype(jnp.float32)
    return {"conv1_w": w1, "conv1_b": b1, "conv2_w": w2, "conv2_b": b2,
            "fc1_w": fc1, "fc1_b": fb1, "fc2_w": fc2, "fc2_b": fb2}


@jax.jit
def forward(prepared, x_nchw):
    """x: [N, 1, 28, 28] float32 (PyTorch NCHW) -> log-probs [N, 10]."""
    n = x_nchw.shape[0]
    x = x_nchw.reshape(n, 28, 28, 1).astype(jnp.float32)            # NCHW -> NHWC (C=1: free)
    h = conv1_relu(x, prepared["conv1_w"], prepared["conv1_b"])     # [N, 26, 26, 8] bf16
    h = conv2_relu_pool(h, prepared["conv2_w"], prepared["conv2_b"])  # [N, 12, 12, 16] bf16
    feats = h.reshape(n, 12 * 12 * 16)                              # (H, W, C) flatten
    return fc_head(feats, prepared["fc1_w"], prepared["fc1_b"],
                   prepared["fc2_w"], prepared["fc2_b"])            # [N, 10] f32 log-probs


if __name__ == "__main__":
    key = jax.random.PRNGKey(0)
    pkey, xkey = jax.random.split(key)
    params = init_params(pkey)
    prepared = prepare_params(params)
    x = jax.random.normal(xkey, (2, 1, 28, 28), dtype=jnp.float32)

    y = forward(prepared, x)
    y = jax.block_until_ready(y)

    assert y.shape == (2, 10)
    assert bool(jnp.all(jnp.isfinite(y)))
    # rows of log_softmax must exp-sum to ~1
    assert bool(jnp.all(jnp.abs(jnp.sum(jnp.exp(y), axis=-1) - 1.0) < 1e-4))
    print("KERNEL_OK")
</pallas_src>

<mosaic_0001>
module attributes {stable_mosaic.version = 11 : i64} {
  func.func @_conv1_kernel(%arg0: i32, %arg1: memref<1x28x28x1xf32, #tpu.memory_space<vmem>>, %arg2: memref<9x8xf32, #tpu.memory_space<vmem>>, %arg3: memref<1x8xf32, #tpu.memory_space<vmem>>, %arg4: memref<1x26x26x8xbf16, #tpu.memory_space<vmem>>) attributes {dimension_semantics = [#tpu.dimension_semantics<parallel>], iteration_bounds = array<i64: 2>, scalar_prefetch = 0 : i64, scratch_operands = 0 : i64, tpu.core_type = #tpu.core_type<tc>, window_params = [{transform_indices = @transform_0, window_bounds = array<i64: 1, 28, 28, 1>}, {pipeline_mode = #tpu.pipeline_mode<synchronous>, transform_indices = @transform_1, window_bounds = array<i64: 9, 8>}, {pipeline_mode = #tpu.pipeline_mode<synchronous>, transform_indices = @transform_2, window_bounds = array<i64: 1, 8>}, {transform_indices = @transform_3, window_bounds = array<i64: 1, 26, 26, 8>}]} {
    %c0 = arith.constant 0 : index
    %c0_0 = arith.constant 0 : index
    %0 = vector.load %arg2[%c0, %c0_0] : memref<9x8xf32, #tpu.memory_space<vmem>>, vector<9x8xf32>
    %c0_1 = arith.constant 0 : index
    %c0_2 = arith.constant 0 : index
    %1 = vector.load %arg3[%c0_1, %c0_2] : memref<1x8xf32, #tpu.memory_space<vmem>>, vector<1x8xf32>
    %c0_i32 = arith.constant 0 : i32
    %c26_i32 = arith.constant 26 : i32
    %2 = arith.addi %c0_i32, %c26_i32 : i32
    %c1_i32 = arith.constant 1 : i32
    scf.for %arg5 = %c0_i32 to %2 step %c1_i32  : i32 {
      %c1_i32_4 = arith.constant 1 : i32
      %3 = arith.muli %arg5, %c1_i32_4 : i32
      %c0_i32_5 = arith.constant 0 : i32
      %4 = arith.addi %c0_i32_5, %3 : i32
      %cst = arith.constant 0.000000e+00 : f32
      %5 = vector.broadcast %cst : f32 to vector<26x8xf32>
      %c0_i32_6 = arith.constant 0 : i32
      %6 = arith.addi %4, %c0_i32_6 : i32
      %c0_7 = arith.constant 0 : index
      %7 = arith.index_cast %6 : i32 to index
      %c0_8 = arith.constant 0 : index
      %c0_9 = arith.constant 0 : index
      %8 = vector.load %arg1[%c0_7, %7, %c0_8, %c0_9] : memref<1x28x28x1xf32, #tpu.memory_space<vmem>>, vector<1x1x26x1xf32>
      %9 = vector.shape_cast %8 : vector<1x1x26x1xf32> to vector<26x1xf32>
      %10 = vector.extract_strided_slice %0 {offsets = [0, 0], sizes = [1, 8], strides = [1, 1]} : vector<9x8xf32> to vector<1x8xf32>
      %11 = vector.shape_cast %10 : vector<1x8xf32> to vector<8xf32>
      %12 = vector.shape_cast %11 : vector<8xf32> to vector<1x8xf32>
      %13 = vector.broadcast %9 : vector<26x1xf32> to vector<26x8xf32>
      %14 = vector.broadcast %12 : vector<1x8xf32> to vector<26x8xf32>
      %15 = arith.mulf %13, %14 : vector<26x8xf32>
      %16 = arith.addf %5, %15 : vector<26x8xf32>
      %c0_i32_10 = arith.constant 0 : i32
      %17 = arith.addi %4, %c0_i32_10 : i32
      %c0_11 = arith.constant 0 : index
      %18 = arith.index_cast %17 : i32 to index
      %c1 = arith.constant 1 : index
      %c0_12 = arith.constant 0 : index
      %19 = vector.load %arg1[%c0_11, %18, %c1, %c0_12] : memref<1x28x28x1xf32, #tpu.memory_space<vmem>>, vector<1x1x26x1xf32>
      %20 = vector.shape_cast %19 : vector<1x1x26x1xf32> to vector<26x1xf32>
      %21 = vector.extract_strided_slice %0 {offsets = [1, 0], sizes = [1, 8], strides = [1, 1]} : vector<9x8xf32> to vector<1x8xf32>
      %22 = vector.shape_cast %21 : vector<1x8xf32> to vector<8xf32>
      %23 = vector.shape_cast %22 : vector<8xf32> to vector<1x8xf32>
      %24 = vector.broadcast %20 : vector<26x1xf32> to vector<26x8xf32>
      %25 = vector.broadcast %23 : vector<1x8xf32> to vector<26x8xf32>
      %26 = arith.mulf %24, %25 : vector<26x8xf32>
      %27 = arith.addf %16, %26 : vector<26x8xf32>
      %c0_i32_13 = arith.constant 0 : i32
      %28 = arith.addi %4, %c0_i32_13 : i32
      %c0_14 = arith.constant 0 : index
      %29 = arith.index_cast %28 : i32 to index
      %c2 = arith.constant 2 : index
      %c0_15 = arith.constant 0 : index
      %30 = vector.load %arg1[%c0_14, %29, %c2, %c0_15] : memref<1x28x28x1xf32, #tpu.memory_space<vmem>>, vector<1x1x26x1xf32>
      %31 = vector.shape_cast %30 : vector<1x1x26x1xf32> to vector<26x1xf32>
      %32 = vector.extract_strided_slice %0 {offsets = [2, 0], sizes = [1, 8], strides = [1, 1]} : vector<9x8xf32> to vector<1x8xf32>
      %33 = vector.shape_cast %32 : vector<1x8xf32> to vector<8xf32>
      %34 = vector.shape_cast %33 : vector<8xf32> to vector<1x8xf32>
      %35 = vector.broadcast %31 : vector<26x1xf32> to vector<26x8xf32>
      %36 = vector.broadcast %34 : vector<1x8xf32> to vector<26x8xf32>
      %37 = arith.mulf %35, %36 : vector<26x8xf32>
      %38 = arith.addf %27, %37 : vector<26x8xf32>
      %c1_i32_16 = arith.constant 1 : i32
      %39 = arith.addi %4, %c1_i32_16 : i32
      %c0_17 = arith.constant 0 : index
      %40 = arith.index_cast %39 : i32 to index
      %c0_18 = arith.constant 0 : index
      %c0_19 = arith.constant 0 : index
      %41 = vector.load %arg1[%c0_17, %40, %c0_18, %c0_19] : memref<1x28x28x1xf32, #tpu.memory_space<vmem>>, vector<1x1x26x1xf32>
      %42 = vector.shape_cast %41 : vector<1x1x26x1xf32> to vector<26x1xf32>
      %43 = vector.extract_strided_slice %0 {offsets = [3, 0], sizes = [1, 8], strides = [1, 1]} : vector<9x8xf32> to vector<1x8xf32>
      %44 = vector.shape_cast %43 : vector<1x8xf32> to vector<8xf32>
      %45 = vector.shape_cast %44 : vector<8xf32> to vector<1x8xf32>
      %46 = vector.broadcast %42 : vector<26x1xf32> to vector<26x8xf32>
      %47 = vector.broadcast %45 : vector<1x8xf32> to vector<26x8xf32>
      %48 = arith.mulf %46, %47 : vector<26x8xf32>
      %49 = arith.addf %38, %48 : vector<26x8xf32>
      %c1_i32_20 = arith.constant 1 : i32
      %50 = arith.addi %4, %c1_i32_20 : i32
      %c0_21 = arith.constant 0 : index
      %51 = arith.index_cast %50 : i32 to index
      %c1_22 = arith.constant 1 : index
      %c0_23 = arith.constant 0 : index
      %52 = vector.load %arg1[%c0_21, %51, %c1_22, %c0_23] : memref<1x28x28x1xf32, #tpu.memory_space<vmem>>, vector<1x1x26x1xf32>
      %53 = vector.shape_cast %52 : vector<1x1x26x1xf32> to vector<26x1xf32>
      %54 = vector.extract_strided_slice %0 {offsets = [4, 0], sizes = [1, 8], strides = [1, 1]} : vector<9x8xf32> to vector<1x8xf32>
      %55 = vector.shape_cast %54 : vector<1x8xf32> to vector<8xf32>
      %56 = vector.shape_cast %55 : vector<8xf32> to vector<1x8xf32>
      %57 = vector.broadcast %53 : vector<26x1xf32> to vector<26x8xf32>
      %58 = vector.broadcast %56 : vector<1x8xf32> to vector<26x8xf32>
      %59 = arith.mulf %57, %58 : vector<26x8xf32>
      %60 = arith.addf %49, %59 : vector<26x8xf32>
      %c1_i32_24 = arith.constant 1 : i32
      %61 = arith.addi %4, %c1_i32_24 : i32
      %c0_25 = arith.constant 0 : index
      %62 = arith.index_cast %61 : i32 to index
      %c2_26 = arith.constant 2 : index
      %c0_27 = arith.constant 0 : index
      %63 = vector.load %arg1[%c0_25, %62, %c2_26, %c0_27] : memref<1x28x28x1xf32, #tpu.memory_space<vmem>>, vector<1x1x26x1xf32>
      %64 = vector.shape_cast %63 : vector<1x1x26x1xf32> to vector<26x1xf32>
      %65 = vector.extract_strided_slice %0 {offsets = [5, 0], sizes = [1, 8], strides = [1, 1]} : vector<9x8xf32> to vector<1x8xf32>
      %66 = vector.shape_cast %65 : vector<1x8xf32> to vector<8xf32>
      %67 = vector.shape_cast %66 : vector<8xf32> to vector<1x8xf32>
      %68 = vector.broadcast %64 : vector<26x1xf32> to vector<26x8xf32>
      %69 = vector.broadcast %67 : vector<1x8xf32> to vector<26x8xf32>
      %70 = arith.mulf %68, %69 : vector<26x8xf32>
      %71 = arith.addf %60, %70 : vector<26x8xf32>
      %c2_i32 = arith.constant 2 : i32
      %72 = arith.addi %4, %c2_i32 : i32
      %c0_28 = arith.constant 0 : index
      %73 = arith.index_cast %72 : i32 to index
      %c0_29 = arith.constant 0 : index
      %c0_30 = arith.constant 0 : index
      %74 = vector.load %arg1[%c0_28, %73, %c0_29, %c0_30] : memref<1x28x28x1xf32, #tpu.memory_space<vmem>>, vector<1x1x26x1xf32>
      %75 = vector.shape_cast %74 : vector<1x1x26x1xf32> to vector<26x1xf32>
      %76 = vector.extract_strided_slice %0 {offsets = [6, 0], sizes = [1, 8], strides = [1, 1]} : vector<9x8xf32> to vector<1x8xf32>
      %77 = vector.shape_cast %76 : vector<1x8xf32> to vector<8xf32>
      %78 = vector.shape_cast %77 : vector<8xf32> to vector<1x8xf32>
      %79 = vector.broadcast %75 : vector<26x1xf32> to vector<26x8xf32>
      %80 = vector.broadcast %78 : vector<1x8xf32> to vector<26x8xf32>
      %81 = arith.mulf %79, %80 : vector<26x8xf32>
      %82 = arith.addf %71, %81 : vector<26x8xf32>
      %c2_i32_31 = arith.constant 2 : i32
      %83 = arith.addi %4, %c2_i32_31 : i32
      %c0_32 = arith.constant 0 : index
      %84 = arith.index_cast %83 : i32 to index
      %c1_33 = arith.constant 1 : index
      %c0_34 = arith.constant 0 : index
      %85 = vector.load %arg1[%c0_32, %84, %c1_33, %c0_34] : memref<1x28x28x1xf32, #tpu.memory_space<vmem>>, vector<1x1x26x1xf32>
      %86 = vector.shape_cast %85 : vector<1x1x26x1xf32> to vector<26x1xf32>
      %87 = vector.extract_strided_slice %0 {offsets = [7, 0], sizes = [1, 8], strides = [1, 1]} : vector<9x8xf32> to vector<1x8xf32>
      %88 = vector.shape_cast %87 : vector<1x8xf32> to vector<8xf32>
      %89 = vector.shape_cast %88 : vector<8xf32> to vector<1x8xf32>
      %90 = vector.broadcast %86 : vector<26x1xf32> to vector<26x8xf32>
      %91 = vector.broadcast %89 : vector<1x8xf32> to vector<26x8xf32>
      %92 = arith.mulf %90, %91 : vector<26x8xf32>
      %93 = arith.addf %82, %92 : vector<26x8xf32>
      %c2_i32_35 = arith.constant 2 : i32
      %94 = arith.addi %4, %c2_i32_35 : i32
      %c0_36 = arith.constant 0 : index
      %95 = arith.index_cast %94 : i32 to index
      %c2_37 = arith.constant 2 : index
      %c0_38 = arith.constant 0 : index
      %96 = vector.load %arg1[%c0_36, %95, %c2_37, %c0_38] : memref<1x28x28x1xf32, #tpu.memory_space<vmem>>, vector<1x1x26x1xf32>
      %97 = vector.shape_cast %96 : vector<1x1x26x1xf32> to vector<26x1xf32>
      %98 = vector.extract_strided_slice %0 {offsets = [8, 0], sizes = [1, 8], strides = [1, 1]} : vector<9x8xf32> to vector<1x8xf32>
      %99 = vector.shape_cast %98 : vector<1x8xf32> to vector<8xf32>
      %100 = vector.shape_cast %99 : vector<8xf32> to vector<1x8xf32>
      %101 = vector.broadcast %97 : vector<26x1xf32> to vector<26x8xf32>
      %102 = vector.broadcast %100 : vector<1x8xf32> to vector<26x8xf32>
      %103 = arith.mulf %101, %102 : vector<26x8xf32>
      %104 = arith.addf %93, %103 : vector<26x8xf32>
      %105 = vector.broadcast %1 : vector<1x8xf32> to vector<26x8xf32>
      %106 = arith.addf %104, %105 : vector<26x8xf32>
      %cst_39 = arith.constant 0.000000e+00 : f32
      %107 = vector.broadcast %cst_39 : f32 to vector<26x8xf32>
      %108 = arith.maximumf %106, %107 : vector<26x8xf32>
      %109 = arith.truncf %108 : vector<26x8xf32> to vector<26x8xbf16>
      %c0_40 = arith.constant 0 : index
      %110 = arith.index_cast %4 : i32 to index
      %c0_41 = arith.constant 0 : index
      %c0_42 = arith.constant 0 : index
      %111 = vector.load %arg4[%c0_40, %110, %c0_41, %c0_42] : memref<1x26x26x8xbf16, #tpu.memory_space<vmem>>, vector<1x1x26x8xbf16>
      %112 = vector.shape_cast %111 : vector<1x1x26x8xbf16> to vector<26x8xbf16>
      %113 = vector.shape_cast %109 : vector<26x8xbf16> to vector<1x1x26x8xbf16>
      tpu.vector_store %arg4[%c0_40, %110, %c0_41, %c0_42], %113 {strides = array<i32>} : memref<1x26x26x8xbf16, #tpu.memory_space<vmem>>, vector<1x1x26x8xbf16>,
    }
    %c26_i32_3 = arith.constant 26 : i32
    return
  }
  func.func @transform_0(%arg0: i32) -> (i32, i32, i32, i32) {
    %c0_i32 = arith.constant 0 : i32
    %c0_i32_0 = arith.constant 0 : i32
    %c0_i32_1 = arith.constant 0 : i32
    %c0_i32_2 = arith.constant 0 : i32
    return %arg0, %c0_i32, %c0_i32_0, %c0_i32_1 : i32, i32, i32, i32
  }
  func.func @transform_1(%arg0: i32) -> (i32, i32) {
    %c0_i32 = arith.constant 0 : i32
    %c0_i32_0 = arith.constant 0 : i32
    %c0_i32_1 = arith.constant 0 : i32
    return %c0_i32, %c0_i32_0 : i32, i32
  }
  func.func @transform_2(%arg0: i32) -> (i32, i32) {
    %c0_i32 = arith.constant 0 : i32
    %c0_i32_0 = arith.constant 0 : i32
    %c0_i32_1 = arith.constant 0 : i32
    return %c0_i32, %c0_i32_0 : i32, i32
  }
  func.func @transform_3(%arg0: i32) -> (i32, i32, i32, i32) {
    %c0_i32 = arith.constant 0 : i32
    %c0_i32_0 = arith.constant 0 : i32
    %c0_i32_1 = arith.constant 0 : i32
    %c0_i32_2 = arith.constant 0 : i32
    return %arg0, %c0_i32, %c0_i32_0, %c0_i32_1 : i32, i32, i32, i32
  }
}

module attributes {stable_mosaic.version = 11 : i64} {
  func.func @_conv2_pool_kernel(%arg0: i32, %arg1: memref<1x26x26x8xbf16, #tpu.memory_space<vmem>>, %arg2: memref<9x8x16xbf16, #tpu.memory_space<vmem>>, %arg3: memref<1x16xf32, #tpu.memory_space<vmem>>, %arg4: memref<1x12x12x16xbf16, #tpu.memory_space<vmem>>) attributes {dimension_semantics = [#tpu.dimension_semantics<parallel>], iteration_bounds = array<i64: 2>, scalar_prefetch = 0 : i64, scratch_operands = 0 : i64, tpu.core_type = #tpu.core_type<tc>, window_params = [{transform_indices = @transform_0, window_bounds = array<i64: 1, 26, 26, 8>}, {pipeline_mode = #tpu.pipeline_mode<synchronous>, transform_indices = @transform_1, window_bounds = array<i64: 9, 8, 16>}, {pipeline_mode = #tpu.pipeline_mode<synchronous>, transform_indices = @transform_2, window_bounds = array<i64: 1, 16>}, {transform_indices = @transform_3, window_bounds = array<i64: 1, 12, 12, 16>}]} {
    %c0 = arith.constant 0 : index
    %c0_0 = arith.constant 0 : index
    %c0_1 = arith.constant 0 : index
    %0 = vector.load %arg2[%c0, %c0_0, %c0_1] : memref<9x8x16xbf16, #tpu.memory_space<vmem>>, vector<9x8x16xbf16>
    %c0_2 = arith.constant 0 : index
    %c0_3 = arith.constant 0 : index
    %1 = vector.load %arg3[%c0_2, %c0_3] : memref<1x16xf32, #tpu.memory_space<vmem>>, vector<1x16xf32>
    %2 = tpu.iota {dimensions = array<i32: 0>} : vector<12x24xi32>
    %3 = tpu.iota {dimensions = array<i32: 1>} : vector<12x24xi32>
    %c2_i32 = arith.constant 2 : i32
    %4 = vector.broadcast %c2_i32 : i32 to vector<12x24xi32>
    %5 = arith.muli %4, %2 : vector<12x24xi32>
    %6 = arith.cmpi eq, %3, %5 : vector<12x24xi32>
    %7 = arith.extui %6 : vector<12x24xi1> to vector<12x24xi32>
    %8 = arith.sitofp %7 : vector<12x24xi32> to vector<12x24xf32>
    %c2_i32_4 = arith.constant 2 : i32
    %9 = vector.broadcast %c2_i32_4 : i32 to vector<12x24xi32>
    %10 = arith.muli %9, %2 : vector<12x24xi32>
    %c1_i32 = arith.constant 1 : i32
    %11 = vector.broadcast %c1_i32 : i32 to vector<12x24xi32>
    %12 = arith.addi %10, %11 : vector<12x24xi32>
    %13 = arith.cmpi eq, %3, %12 : vector<12x24xi32>
    %14 = arith.extui %13 : vector<12x24xi1> to vector<12x24xi32>
    %15 = arith.sitofp %14 : vector<12x24xi32> to vector<12x24xf32>
    %c0_i32 = arith.constant 0 : i32
    %c12_i32 = arith.constant 12 : i32
    %16 = arith.addi %c0_i32, %c12_i32 : i32
    %c1_i32_5 = arith.constant 1 : i32
    scf.for %arg5 = %c0_i32 to %16 step %c1_i32_5  : i32 {
      %c1_i32_7 = arith.constant 1 : i32
      %17 = arith.muli %arg5, %c1_i32_7 : i32
      %c0_i32_8 = arith.constant 0 : i32
      %18 = arith.addi %c0_i32_8, %17 : i32
      %c2_i32_9 = arith.constant 2 : i32
      %19 = arith.muli %c2_i32_9, %18 : i32
      %cst = arith.constant 0.000000e+00 : f32
      %20 = vector.broadcast %cst : f32 to vector<24x16xf32>
      %c0_i32_10 = arith.constant 0 : i32
      %21 = arith.addi %19, %c0_i32_10 : i32
      %c0_11 = arith.constant 0 : index
      %22 = arith.index_cast %21 : i32 to index
      %c0_12 = arith.constant 0 : index
      %c0_13 = arith.constant 0 : index
      %23 = vector.load %arg1[%c0_11, %22, %c0_12, %c0_13] : memref<1x26x26x8xbf16, #tpu.memory_space<vmem>>, vector<1x1x24x8xbf16>
      %24 = vector.shape_cast %23 : vector<1x1x24x8xbf16> to vector<24x8xbf16>
      %25 = vector.extract_strided_slice %0 {offsets = [0, 0, 0], sizes = [1, 8, 16], strides = [1, 1, 1]} : vector<9x8x16xbf16> to vector<1x8x16xbf16>
      %26 = vector.shape_cast %25 : vector<1x8x16xbf16> to vector<8x16xbf16>
      %cst_14 = arith.constant dense<0.000000e+00> : vector<24x16xf32>
      %27 = tpu.matmul %24, %26, %cst_14 {dimension_numbers = #tpu.dot_dimension_numbers<[1], [0], [0], [1], [0, 0, 1, 1], [], []>} : vector<24x8xbf16>, vector<8x16xbf16>, vector<24x16xf32> -> vector<24x16xf32>
      %28 = arith.addf %20, %27 : vector<24x16xf32>
      %c0_i32_15 = arith.constant 0 : i32
      %29 = arith.addi %19, %c0_i32_15 : i32
      %c0_16 = arith.constant 0 : index
      %30 = arith.index_cast %29 : i32 to index
      %c1 = arith.constant 1 : index
      %c0_17 = arith.constant 0 : index
      %31 = vector.load %arg1[%c0_16, %30, %c1, %c0_17] : memref<1x26x26x8xbf16, #tpu.memory_space<vmem>>, vector<1x1x24x8xbf16>
      %32 = vector.shape_cast %31 : vector<1x1x24x8xbf16> to vector<24x8xbf16>
      %33 = vector.extract_strided_slice %0 {offsets = [1, 0, 0], sizes = [1, 8, 16], strides = [1, 1, 1]} : vector<9x8x16xbf16> to vector<1x8x16xbf16>
      %34 = vector.shape_cast %33 : vector<1x8x16xbf16> to vector<8x16xbf16>
      %cst_18 = arith.constant dense<0.000000e+00> : vector<24x16xf32>
      %35 = tpu.matmul %32, %34, %cst_18 {dimension_numbers = #tpu.dot_dimension_numbers<[1], [0], [0], [1], [0, 0, 1, 1], [], []>} : vector<24x8xbf16>, vector<8x16xbf16>, vector<24x16xf32> -> vector<24x16xf32>
      %36 = arith.addf %28, %35 : vector<24x16xf32>
      %c0_i32_19 = arith.constant 0 : i32
      %37 = arith.addi %19, %c0_i32_19 : i32
      %c0_20 = arith.constant 0 : index
      %38 = arith.index_cast %37 : i32 to index
      %c2 = arith.constant 2 : index
      %c0_21 = arith.constant 0 : index
      %39 = vector.load %arg1[%c0_20, %38, %c2, %c0_21] : memref<1x26x26x8xbf16, #tpu.memory_space<vmem>>, vector<1x1x24x8xbf16>
      %40 = vector.shape_cast %39 : vector<1x1x24x8xbf16> to vector<24x8xbf16>
      %41 = vector.extract_strided_slice %0 {offsets = [2, 0, 0], sizes = [1, 8, 16], strides = [1, 1, 1]} : vector<9x8x16xbf16> to vector<1x8x16xbf16>
      %42 = vector.shape_cast %41 : vector<1x8x16xbf16> to vector<8x16xbf16>
      %cst_22 = arith.constant dense<0.000000e+00> : vector<24x16xf32>
      %43 = tpu.matmul %40, %42, %cst_22 {dimension_numbers = #tpu.dot_dimension_numbers<[1], [0], [0], [1], [0, 0, 1, 1], [], []>} : vector<24x8xbf16>, vector<8x16xbf16>, vector<24x16xf32> -> vector<24x16xf32>
      %44 = arith.addf %36, %43 : vector<24x16xf32>
      %c1_i32_23 = arith.constant 1 : i32
      %45 = arith.addi %19, %c1_i32_23 : i32
      %c0_24 = arith.constant 0 : index
      %46 = arith.index_cast %45 : i32 to index
      %c0_25 = arith.constant 0 : index
      %c0_26 = arith.constant 0 : index
      %47 = vector.load %arg1[%c0_24, %46, %c0_25, %c0_26] : memref<1x26x26x8xbf16, #tpu.memory_space<vmem>>, vector<1x1x24x8xbf16>
      %48 = vector.shape_cast %47 : vector<1x1x24x8xbf16> to vector<24x8xbf16>
      %49 = vector.extract_strided_slice %0 {offsets = [3, 0, 0], sizes = [1, 8, 16], strides = [1, 1, 1]} : vector<9x8x16xbf16> to vector<1x8x16xbf16>
      %50 = vector.shape_cast %49 : vector<1x8x16xbf16> to vector<8x16xbf16>
      %cst_27 = arith.constant dense<0.000000e+00> : vector<24x16xf32>
      %51 = tpu.matmul %48, %50, %cst_27 {dimension_numbers = #tpu.dot_dimension_numbers<[1], [0], [0], [1], [0, 0, 1, 1], [], []>} : vector<24x8xbf16>, vector<8x16xbf16>, vector<24x16xf32> -> vector<24x16xf32>
      %52 = arith.addf %44, %51 : vector<24x16xf32>
      %c1_i32_28 = arith.constant 1 : i32
      %53 = arith.addi %19, %c1_i32_28 : i32
      %c0_29 = arith.constant 0 : index
      %54 = arith.index_cast %53 : i32 to index
      %c1_30 = arith.constant 1 : index
      %c0_31 = arith.constant 0 : index
      %55 = vector.load %arg1[%c0_29, %54, %c1_30, %c0_31] : memref<1x26x26x8xbf16, #tpu.memory_space<vmem>>, vector<1x1x24x8xbf16>
      %56 = vector.shape_cast %55 : vector<1x1x24x8xbf16> to vector<24x8xbf16>
      %57 = vector.extract_strided_slice %0 {offsets = [4, 0, 0], sizes = [1, 8, 16], strides = [1, 1, 1]} : vector<9x8x16xbf16> to vector<1x8x16xbf16>
      %58 = vector.shape_cast %57 : vector<1x8x16xbf16> to vector<8x16xbf16>
      %cst_32 = arith.constant dense<0.000000e+00> : vector<24x16xf32>
      %59 = tpu.matmul %56, %58, %cst_32 {dimension_numbers = #tpu.dot_dimension_numbers<[1], [0], [0], [1], [0, 0, 1, 1], [], []>} : vector<24x8xbf16>, vector<8x16xbf16>, vector<24x16xf32> -> vector<24x16xf32>
      %60 = arith.addf %52, %59 : vector<24x16xf32>
      %c1_i32_33 = arith.constant 1 : i32
      %61 = arith.addi %19, %c1_i32_33 : i32
      %c0_34 = arith.constant 0 : index
      %62 = arith.index_cast %61 : i32 to index
      %c2_35 = arith.constant 2 : index
      %c0_36 = arith.constant 0 : index
      %63 = vector.load %arg1[%c0_34, %62, %c2_35, %c0_36] : memref<1x26x26x8xbf16, #tpu.memory_space<vmem>>, vector<1x1x24x8xbf16>
      %64 = vector.shape_cast %63 : vector<1x1x24x8xbf16> to vector<24x8xbf16>
      %65 = vector.extract_strided_slice %0 {offsets = [5, 0, 0], sizes = [1, 8, 16], strides = [1, 1, 1]} : vector<9x8x16xbf16> to vector<1x8x16xbf16>
      %66 = vector.shape_cast %65 : vector<1x8x16xbf16> to vector<8x16xbf16>
      %cst_37 = arith.constant dense<0.000000e+00> : vector<24x16xf32>
      %67 = tpu.matmul %64, %66, %cst_37 {dimension_numbers = #tpu.dot_dimension_numbers<[1], [0], [0], [1], [0, 0, 1, 1], [], []>} : vector<24x8xbf16>, vector<8x16xbf16>, vector<24x16xf32> -> vector<24x16xf32>
      %68 = arith.addf %60, %67 : vector<24x16xf32>
      %c2_i32_38 = arith.constant 2 : i32
      %69 = arith.addi %19, %c2_i32_38 : i32
      %c0_39 = arith.constant 0 : index
      %70 = arith.index_cast %69 : i32 to index
      %c0_40 = arith.constant 0 : index
      %c0_41 = arith.constant 0 : index
      %71 = vector.load %arg1[%c0_39, %70, %c0_40, %c0_41] : memref<1x26x26x8xbf16, #tpu.memory_space<vmem>>, vector<1x1x24x8xbf16>
      %72 = vector.shape_cast %71 : vector<1x1x24x8xbf16> to vector<24x8xbf16>
      %73 = vector.extract_strided_slice %0 {offsets = [6, 0, 0], sizes = [1, 8, 16], strides = [1, 1, 1]} : vector<9x8x16xbf16> to vector<1x8x16xbf16>
      %74 = vector.shape_cast %73 : vector<1x8x16xbf16> to vector<8x16xbf16>
      %cst_42 = arith.constant dense<0.000000e+00> : vector<24x16xf32>
      %75 = tpu.matmul %72, %74, %cst_42 {dimension_numbers = #tpu.dot_dimension_numbers<[1], [0], [0], [1], [0, 0, 1, 1], [], []>} : vector<24x8xbf16>, vector<8x16xbf16>, vector<24x16xf32> -> vector<24x16xf32>
      %76 = arith.addf %68, %75 : vector<24x16xf32>
      %c2_i32_43 = arith.constant 2 : i32
      %77 = arith.addi %19, %c2_i32_43 : i32
      %c0_44 = arith.constant 0 : index
      %78 = arith.index_cast %77 : i32 to index
      %c1_45 = arith.constant 1 : index
      %c0_46 = arith.constant 0 : index
      %79 = vector.load %arg1[%c0_44, %78, %c1_45, %c0_46] : memref<1x26x26x8xbf16, #tpu.memory_space<vmem>>, vector<1x1x24x8xbf16>
      %80 = vector.shape_cast %79 : vector<1x1x24x8xbf16> to vector<24x8xbf16>
      %81 = vector.extract_strided_slice %0 {offsets = [7, 0, 0], sizes = [1, 8, 16], strides = [1, 1, 1]} : vector<9x8x16xbf16> to vector<1x8x16xbf16>
      %82 = vector.shape_cast %81 : vector<1x8x16xbf16> to vector<8x16xbf16>
      %cst_47 = arith.constant dense<0.000000e+00> : vector<24x16xf32>
      %83 = tpu.matmul %80, %82, %cst_47 {dimension_numbers = #tpu.dot_dimension_numbers<[1], [0], [0], [1], [0, 0, 1, 1], [], []>} : vector<24x8xbf16>, vector<8x16xbf16>, vector<24x16xf32> -> vector<24x16xf32>
      %84 = arith.addf %76, %83 : vector<24x16xf32>
      %c2_i32_48 = arith.constant 2 : i32
      %85 = arith.addi %19, %c2_i32_48 : i32
      %c0_49 = arith.constant 0 : index
      %86 = arith.index_cast %85 : i32 to index
      %c2_50 = arith.constant 2 : index
      %c0_51 = arith.constant 0 : index
      %87 = vector.load %arg1[%c0_49, %86, %c2_50, %c0_51] : memref<1x26x26x8xbf16, #tpu.memory_space<vmem>>, vector<1x1x24x8xbf16>
      %88 = vector.shape_cast %87 : vector<1x1x24x8xbf16> to vector<24x8xbf16>
      %89 = vector.extract_strided_slice %0 {offsets = [8, 0, 0], sizes = [1, 8, 16], strides = [1, 1, 1]} : vector<9x8x16xbf16> to vector<1x8x16xbf16>
      %90 = vector.shape_cast %89 : vector<1x8x16xbf16> to vector<8x16xbf16>
      %cst_52 = arith.constant dense<0.000000e+00> : vector<24x16xf32>
      %91 = tpu.matmul %88, %90, %cst_52 {dimension_numbers = #tpu.dot_dimension_numbers<[1], [0], [0], [1], [0, 0, 1, 1], [], []>} : vector<24x8xbf16>, vector<8x16xbf16>, vector<24x16xf32> -> vector<24x16xf32>
      %92 = arith.addf %84, %91 : vector<24x16xf32>
      %c2_i32_53 = arith.constant 2 : i32
      %93 = arith.muli %c2_i32_53, %18 : i32
      %c1_i32_54 = arith.constant 1 : i32
      %94 = arith.addi %93, %c1_i32_54 : i32
      %cst_55 = arith.constant 0.000000e+00 : f32
      %95 = vector.broadcast %cst_55 : f32 to vector<24x16xf32>
      %c0_i32_56 = arith.constant 0 : i32
      %96 = arith.addi %94, %c0_i32_56 : i32
      %c0_57 = arith.constant 0 : index
      %97 = arith.index_cast %96 : i32 to index
      %c0_58 = arith.constant 0 : index
      %c0_59 = arith.constant 0 : index
      %98 = vector.load %arg1[%c0_57, %97, %c0_58, %c0_59] : memref<1x26x26x8xbf16, #tpu.memory_space<vmem>>, vector<1x1x24x8xbf16>
      %99 = vector.shape_cast %98 : vector<1x1x24x8xbf16> to vector<24x8xbf16>
      %100 = vector.extract_strided_slice %0 {offsets = [0, 0, 0], sizes = [1, 8, 16], strides = [1, 1, 1]} : vector<9x8x16xbf16> to vector<1x8x16xbf16>
      %101 = vector.shape_cast %100 : vector<1x8x16xbf16> to vector<8x16xbf16>
      %cst_60 = arith.constant dense<0.000000e+00> : vector<24x16xf32>
      %102 = tpu.matmul %99, %101, %cst_60 {dimension_numbers = #tpu.dot_dimension_numbers<[1], [0], [0], [1], [0, 0, 1, 1], [], []>} : vector<24x8xbf16>, vector<8x16xbf16>, vector<24x16xf32> -> vector<24x16xf32>
      %103 = arith.addf %95, %102 : vector<24x16xf32>
      %c0_i32_61 = arith.constant 0 : i32
      %104 = arith.addi %94, %c0_i32_61 : i32
      %c0_62 = arith.constant 0 : index
      %105 = arith.index_cast %104 : i32 to index
      %c1_63 = arith.constant 1 : index
      %c0_64 = arith.constant 0 : index
      %106 = vector.load %arg1[%c0_62, %105, %c1_63, %c0_64] : memref<1x26x26x8xbf16, #tpu.memory_space<vmem>>, vector<1x1x24x8xbf16>
      %107 = vector.shape_cast %106 : vector<1x1x24x8xbf16> to vector<24x8xbf16>
      %108 = vector.extract_strided_slice %0 {offsets = [1, 0, 0], sizes = [1, 8, 16], strides = [1, 1, 1]} : vector<9x8x16xbf16> to vector<1x8x16xbf16>
      %109 = vector.shape_cast %108 : vector<1x8x16xbf16> to vector<8x16xbf16>
      %cst_65 = arith.constant dense<0.000000e+00> : vector<24x16xf32>
      %110 = tpu.matmul %107, %109, %cst_65 {dimension_numbers = #tpu.dot_dimension_numbers<[1], [0], [0], [1], [0, 0, 1, 1], [], []>} : vector<24x8xbf16>, vector<8x16xbf16>, vector<24x16xf32> -> vector<24x16xf32>
      %111 = arith.addf %103, %110 : vector<24x16xf32>
      %c0_i32_66 = arith.constant 0 : i32
      %112 = arith.addi %94, %c0_i32_66 : i32
      %c0_67 = arith.constant 0 : index
      %113 = arith.index_cast %112 : i32 to index
      %c2_68 = arith.constant 2 : index
      %c0_69 = arith.constant 0 : index
      %114 = vector.load %arg1[%c0_67, %113, %c2_68, %c0_69] : memref<1x26x26x8xbf16, #tpu.memory_space<vmem>>, vector<1x1x24x8xbf16>
      %115 = vector.shape_cast %114 : vector<1x1x24x8xbf16> to vector<24x8xbf16>
      %116 = vector.extract_strided_slice %0 {offsets = [2, 0, 0], sizes = [1, 8, 16], strides = [1, 1, 1]} : vector<9x8x16xbf16> to vector<1x8x16xbf16>
      %117 = vector.shape_cast %116 : vector<1x8x16xbf16> to vector<8x16xbf16>
      %cst_70 = arith.constant dense<0.000000e+00> : vector<24x16xf32>
      %118 = tpu.matmul %115, %117, %cst_70 {dimension_numbers = #tpu.dot_dimension_numbers<[1], [0], [0], [1], [0, 0, 1, 1], [], []>} : vector<24x8xbf16>, vector<8x16xbf16>, vector<24x16xf32> -> vector<24x16xf32>
      %119 = arith.addf %111, %118 : vector<24x16xf32>
      %c1_i32_71 = arith.constant 1 : i32
      %120 = arith.addi %94, %c1_i32_71 : i32
      %c0_72 = arith.constant 0 : index
      %121 = arith.index_cast %120 : i32 to index
      %c0_73 = arith.constant 0 : index
      %c0_74 = arith.constant 0 : index
      %122 = vector.load %arg1[%c0_72, %121, %c0_73, %c0_74] : memref<1x26x26x8xbf16, #tpu.memory_space<vmem>>, vector<1x1x24x8xbf16>
      %123 = vector.shape_cast %122 : vector<1x1x24x8xbf16> to vector<24x8xbf16>
      %124 = vector.extract_strided_slice %0 {offsets = [3, 0, 0], sizes = [1, 8, 16], strides = [1, 1, 1]} : vector<9x8x16xbf16> to vector<1x8x16xbf16>
      %125 = vector.shape_cast %124 : vector<1x8x16xbf16> to vector<8x16xbf16>
      %cst_75 = arith.constant dense<0.000000e+00> : vector<24x16xf32>
      %126 = tpu.matmul %123, %125, %cst_75 {dimension_numbers = #tpu.dot_dimension_numbers<[1], [0], [0], [1], [0, 0, 1, 1], [], []>} : vector<24x8xbf16>, vector<8x16xbf16>, vector<24x16xf32> -> vector<24x16xf32>
      %127 = arith.addf %119, %126 : vector<24x16xf32>
      %c1_i32_76 = arith.constant 1 : i32
      %128 = arith.addi %94, %c1_i32_76 : i32
      %c0_77 = arith.constant 0 : index
      %129 = arith.index_cast %128 : i32 to index
      %c1_78 = arith.constant 1 : index
      %c0_79 = arith.constant 0 : index
      %130 = vector.load %arg1[%c0_77, %129, %c1_78, %c0_79] : memref<1x26x26x8xbf16, #tpu.memory_space<vmem>>, vector<1x1x24x8xbf16>
      %131 = vector.shape_cast %130 : vector<1x1x24x8xbf16> to vector<24x8xbf16>
      %132 = vector.extract_strided_slice %0 {offsets = [4, 0, 0], sizes = [1, 8, 16], strides = [1, 1, 1]} : vector<9x8x16xbf16> to vector<1x8x16xbf16>
      %133 = vector.shape_cast %132 : vector<1x8x16xbf16> to vector<8x16xbf16>
      %cst_80 = arith.constant dense<0.000000e+00> : vector<24x16xf32>
      %134 = tpu.matmul %131, %133, %cst_80 {dimension_numbers = #tpu.dot_dimension_numbers<[1], [0], [0], [1], [0, 0, 1, 1], [], []>} : vector<24x8xbf16>, vector<8x16xbf16>, vector<24x16xf32> -> vector<24x16xf32>
      %135 = arith.addf %127, %134 : vector<24x16xf32>
      %c1_i32_81 = arith.constant 1 : i32
      %136 = arith.addi %94, %c1_i32_81 : i32
      %c0_82 = arith.constant 0 : index
      %137 = arith.index_cast %136 : i32 to index
      %c2_83 = arith.constant 2 : index
      %c0_84 = arith.constant 0 : index
      %138 = vector.load %arg1[%c0_82, %137, %c2_83, %c0_84] : memref<1x26x26x8xbf16, #tpu.memory_space<vmem>>, vector<1x1x24x8xbf16>
      %139 = vector.shape_cast %138 : vector<1x1x24x8xbf16> to vector<24x8xbf16>
      %140 = vector.extract_strided_slice %0 {offsets = [5, 0, 0], sizes = [1, 8, 16], strides = [1, 1, 1]} : vector<9x8x16xbf16> to vector<1x8x16xbf16>
      %141 = vector.shape_cast %140 : vector<1x8x16xbf16> to vector<8x16xbf16>
      %cst_85 = arith.constant dense<0.000000e+00> : vector<24x16xf32>
      %142 = tpu.matmul %139, %141, %cst_85 {dimension_numbers = #tpu.dot_dimension_numbers<[1], [0], [0], [1], [0, 0, 1, 1], [], []>} : vector<24x8xbf16>, vector<8x16xbf16>, vector<24x16xf32> -> vector<24x16xf32>
      %143 = arith.addf %135, %142 : vector<24x16xf32>
      %c2_i32_86 = arith.constant 2 : i32
      %144 = arith.addi %94, %c2_i32_86 : i32
      %c0_87 = arith.constant 0 : index
      %145 = arith.index_cast %144 : i32 to index
      %c0_88 = arith.constant 0 : index
      %c0_89 = arith.constant 0 : index
      %146 = vector.load %arg1[%c0_87, %145, %c0_88, %c0_89] : memref<1x26x26x8xbf16, #tpu.memory_space<vmem>>, vector<1x1x24x8xbf16>
      %147 = vector.shape_cast %146 : vector<1x1x24x8xbf16> to vector<24x8xbf16>
      %148 = vector.extract_strided_slice %0 {offsets = [6, 0, 0], sizes = [1, 8, 16], strides = [1, 1, 1]} : vector<9x8x16xbf16> to vector<1x8x16xbf16>
      %149 = vector.shape_cast %148 : vector<1x8x16xbf16> to vector<8x16xbf16>
      %cst_90 = arith.constant dense<0.000000e+00> : vector<24x16xf32>
      %150 = tpu.matmul %147, %149, %cst_90 {dimension_numbers = #tpu.dot_dimension_numbers<[1], [0], [0], [1], [0, 0, 1, 1], [], []>} : vector<24x8xbf16>, vector<8x16xbf16>, vector<24x16xf32> -> vector<24x16xf32>
      %151 = arith.addf %143, %150 : vector<24x16xf32>
      %c2_i32_91 = arith.constant 2 : i32
      %152 = arith.addi %94, %c2_i32_91 : i32
      %c0_92 = arith.constant 0 : index
      %153 = arith.index_cast %152 : i32 to index
      %c1_93 = arith.constant 1 : index
      %c0_94 = arith.constant 0 : index
      %154 = vector.load %arg1[%c0_92, %153, %c1_93, %c0_94] : memref<1x26x26x8xbf16, #tpu.memory_space<vmem>>, vector<1x1x24x8xbf16>
      %155 = vector.shape_cast %154 : vector<1x1x24x8xbf16> to vector<24x8xbf16>
      %156 = vector.extract_strided_slice %0 {offsets = [7, 0, 0], sizes = [1, 8, 16], strides = [1, 1, 1]} : vector<9x8x16xbf16> to vector<1x8x16xbf16>
      %157 = vector.shape_cast %156 : vector<1x8x16xbf16> to vector<8x16xbf16>
      %cst_95 = arith.constant dense<0.000000e+00> : vector<24x16xf32>
      %158 = tpu.matmul %155, %157, %cst_95 {dimension_numbers = #tpu.dot_dimension_numbers<[1], [0], [0], [1], [0, 0, 1, 1], [], []>} : vector<24x8xbf16>, vector<8x16xbf16>, vector<24x16xf32> -> vector<24x16xf32>
      %159 = arith.addf %151, %158 : vector<24x16xf32>
      %c2_i32_96 = arith.constant 2 : i32
      %160 = arith.addi %94, %c2_i32_96 : i32
      %c0_97 = arith.constant 0 : index
      %161 = arith.index_cast %160 : i32 to index
      %c2_98 = arith.constant 2 : index
      %c0_99 = arith.constant 0 : index
      %162 = vector.load %arg1[%c0_97, %161, %c2_98, %c0_99] : memref<1x26x26x8xbf16, #tpu.memory_space<vmem>>, vector<1x1x24x8xbf16>
      %163 = vector.shape_cast %162 : vector<1x1x24x8xbf16> to vector<24x8xbf16>
      %164 = vector.extract_strided_slice %0 {offsets = [8, 0, 0], sizes = [1, 8, 16], strides = [1, 1, 1]} : vector<9x8x16xbf16> to vector<1x8x16xbf16>
      %165 = vector.shape_cast %164 : vector<1x8x16xbf16> to vector<8x16xbf16>
      %cst_100 = arith.constant dense<0.000000e+00> : vector<24x16xf32>
      %166 = tpu.matmul %163, %165, %cst_100 {dimension_numbers = #tpu.dot_dimension_numbers<[1], [0], [0], [1], [0, 0, 1, 1], [], []>} : vector<24x8xbf16>, vector<8x16xbf16>, vector<24x16xf32> -> vector<24x16xf32>
      %167 = arith.addf %159, %166 : vector<24x16xf32>
      %168 = arith.maximumf %92, %167 : vector<24x16xf32>
      %cst_101 = arith.constant dense<0.000000e+00> : vector<12x16xf32>
      %169 = tpu.matmul %8, %168, %cst_101 {dimension_numbers = #tpu.dot_dimension_numbers<[1], [0], [0], [1], [0, 0, 1, 1], [], []>} : vector<12x24xf32>, vector<24x16xf32>, vector<12x16xf32> -> vector<12x16xf32>
      %cst_102 = arith.constant dense<0.000000e+00> : vector<12x16xf32>
      %170 = tpu.matmul %15, %168, %cst_102 {dimension_numbers = #tpu.dot_dimension_numbers<[1], [0], [0], [1], [0, 0, 1, 1], [], []>} : vector<12x24xf32>, vector<24x16xf32>, vector<12x16xf32> -> vector<12x16xf32>
      %171 = arith.maximumf %169, %170 : vector<12x16xf32>
      %172 = vector.broadcast %1 : vector<1x16xf32> to vector<12x16xf32>
      %173 = arith.addf %171, %172 : vector<12x16xf32>
      %cst_103 = arith.constant 0.000000e+00 : f32
      %174 = vector.broadcast %cst_103 : f32 to vector<12x16xf32>
      %175 = arith.maximumf %173, %174 : vector<12x16xf32>
      %176 = arith.truncf %175 : vector<12x16xf32> to vector<12x16xbf16>
      %c0_104 = arith.constant 0 : index
      %177 = arith.index_cast %18 : i32 to index
      %c0_105 = arith.constant 0 : index
      %c0_106 = arith.constant 0 : index
      %178 = vector.load %arg4[%c0_104, %177, %c0_105, %c0_106] : memref<1x12x12x16xbf16, #tpu.memory_space<vmem>>, vector<1x1x12x16xbf16>
      %179 = vector.shape_cast %178 : vector<1x1x12x16xbf16> to vector<12x16xbf16>
      %180 = vector.shape_cast %176 : vector<12x16xbf16> to vector<1x1x12x16xbf16>
      tpu.vector_store %arg4[%c0_104, %177, %c0_105, %c0_106], %180 {strides = array<i32>} : memref<1x12x12x16xbf16, #tpu.memory_space<vmem>>, vector<1x1x12x16xbf16>,
    }
    %c12_i32_6 = arith.constant 12 : i32
    return
  }
  func.func @transform_0(%arg0: i32) -> (i32, i32, i32, i32) {
    %c0_i32 = arith.constant 0 : i32
    %c0_i32_0 = arith.constant 0 : i32
    %c0_i32_1 = arith.constant 0 : i32
    %c0_i32_2 = arith.constant 0 : i32
    return %arg0, %c0_i32, %c0_i32_0, %c0_i32_1 : i32, i32, i32, i32
  }
  func.func @transform_1(%arg0: i32) -> (i32, i32, i32) {
    %c0_i32 = arith.constant 0 : i32
    %c0_i32_0 = arith.constant 0 : i32
    %c0_i32_1 = arith.constant 0 : i32
    %c0_i32_2 = arith.constant 0 : i32
    return %c0_i32, %c0_i32_0, %c0_i32_1 : i32, i32, i32
  }
  func.func @transform_2(%arg0: i32) -> (i32, i32) {
    %c0_i32 = arith.constant 0 : i32
    %c0_i32_0 = arith.constant 0 : i32
    %c0_i32_1 = arith.constant 0 : i32
    return %c0_i32, %c0_i32_0 : i32, i32
  }
  func.func @transform_3(%arg0: i32) -> (i32, i32, i32, i32) {
    %c0_i32 = arith.constant 0 : i32
    %c0_i32_0 = arith.constant 0 : i32
    %c0_i32_1 = arith.constant 0 : i32
    %c0_i32_2 = arith.constant 0 : i32
    return %arg0, %c0_i32, %c0_i32_0, %c0_i32_1 : i32, i32, i32, i32
  }
}

module attributes {stable_mosaic.version = 11 : i64} {
  func.func @_fc_head_kernel(%arg0: i32, %arg1: memref<8x2304xbf16, #tpu.memory_space<vmem>>, %arg2: memref<2304x32xbf16, #tpu.memory_space<vmem>>, %arg3: memref<1x32xf32, #tpu.memory_space<vmem>>, %arg4: memref<32x10xbf16, #tpu.memory_space<vmem>>, %arg5: memref<1x10xf32, #tpu.memory_space<vmem>>, %arg6: memref<8x10xf32, #tpu.memory_space<vmem>>) attributes {dimension_semantics = [#tpu.dimension_semantics<parallel>], iteration_bounds = array<i64: 1>, scalar_prefetch = 0 : i64, scratch_operands = 0 : i64, tpu.core_type = #tpu.core_type<tc>, window_params = [{transform_indices = @transform_0, window_bounds = array<i64: 8, 2304>}, {pipeline_mode = #tpu.pipeline_mode<synchronous>, transform_indices = @transform_1, window_bounds = array<i64: 2304, 32>}, {pipeline_mode = #tpu.pipeline_mode<synchronous>, transform_indices = @transform_2, window_bounds = array<i64: 1, 32>}, {pipeline_mode = #tpu.pipeline_mode<synchronous>, transform_indices = @transform_3, window_bounds = array<i64: 32, 10>}, {pipeline_mode = #tpu.pipeline_mode<synchronous>, transform_indices = @transform_4, window_bounds = array<i64: 1, 10>}, {transform_indices = @transform_5, window_bounds = array<i64: 8, 10>}]} {
    %c0 = arith.constant 0 : index
    %c0_0 = arith.constant 0 : index
    %0 = vector.load %arg1[%c0, %c0_0] : memref<8x2304xbf16, #tpu.memory_space<vmem>>, vector<8x2304xbf16>
    %c0_1 = arith.constant 0 : index
    %c0_2 = arith.constant 0 : index
    %1 = vector.load %arg2[%c0_1, %c0_2] : memref<2304x32xbf16, #tpu.memory_space<vmem>>, vector<2304x32xbf16>
    %cst = arith.constant dense<0.000000e+00> : vector<8x32xf32>
    %2 = tpu.matmul %0, %1, %cst {dimension_numbers = #tpu.dot_dimension_numbers<[1], [0], [0], [1], [0, 0, 1, 1], [], []>} : vector<8x2304xbf16>, vector<2304x32xbf16>, vector<8x32xf32> -> vector<8x32xf32>
    %c0_3 = arith.constant 0 : index
    %c0_4 = arith.constant 0 : index
    %3 = vector.load %arg3[%c0_3, %c0_4] : memref<1x32xf32, #tpu.memory_space<vmem>>, vector<1x32xf32>
    %4 = vector.broadcast %3 : vector<1x32xf32> to vector<8x32xf32>
    %5 = arith.addf %2, %4 : vector<8x32xf32>
    %cst_5 = arith.constant 0.000000e+00 : f32
    %6 = vector.broadcast %cst_5 : f32 to vector<8x32xf32>
    %7 = arith.maximumf %5, %6 : vector<8x32xf32>
    %8 = arith.truncf %7 : vector<8x32xf32> to vector<8x32xbf16>
    %c0_6 = arith.constant 0 : index
    %c0_7 = arith.constant 0 : index
    %9 = vector.load %arg4[%c0_6, %c0_7] : memref<32x10xbf16, #tpu.memory_space<vmem>>, vector<32x10xbf16>
    %cst_8 = arith.constant dense<0.000000e+00> : vector<8x10xf32>
    %10 = tpu.matmul %8, %9, %cst_8 {dimension_numbers = #tpu.dot_dimension_numbers<[1], [0], [0], [1], [0, 0, 1, 1], [], []>} : vector<8x32xbf16>, vector<32x10xbf16>, vector<8x10xf32> -> vector<8x10xf32>
    %c0_9 = arith.constant 0 : index
    %c0_10 = arith.constant 0 : index
    %11 = vector.load %arg5[%c0_9, %c0_10] : memref<1x10xf32, #tpu.memory_space<vmem>>, vector<1x10xf32>
    %12 = vector.broadcast %11 : vector<1x10xf32> to vector<8x10xf32>
    %13 = arith.addf %10, %12 : vector<8x10xf32>
    %cst_11 = arith.constant dense<0xFF800000> : vector<8xf32>
    %14 = vector.multi_reduction <maximumf>, %13, %cst_11 [1] : vector<8x10xf32> to vector<8xf32>
    %15 = vector.shape_cast %14 : vector<8xf32> to vector<8x1xf32>
    %16 = vector.broadcast %15 : vector<8x1xf32> to vector<8x10xf32>
    %17 = arith.subf %13, %16 : vector<8x10xf32>
    %18 = math.exp %17 : vector<8x10xf32>
    %cst_12 = arith.constant dense<0.000000e+00> : vector<8xf32>
    %19 = vector.multi_reduction <add>, %18, %cst_12 [1] : vector<8x10xf32> to vector<8xf32>
    %20 = vector.shape_cast %19 : vector<8xf32> to vector<8x1xf32>
    %21 = math.log %20 : vector<8x1xf32>
    %22 = vector.broadcast %21 : vector<8x1xf32> to vector<8x10xf32>
    %23 = arith.subf %17, %22 : vector<8x10xf32>
    %c0_13 = arith.constant 0 : index
    %c0_14 = arith.constant 0 : index
    %24 = vector.load %arg6[%c0_13, %c0_14] : memref<8x10xf32, #tpu.memory_space<vmem>>, vector<8x10xf32>
    tpu.vector_store %arg6[%c0_13, %c0_14], %23 {strides = array<i32>} : memref<8x10xf32, #tpu.memory_space<vmem>>, vector<8x10xf32>,
    return
  }
  func.func @transform_0(%arg0: i32) -> (i32, i32) {
    %c0_i32 = arith.constant 0 : i32
    %c0_i32_0 = arith.constant 0 : i32
    return %arg0, %c0_i32 : i32, i32
  }
  func.func @transform_1(%arg0: i32) -> (i32, i32) {
    %c0_i32 = arith.constant 0 : i32
    %c0_i32_0 = arith.constant 0 : i32
    %c0_i32_1 = arith.constant 0 : i32
    return %c0_i32, %c0_i32_0 : i32, i32
  }
  func.func @transform_2(%arg0: i32) -> (i32, i32) {
    %c0_i32 = arith.constant 0 : i32
    %c0_i32_0 = arith.constant 0 : i32
    %c0_i32_1 = arith.constant 0 : i32
    return %c0_i32, %c0_i32_0 : i32, i32
  }
  func.func @transform_3(%arg0: i32) -> (i32, i32) {
    %c0_i32 = arith.constant 0 : i32
    %c0_i32_0 = arith.constant 0 : i32
    %c0_i32_1 = arith.constant 0 : i32
    return %c0_i32, %c0_i32_0 : i32, i32
  }
  func.func @transform_4(%arg0: i32) -> (i32, i32) {
    %c0_i32 = arith.constant 0 : i32
    %c0_i32_0 = arith.constant 0 : i32
    %c0_i32_1 = arith.constant 0 : i32
    return %c0_i32, %c0_i32_0 : i32, i32
  }
  func.func @transform_5(%arg0: i32) -> (i32, i32) {
    %c0_i32 = arith.constant 0 : i32
    %c0_i32_0 = arith.constant 0 : i32
    return %arg0, %c0_i32 : i32, i32
  }
}

</mosaic_0001>

<llo_original>
// kernel: forward.3
$region0: #{forward.3}
  #allocation0 [shape = 'u32[]', space=smem, size = 0x4, offset = 0x4, fixed_abs, tag = 'smem constant byte address 0x4 - core index']
  #allocation1 [shape = 'u32[144,128]{1,0:T(1,128)}', space=vmem, size = 0x12000, scoped, tag = 'internal scratch']
  %s0 = inlined_call_operand.vmem [shape: f32[2,28,28,1], index: 0, kind: input, shape index: {}]
  %s1 = inlined_call_operand.vmem [shape: f32[9,8], index: 1, kind: input, shape index: {}]
  %s2 = inlined_call_operand.vmem [shape: f32[1,8], index: 2, kind: input, shape index: {}]
  %s3 = inlined_call_operand.vmem [shape: bf16[2,26,26,8], index: 3, kind: output, shape index: {}]
  %s4 = sld [smem:[#allocation0]]
  $region52: #{forward.3} parent=0
    _
  %s6 = ssub.s32 1, %s4
  %s7 = scalar_select 0, %s6, %s4
  loop: start=0, step=1, limit=4
  $region2: #{forward.3} parent=0 // loop_pre_header
    _
  $region3: #{forward.3} parent=0 // loop_header
    %s9 = sphi 0, %s13
    %p10 = scmp.ge.s32.totalorder %s9, 4
    %s19 = sphi 0, %s21
    %s22 = sphi 0, %s19
    %s23 = sphi 0, %s22
    %s39 = sphi 0, %s23
    %s43 = sphi 0, %s43
    %s45 = sphi 0, %s43
    %s46 = sphi 0, %s45
    %s60 = sphi 0, %s46
    %s64 = sphi 0, %s64
    %s66 = sphi 0, %s64
    %s67 = sphi 0, %s66
    %s81 = sphi 0, %s67
    %s87 = sphi 0, %s89
    %s90 = sphi 0, %s87
    %s91 = sphi 0, %s90
    %s107 = sphi 0, %s91
  $region4: #{forward.3} parent=0 // loop_header_branch
    %12 = sbr.rel (%p10) target = $region8
  $region5: #{forward.3} parent=0 // loop_body
    %s14 = ssub.s32 %s9, 1
    %s15 = ssub.s32 %s9, 2
    %s16 = sadd.s32 %s9, 1
    %s17 = ssub.s32 %s9, %s16
    %p18 = scmp.eq.s32.totalorder %s17, 0
    %s20 = sadd.s32 %s19, 1
    %s21 = scalar_select %p18, %s19, %s20
    %p24 = pneg %p18
    %p25 = scmp.eq.s32.totalorder %s9, 1
    %p26 = por %p24, %p25
    %p27 = scmp.ne.s32.totalorder %s19, %s22
    %p28 = scmp.eq.s32.totalorder %s9, 0
    %p29 = por %p27, %p28
    %p30 = scmp.ne.s32.totalorder %s19, %s22
    %p31 = scmp.eq.s32.totalorder %s14, 1
    %p32 = por %p30, %p31
    %p33 = scmp.ne.s32.totalorder %s22, %s23
    %p34 = scmp.eq.s32.totalorder %s14, 0
    %p35 = por %p33, %p34
    %p36 = scmp.ne.s32.totalorder %s22, %s23
    %p37 = scmp.eq.s32.totalorder %s15, 1
    %p38 = por %p36, %p37
    %p40 = scmp.ne.s32.totalorder %s23, %s39
    %p41 = scmp.eq.s32.totalorder %s15, 0
    %p42 = por %p40, %p41
    %s44 = sadd.s32 %s43, 1
    %p47 = scmp.eq.s32.totalorder %s9, 1
    %p48 = scmp.ne.s32.totalorder %s43, %s45
    %p49 = scmp.eq.s32.totalorder %s9, 0
    %p50 = por %p48, %p49
    %p51 = scmp.ne.s32.totalorder %s43, %s45
    %p52 = scmp.eq.s32.totalorder %s14, 1
    %p53 = por %p51, %p52
    %p54 = scmp.ne.s32.totalorder %s45, %s46
    %p55 = scmp.eq.s32.totalorder %s14, 0
    %p56 = por %p54, %p55
    %p57 = scmp.ne.s32.totalorder %s45, %s46
    %p58 = scmp.eq.s32.totalorder %s15, 1
    %p59 = por %p57, %p58
    %p61 = scmp.ne.s32.totalorder %s46, %s60
    %p62 = scmp.eq.s32.totalorder %s15, 0
    %p63 = por %p61, %p62
    %s65 = sadd.s32 %s64, 1
    %p68 = scmp.eq.s32.totalorder %s9, 1
    %p69 = scmp.ne.s32.totalorder %s64, %s66
    %p70 = scmp.eq.s32.totalorder %s9, 0
    %p71 = por %p69, %p70
    %p72 = scmp.ne.s32.totalorder %s64, %s66
    %p73 = scmp.eq.s32.totalorder %s14, 1
    %p74 = por %p72, %p73
    %p75 = scmp.ne.s32.totalorder %s66, %s67
    %p76 = scmp.eq.s32.totalorder %s14, 0
    %p77 = por %p75, %p76
    %p78 = scmp.ne.s32.totalorder %s66, %s67
    %p79 = scmp.eq.s32.totalorder %s15, 1
    %p80 = por %p78, %p79
    %p82 = scmp.ne.s32.totalorder %s67, %s81
    %p83 = scmp.eq.s32.totalorder %s15, 0
    %p84 = por %p82, %p83
    %s85 = ssub.s32 %s9, %s16
    %p86 = scmp.eq.s32.totalorder %s85, 0
    %s88 = sadd.s32 %s87, 1
    %s89 = scalar_select %p86, %s87, %s88
    %p92 = pneg %p86
    %p93 = scmp.eq.s32.totalorder %s9, 1
    %p94 = por %p92, %p93
    %p95 = scmp.ne.s32.totalorder %s87, %s90
    %p96 = scmp.eq.s32.totalorder %s9, 0
    %p97 = por %p95, %p96
    %p98 = scmp.ne.s32.totalorder %s87, %s90
    %p99 = scmp.eq.s32.totalorder %s14, 1
    %p100 = por %p98, %p99
    %p101 = scmp.ne.s32.totalorder %s90, %s91
    %p102 = scmp.eq.s32.totalorder %s14, 0
    %p103 = por %p101, %p102
    %p104 = scmp.ne.s32.totalorder %s90, %s91
    %p105 = scmp.eq.s32.totalorder %s15, 1
    %p106 = por %p104, %p105
    %p108 = scmp.ne.s32.totalorder %s91, %s107
    %p109 = scmp.eq.s32.totalorder %s15, 0
    %p110 = por %p108, %p109
    %p111 = scmp.le.s32.totalorder 1, %s9
    %p112 = scmp.lt.s32.totalorder %s9, 3
    %p113 = pnand %p111, %p112
    %p114 = pneg %p113
    // Predicated region
    $region9: #{forward.3} parent=5 // pred_check
      _
    $region10: #{forward.3} parent=5 // pred_check_branch
      %116 = sbr.rel (%p113) target = $region12
    $region11: #{forward.3} parent=5 // pred_region
      %s117 = ssub.s32 %s9, 1
      // Predicated region
      $region13: #{forward.3} parent=11 // pred_check
        %p118 = pneg %p56
      $region14: #{forward.3} parent=11 // pred_check_branch
        %120 = sbr.rel (%p118) target = $region16
      $region15: #{forward.3} parent=11 // pred_region
        _
      $region16: #{forward.3} parent=11 // pred_fallthru
        _
      // Predicated region
      $region17: #{forward.3} parent=11 // pred_check
        %p121 = pneg %p77
      $region18: #{forward.3} parent=11 // pred_check_branch
        %123 = sbr.rel (%p121) target = $region20
      $region19: #{forward.3} parent=11 // pred_region
        _
      $region20: #{forward.3} parent=11 // pred_fallthru
        _
    $region12: #{forward.3} parent=5 // pred_fallthru
      _
    %p124 = scmp.lt.s32.totalorder %s9, 2
    // Predicated region
    $region21: #{forward.3} parent=5 // pred_check
      %p125 = pneg %p124
    $region22: #{forward.3} parent=5 // pred_check_branch
      %127 = sbr.rel (%p125) target = $region24
    $region23: #{forward.3} parent=5 // pred_region
      // Predicated region
      $region25: #{forward.3} parent=23 // pred_check
        %p128 = pneg %p29
      $region26: #{forward.3} parent=23 // pred_check_branch
        %130 = sbr.rel (%p128) target = $region28
      $region27: #{forward.3} parent=23 // pred_region
        %p131 = scmp.lt.s32.totalorder %s9, 1
        %s132 = scalar_select %p131, %s9, 1
        %s133 = smul.addr %s132, 112
        %s134 = smul.addr %s133, 8
        %s135 = scalar_lea.vmem %s0, %s134
      $region28: #{forward.3} parent=23 // pred_fallthru
        _
    $region24: #{forward.3} parent=5 // pred_fallthru
      _
    %p136 = scmp.le.s32.totalorder 1, %s9
    %p137 = scmp.lt.s32.totalorder %s9, 3
    %p138 = pnand %p136, %p137
    %p139 = pneg %p138
    // Predicated region
    $region29: #{forward.3} parent=5 // pred_check
      _
    $region30: #{forward.3} parent=5 // pred_check_branch
      %141 = sbr.rel (%p138) target = $region32
    $region31: #{forward.3} parent=5 // pred_region
      %s142 = ssub.s32 %s9, 1
      %p143 = scmp.lt.s32.totalorder %s14, 1
      %s144 = scalar_select %p143, %s14, 1
      %s145 = smul.addr %s144, 112
      %s146 = smul.addr %s145, 8
      %s147 = scalar_lea.vmem %s0, %s146
      %p148 = pneg %p35
      %p149 = pneg %p32
      %p150 = pneg %p56
      %p151 = pneg %p53
      %p152 = pneg %p77
      %p153 = pneg %p74
      %p154 = pneg %p103
      %p155 = pneg %p100
      %p156 = scmp.lt.s32.totalorder %s14, 1
      %s157 = scalar_select %p156, %s14, 1
      %s158 = smul.addr %s157, 104
      %s159 = smul.addr %s158, 4
      %s160 = scalar_lea.vmem %s3, %s159
      %p161 = scmp.lt.s32.totalorder %s14, 1
      %s162 = scalar_select %p161, %s14, 1
      %s163 = smul.addr %s162, 112
      %s164 = smul.addr %s163, 8
      %s165 = scalar_lea.vmem %s0, %s164
      %p166 = scmp.lt.s32.totalorder %s14, 1
      %s167 = scalar_select %p166, %s14, 1
      %s168 = smul.addr %s167, 104
      %s169 = smul.addr %s168, 4
      %s170 = scalar_lea.vmem %s3, %s169
      %v171 = vld [vmem:[%s1] sm:$0xff]
      %v172 = vld [vmem:[%s1 + $0x8] sm:$0x1]
      %v173 = vld [vmem:[%s2] sm:$0x1]
      loop: start=0, step=1, limit=26
      $region33: #{forward.3} parent=31 // loop_pre_header
        _
      $region34: #{forward.3} parent=31 // loop_header
        %s175 = sphi 0, %s179
        %p176 = scmp.ge.s32.totalorder %s175, 26
      $region35: #{forward.3} parent=31 // loop_header_branch
        %178 = sbr.rel (%p176) target = $region39
      $region36: #{forward.3} parent=31 // loop_body
        %s180 = smul.u32 %s175, 32
        %s181 = scalar_lea.vmem %s165, %s180
        %v182 = vld [vmem:[%s181] sm:$0xff]
        %v183 = vld [vmem:[%s181 + $0x8] sm:$0xff]
        %v184 = vld [vmem:[%s181 + $0x10] sm:$0xff]
        %v185 = vld [vmem:[%s181 + $0x18] sm:$0x3]
        %187 = vset.pattern.permute.xlu0 0
        %188 = vperm.xlu0 %187, %v182
        %v189 = vpop.permute.xlu0 %188
        %192 = vset.pattern.permute.xlu0 0
        %193 = vperm.xlu0 %192, %v183
        %v194 = vpop.permute.xlu0 %193
        %197 = vset.pattern.permute.xlu0 0
        %198 = vperm.xlu0 %197, %v184
        %v199 = vpop.permute.xlu0 %198
        %202 = vset.pattern.permute.xlu0 0
        %203 = vperm.xlu0 %202, %v185
        %v204 = vpop.permute.xlu0 %203
        %v206 = vlaneseq
        %v207 = vshrl.u32 %v206, 7
        %v208 = vsub.s32 0, %v207
        %v209 = vrot.slane %v171, %v208
        %v210 = vmul.f32 %v189, %v209
        %v211 = vmul.f32 %v194, %v209
        %v212 = vmul.f32 %v199, %v209
        %v213 = vmul.f32 %v204, %v209
        %v214 = vadd.f32 %v210, 0.0
        %v215 = vadd.f32 %v211, 0.0
        %v216 = vadd.f32 %v212, 0.0
        %v217 = vadd.f32 %v213, 0.0
        %v218 = vld [vmem:[%s181 + $0x1] sm:$0xff]
        %v219 = vld [vmem:[%s181 + $0x9] sm:$0xff]
        %v220 = vld [vmem:[%s181 + $0x11] sm:$0xff]
        %v221 = vld [vmem:[%s181 + $0x19] sm:$0x3]
        %223 = vset.pattern.permute.xlu0 0
        %224 = vperm.xlu0 %223, %v218
        %v225 = vpop.permute.xlu0 %224
        %228 = vset.pattern.permute.xlu0 0
        %229 = vperm.xlu0 %228, %v219
        %v230 = vpop.permute.xlu0 %229
        %233 = vset.pattern.permute.xlu0 0
        %234 = vperm.xlu0 %233, %v220
        %v235 = vpop.permute.xlu0 %234
        %238 = vset.pattern.permute.xlu0 0
        %239 = vperm.xlu0 %238, %v221
        %v240 = vpop.permute.xlu0 %239
        %v242 = vlaneseq
        %v243 = vshrl.u32 %v242, 7
        %v244 = vsub.s32 1, %v243
        %v245 = vrot.slane %v171, %v244
        %v246 = vmul.f32 %v225, %v245
        %v247 = vmul.f32 %v230, %v245
        %v248 = vmul.f32 %v235, %v245
        %v249 = vmul.f32 %v240, %v245
        %v250 = vadd.f32 %v214, %v246
        %v251 = vadd.f32 %v215, %v247
        %v252 = vadd.f32 %v216, %v248
        %v253 = vadd.f32 %v217, %v249
        %v254 = vld [vmem:[%s181 + $0x2] sm:$0xff]
        %v255 = vld [vmem:[%s181 + $0xa] sm:$0xff]
        %v256 = vld [vmem:[%s181 + $0x12] sm:$0xff]
        %v257 = vld [vmem:[%s181 + $0x1a] sm:$0x3]
        %259 = vset.pattern.permute.xlu0 0
        %260 = vperm.xlu0 %259, %v254
        %v261 = vpop.permute.xlu0 %260
        %264 = vset.pattern.permute.xlu0 0
        %265 = vperm.xlu0 %264, %v255
        %v266 = vpop.permute.xlu0 %265
        %269 = vset.pattern.permute.xlu0 0
        %270 = vperm.xlu0 %269, %v256
        %v271 = vpop.permute.xlu0 %270
        %274 = vset.pattern.permute.xlu0 0
        %275 = vperm.xlu0 %274, %v257
        %v276 = vpop.permute.xlu0 %275
        %v278 = vlaneseq
        %v279 = vshrl.u32 %v278, 7
        %v280 = vsub.s32 2, %v279
        %v281 = vrot.slane %v171, %v280
        %v282 = vmul.f32 %v261, %v281
        %v283 = vmul.f32 %v266, %v281
        %v284 = vmul.f32 %v271, %v281
        %v285 = vmul.f32 %v276, %v281
        %v286 = vadd.f32 %v250, %v282
        %v287 = vadd.f32 %v251, %v283
        %v288 = vadd.f32 %v252, %v284
        %v289 = vadd.f32 %v253, %v285
        %s290 = sadd.s32 %s175, 1
        %s291 = smul.u32 %s290, 32
        %s292 = scalar_lea.vmem %s165, %s291
        %v293 = vld [vmem:[%s292] sm:$0xff]
        %v294 = vld [vmem:[%s292 + $0x8] sm:$0xff]
        %v295 = vld [vmem:[%s292 + $0x10] sm:$0xff]
        %v296 = vld [vmem:[%s292 + $0x18] sm:$0x3]
        %298 = vset.pattern.permute.xlu0 0
        %299 = vperm.xlu0 %298, %v293
        %v300 = vpop.permute.xlu0 %299
        %303 = vset.pattern.permute.xlu0 0
        %304 = vperm.xlu0 %303, %v294
        %v305 = vpop.permute.xlu0 %304
        %308 = vset.pattern.permute.xlu0 0
        %309 = vperm.xlu0 %308, %v295
        %v310 = vpop.permute.xlu0 %309
        %313 = vset.pattern.permute.xlu0 0
        %314 = vperm.xlu0 %313, %v296
        %v315 = vpop.permute.xlu0 %314
        %v317 = vlaneseq
        %v318 = vshrl.u32 %v317, 7
        %v319 = vsub.s32 3, %v318
        %v320 = vrot.slane %v171, %v319
        %v321 = vmul.f32 %v300, %v320
        %v322 = vmul.f32 %v305, %v320
        %v323 = vmul.f32 %v310, %v320
        %v324 = vmul.f32 %v315, %v320
        %v325 = vadd.f32 %v286, %v321
        %v326 = vadd.f32 %v287, %v322
        %v327 = vadd.f32 %v288, %v323
        %v328 = vadd.f32 %v289, %v324
        %v329 = vld [vmem:[%s292 + $0x1] sm:$0xff]
        %v330 = vld [vmem:[%s292 + $0x9] sm:$0xff]
        %v331 = vld [vmem:[%s292 + $0x11] sm:$0xff]
        %v332 = vld [vmem:[%s292 + $0x19] sm:$0x3]
        %334 = vset.pattern.permute.xlu0 0
        %335 = vperm.xlu0 %334, %v329
        %v336 = vpop.permute.xlu0 %335
        %339 = vset.pattern.permute.xlu0 0
        %340 = vperm.xlu0 %339, %v330
        %v341 = vpop.permute.xlu0 %340
        %344 = vset.pattern.permute.xlu0 0
        %345 = vperm.xlu0 %344, %v331
        %v346 = vpop.permute.xlu0 %345
        %349 = vset.pattern.permute.xlu0 0
        %350 = vperm.xlu0 %349, %v332
        %v351 = vpop.permute.xlu0 %350
        %v353 = vlaneseq
        %v354 = vshrl.u32 %v353, 7
        %v355 = vsub.s32 4, %v354
        %v356 = vrot.slane %v171, %v355
        %v357 = vmul.f32 %v336, %v356
        %v358 = vmul.f32 %v341, %v356
        %v359 = vmul.f32 %v346, %v356
        %v360 = vmul.f32 %v351, %v356
        %v361 = vadd.f32 %v325, %v357
        %v362 = vadd.f32 %v326, %v358
        %v363 = vadd.f32 %v327, %v359
        %v364 = vadd.f32 %v328, %v360
        %v365 = vld [vmem:[%s292 + $0x2] sm:$0xff]
        %v366 = vld [vmem:[%s292 + $0xa] sm:$0xff]
        %v367 = vld [vmem:[%s292 + $0x12] sm:$0xff]
        %v368 = vld [vmem:[%s292 + $0x1a] sm:$0x3]
        %370 = vset.pattern.permute.xlu0 0
        %371 = vperm.xlu0 %370, %v365
        %v372 = vpop.permute.xlu0 %371
        %375 = vset.pattern.permute.xlu0 0
        %376 = vperm.xlu0 %375, %v366
        %v377 = vpop.permute.xlu0 %376
        %380 = vset.pattern.permute.xlu0 0
        %381 = vperm.xlu0 %380, %v367
        %v382 = vpop.permute.xlu0 %381
        %385 = vset.pattern.permute.xlu0 0
        %386 = vperm.xlu0 %385, %v368
        %v387 = vpop.permute.xlu0 %386
        %v389 = vlaneseq
        %v390 = vshrl.u32 %v389, 7
        %v391 = vsub.s32 5, %v390
        %v392 = vrot.slane %v171, %v391
        %v393 = vmul.f32 %v372, %v392
        %v394 = vmul.f32 %v377, %v392
        %v395 = vmul.f32 %v382, %v392
        %v396 = vmul.f32 %v387, %v392
        %v397 = vadd.f32 %v361, %v393
        %v398 = vadd.f32 %v362, %v394
        %v399 = vadd.f32 %v363, %v395
        %v400 = vadd.f32 %v364, %v396
        %s401 = sadd.s32 %s175, 2
        %s402 = smul.u32 %s401, 32
        %s403 = scalar_lea.vmem %s165, %s402
        %v404 = vld [vmem:[%s403] sm:$0xff]
        %v405 = vld [vmem:[%s403 + $0x8] sm:$0xff]
        %v406 = vld [vmem:[%s403 + $0x10] sm:$0xff]
        %v407 = vld [vmem:[%s403 + $0x18] sm:$0x3]
        %409 = vset.pattern.permute.xlu0 0
        %410 = vperm.xlu0 %409, %v404
        %v411 = vpop.permute.xlu0 %410
        %414 = vset.pattern.permute.xlu0 0
        %415 = vperm.xlu0 %414, %v405
        %v416 = vpop.permute.xlu0 %415
        %419 = vset.pattern.permute.xlu0 0
        %420 = vperm.xlu0 %419, %v406
        %v421 = vpop.permute.xlu0 %420
        %424 = vset.pattern.permute.xlu0 0
        %425 = vperm.xlu0 %424, %v407
        %v426 = vpop.permute.xlu0 %425
        %v428 = vlaneseq
        %v429 = vshrl.u32 %v428, 7
        %v430 = vsub.s32 6, %v429
        %v431 = vrot.slane %v171, %v430
        %v432 = vmul.f32 %v411, %v431
        %v433 = vmul.f32 %v416, %v431
        %v434 = vmul.f32 %v421, %v431
        %v435 = vmul.f32 %v426, %v431
        %v436 = vadd.f32 %v397, %v432
        %v437 = vadd.f32 %v398, %v433
        %v438 = vadd.f32 %v399, %v434
        %v439 = vadd.f32 %v400, %v435
        %v440 = vld [vmem:[%s403 + $0x1] sm:$0xff]
        %v441 = vld [vmem:[%s403 + $0x9] sm:$0xff]
        %v442 = vld [vmem:[%s403 + $0x11] sm:$0xff]
        %v443 = vld [vmem:[%s403 + $0x19] sm:$0x3]
        %445 = vset.pattern.permute.xlu0 0
        %446 = vperm.xlu0 %445, %v440
        %v447 = vpop.permute.xlu0 %446
        %450 = vset.pattern.permute.xlu0 0
        %451 = vperm.xlu0 %450, %v441
        %v452 = vpop.permute.xlu0 %451
        %455 = vset.pattern.permute.xlu0 0
        %456 = vperm.xlu0 %455, %v442
        %v457 = vpop.permute.xlu0 %456
        %460 = vset.pattern.permute.xlu0 0
        %461 = vperm.xlu0 %460, %v443
        %v462 = vpop.permute.xlu0 %461
        %v464 = vlaneseq
        %v465 = vshrl.u32 %v464, 7
        %v466 = vsub.s32 7, %v465
        %v467 = vrot.slane %v171, %v466
        %v468 = vmul.f32 %v447, %v467
        %v469 = vmul.f32 %v452, %v467
        %v470 = vmul.f32 %v457, %v467
        %v471 = vmul.f32 %v462, %v467
        %v472 = vadd.f32 %v436, %v468
        %v473 = vadd.f32 %v437, %v469
        %v474 = vadd.f32 %v438, %v470
        %v475 = vadd.f32 %v439, %v471
        %v476 = vld [vmem:[%s403 + $0x2] sm:$0xff]
        %v477 = vld [vmem:[%s403 + $0xa] sm:$0xff]
        %v478 = vld [vmem:[%s403 + $0x12] sm:$0xff]
        %v479 = vld [vmem:[%s403 + $0x1a] sm:$0x3]
        %481 = vset.pattern.permute.xlu0 0
        %482 = vperm.xlu0 %481, %v476
        %v483 = vpop.permute.xlu0 %482
        %486 = vset.pattern.permute.xlu0 0
        %487 = vperm.xlu0 %486, %v477
        %v488 = vpop.permute.xlu0 %487
        %491 = vset.pattern.permute.xlu0 0
        %492 = vperm.xlu0 %491, %v478
        %v493 = vpop.permute.xlu0 %492
        %496 = vset.pattern.permute.xlu0 0
        %497 = vperm.xlu0 %496, %v479
        %v498 = vpop.permute.xlu0 %497
        %v500 = vlaneseq
        %v501 = vshrl.u32 %v500, 7
        %v502 = vsub.s32 0, %v501
        %v503 = vrot.slane %v172, %v502
        %v504 = vmul.f32 %v483, %v503
        %v505 = vmul.f32 %v488, %v503
        %v506 = vmul.f32 %v493, %v503
        %v507 = vmul.f32 %v498, %v503
        %v508 = vadd.f32 %v472, %v504
        %v509 = vadd.f32 %v473, %v505
        %v510 = vadd.f32 %v474, %v506
        %v511 = vadd.f32 %v475, %v507
        %v513 = vlaneseq
        %v514 = vshrl.u32 %v513, 7
        %v515 = vsub.s32 0, %v514
        %v516 = vrot.slane %v173, %v515
        %v518 = vadd.f32 %v508, %v516
        %v519 = vadd.f32 %v509, %v516
        %v520 = vadd.f32 %v510, %v516
        %v521 = vadd.f32 %v511, %v516
        %v522 = vmax.f32 %v518, 0.0
        %v523 = vmax.f32 %v519, 0.0
        %v524 = vmax.f32 %v520, 0.0
        %v525 = vmax.f32 %v521, 0.0
        %v526 = vpack.c.bf16 %v523, %v522
        %v527 = vpack.c.bf16 %v525, %v524
        %v530 = vunpack.c.l.b16 %v526
        %v531 = vunpack.c.h.b16 %v526
        %v532 = vunpack.c.l.b16 %v527
        %v533 = vunpack.c.h.b16 %v527
        %v534 = vpack.c.b16 %v530, %v530
        %v535 = vpack.c.b16 %v531, %v531
        %v536 = vpack.c.b16 %v532, %v532
        %v537 = vpack.c.b16 %v533, %v533
        %s542 = smul.u32 %s175, 4
        %s543 = smul.addr %s542, 4
        %s544 = scalar_lea.vmem %s170, %s543
        %vm545 = vcmask 60416
        %546 = vst.msk [vmem:[%s544] sm:$0xf] %vm545, %v534
        %547 = vst.msk [vmem:[%s544 + $0x4] sm:$0xf] %vm545, %v535
        %548 = vst.msk [vmem:[%s544 + $0x8] sm:$0xf] %vm545, %v536
        %vm549 = vcmask 57344
        %550 = vst.msk [vmem:[%s544 + $0xc] sm:$0x1] %vm549, %v537
      $region37: #{forward.3} parent=31 // loop_footer
        %s179 = sadd.s32 1, %s175
      $region38: #{forward.3} parent=31 // loop_footer_branch
        %174 = sbr.rel target = $region34
      $region39: #{forward.3} parent=31 // loop_exit
        _
      %p551 = scmp.lt.s32.totalorder %s14, 1
      %s552 = scalar_select %p551, %s14, 1
      %s553 = smul.addr %s552, 104
      %s554 = smul.addr %s553, 4
      %s555 = scalar_lea.vmem %s3, %s554
      // Predicated region
      $region40: #{forward.3} parent=31 // pred_check
        %p556 = pneg %p100
      $region41: #{forward.3} parent=31 // pred_check_branch
        %558 = sbr.rel (%p556) target = $region43
      $region42: #{forward.3} parent=31 // pred_region
        _
      $region43: #{forward.3} parent=31 // pred_fallthru
        _
    $region32: #{forward.3} parent=5 // pred_fallthru
      _
    %p559 = scmp.le.s32.totalorder 2, %s9
    // Predicated region
    $region44: #{forward.3} parent=5 // pred_check
      %p560 = pneg %p559
    $region45: #{forward.3} parent=5 // pred_check_branch
      %562 = sbr.rel (%p560) target = $region47
    $region46: #{forward.3} parent=5 // pred_region
      %s563 = ssub.s32 %s9, 2
      // Predicated region
      $region48: #{forward.3} parent=46 // pred_check
        %p564 = pneg %p106
      $region49: #{forward.3} parent=46 // pred_check_branch
        %566 = sbr.rel (%p564) target = $region51
      $region50: #{forward.3} parent=46 // pred_region
        %p567 = scmp.lt.s32.totalorder %s15, 1
        %s568 = scalar_select %p567, %s15, 1
        %s569 = smul.addr %s568, 104
        %s570 = smul.addr %s569, 4
        %s571 = scalar_lea.vmem %s3, %s570
      $region51: #{forward.3} parent=46 // pred_fallthru
        _
    $region47: #{forward.3} parent=5 // pred_fallthru
      _
  $region6: #{forward.3} parent=0 // loop_footer
    %s13 = sadd.s32 1, %s9
  $region7: #{forward.3} parent=0 // loop_footer_branch
    %8 = sbr.rel target = $region3
  $region8: #{forward.3} parent=0 // loop_exit
    _

// kernel: forward.4
$region0: #{forward.4}
  #allocation0 [shape = 'u32[]', space=smem, size = 0x4, offset = 0x4, fixed_abs, tag = 'smem constant byte address 0x4 - core index']
  #allocation1 [shape = 'u32[144,128]{1,0:T(1,128)}', space=vmem, size = 0x12000, scoped, tag = 'internal scratch']
  %s0 = inlined_call_operand.vmem [shape: bf16[2,26,26,8], index: 0, kind: input, shape index: {}]
  %s1 = inlined_call_operand.vmem [shape: bf16[9,8,16], index: 1, kind: input, shape index: {}]
  %s2 = inlined_call_operand.vmem [shape: f32[1,16], index: 2, kind: input, shape index: {}]
  %s3 = inlined_call_operand.vmem [shape: bf16[2,12,12,16], index: 3, kind: output, shape index: {}]
  %s4 = sld [smem:[#allocation0]]
  $region52: #{forward.4} parent=0
    _
  %s6 = ssub.s32 1, %s4
  %s7 = scalar_select 0, %s6, %s4
  loop: start=0, step=1, limit=4
  $region2: #{forward.4} parent=0 // loop_pre_header
    _
  $region3: #{forward.4} parent=0 // loop_header
    %s9 = sphi 0, %s13
    %p10 = scmp.ge.s32.totalorder %s9, 4
    %s19 = sphi 0, %s21
    %s22 = sphi 0, %s19
    %s23 = sphi 0, %s22
    %s39 = sphi 0, %s23
    %s43 = sphi 0, %s43
    %s45 = sphi 0, %s43
    %s46 = sphi 0, %s45
    %s60 = sphi 0, %s46
    %s64 = sphi 0, %s64
    %s66 = sphi 0, %s64
    %s67 = sphi 0, %s66
    %s81 = sphi 0, %s67
    %s87 = sphi 0, %s89
    %s90 = sphi 0, %s87
    %s91 = sphi 0, %s90
    %s107 = sphi 0, %s91
  $region4: #{forward.4} parent=0 // loop_header_branch
    %12 = sbr.rel (%p10) target = $region8
  $region5: #{forward.4} parent=0 // loop_body
    %s14 = ssub.s32 %s9, 1
    %s15 = ssub.s32 %s9, 2
    %s16 = sadd.s32 %s9, 1
    %s17 = ssub.s32 %s9, %s16
    %p18 = scmp.eq.s32.totalorder %s17, 0
    %s20 = sadd.s32 %s19, 1
    %s21 = scalar_select %p18, %s19, %s20
    %p24 = pneg %p18
    %p25 = scmp.eq.s32.totalorder %s9, 1
    %p26 = por %p24, %p25
    %p27 = scmp.ne.s32.totalorder %s19, %s22
    %p28 = scmp.eq.s32.totalorder %s9, 0
    %p29 = por %p27, %p28
    %p30 = scmp.ne.s32.totalorder %s19, %s22
    %p31 = scmp.eq.s32.totalorder %s14, 1
    %p32 = por %p30, %p31
    %p33 = scmp.ne.s32.totalorder %s22, %s23
    %p34 = scmp.eq.s32.totalorder %s14, 0
    %p35 = por %p33, %p34
    %p36 = scmp.ne.s32.totalorder %s22, %s23
    %p37 = scmp.eq.s32.totalorder %s15, 1
    %p38 = por %p36, %p37
    %p40 = scmp.ne.s32.totalorder %s23, %s39
    %p41 = scmp.eq.s32.totalorder %s15, 0
    %p42 = por %p40, %p41
    %s44 = sadd.s32 %s43, 1
    %p47 = scmp.eq.s32.totalorder %s9, 1
    %p48 = scmp.ne.s32.totalorder %s43, %s45
    %p49 = scmp.eq.s32.totalorder %s9, 0
    %p50 = por %p48, %p49
    %p51 = scmp.ne.s32.totalorder %s43, %s45
    %p52 = scmp.eq.s32.totalorder %s14, 1
    %p53 = por %p51, %p52
    %p54 = scmp.ne.s32.totalorder %s45, %s46
    %p55 = scmp.eq.s32.totalorder %s14, 0
    %p56 = por %p54, %p55
    %p57 = scmp.ne.s32.totalorder %s45, %s46
    %p58 = scmp.eq.s32.totalorder %s15, 1
    %p59 = por %p57, %p58
    %p61 = scmp.ne.s32.totalorder %s46, %s60
    %p62 = scmp.eq.s32.totalorder %s15, 0
    %p63 = por %p61, %p62
    %s65 = sadd.s32 %s64, 1
    %p68 = scmp.eq.s32.totalorder %s9, 1
    %p69 = scmp.ne.s32.totalorder %s64, %s66
    %p70 = scmp.eq.s32.totalorder %s9, 0
    %p71 = por %p69, %p70
    %p72 = scmp.ne.s32.totalorder %s64, %s66
    %p73 = scmp.eq.s32.totalorder %s14, 1
    %p74 = por %p72, %p73
    %p75 = scmp.ne.s32.totalorder %s66, %s67
    %p76 = scmp.eq.s32.totalorder %s14, 0
    %p77 = por %p75, %p76
    %p78 = scmp.ne.s32.totalorder %s66, %s67
    %p79 = scmp.eq.s32.totalorder %s15, 1
    %p80 = por %p78, %p79
    %p82 = scmp.ne.s32.totalorder %s67, %s81
    %p83 = scmp.eq.s32.totalorder %s15, 0
    %p84 = por %p82, %p83
    %s85 = ssub.s32 %s9, %s16
    %p86 = scmp.eq.s32.totalorder %s85, 0
    %s88 = sadd.s32 %s87, 1
    %s89 = scalar_select %p86, %s87, %s88
    %p92 = pneg %p86
    %p93 = scmp.eq.s32.totalorder %s9, 1
    %p94 = por %p92, %p93
    %p95 = scmp.ne.s32.totalorder %s87, %s90
    %p96 = scmp.eq.s32.totalorder %s9, 0
    %p97 = por %p95, %p96
    %p98 = scmp.ne.s32.totalorder %s87, %s90
    %p99 = scmp.eq.s32.totalorder %s14, 1
    %p100 = por %p98, %p99
    %p101 = scmp.ne.s32.totalorder %s90, %s91
    %p102 = scmp.eq.s32.totalorder %s14, 0
    %p103 = por %p101, %p102
    %p104 = scmp.ne.s32.totalorder %s90, %s91
    %p105 = scmp.eq.s32.totalorder %s15, 1
    %p106 = por %p104, %p105
    %p108 = scmp.ne.s32.totalorder %s91, %s107
    %p109 = scmp.eq.s32.totalorder %s15, 0
    %p110 = por %p108, %p109
    %p111 = scmp.le.s32.totalorder 1, %s9
    %p112 = scmp.lt.s32.totalorder %s9, 3
    %p113 = pnand %p111, %p112
    %p114 = pneg %p113
    // Predicated region
    $region9: #{forward.4} parent=5 // pred_check
      _
    $region10: #{forward.4} parent=5 // pred_check_branch
      %116 = sbr.rel (%p113) target = $region12
    $region11: #{forward.4} parent=5 // pred_region
      %s117 = ssub.s32 %s9, 1
      // Predicated region
      $region13: #{forward.4} parent=11 // pred_check
        %p118 = pneg %p56
      $region14: #{forward.4} parent=11 // pred_check_branch
        %120 = sbr.rel (%p118) target = $region16
      $region15: #{forward.4} parent=11 // pred_region
        _
      $region16: #{forward.4} parent=11 // pred_fallthru
        _
      // Predicated region
      $region17: #{forward.4} parent=11 // pred_check
        %p121 = pneg %p77
      $region18: #{forward.4} parent=11 // pred_check_branch
        %123 = sbr.rel (%p121) target = $region20
      $region19: #{forward.4} parent=11 // pred_region
        _
      $region20: #{forward.4} parent=11 // pred_fallthru
        _
    $region12: #{forward.4} parent=5 // pred_fallthru
      _
    %p124 = scmp.lt.s32.totalorder %s9, 2
    // Predicated region
    $region21: #{forward.4} parent=5 // pred_check
      %p125 = pneg %p124
    $region22: #{forward.4} parent=5 // pred_check_branch
      %127 = sbr.rel (%p125) target = $region24
    $region23: #{forward.4} parent=5 // pred_region
      // Predicated region
      $region25: #{forward.4} parent=23 // pred_check
        %p128 = pneg %p29
      $region26: #{forward.4} parent=23 // pred_check_branch
        %130 = sbr.rel (%p128) target = $region28
      $region27: #{forward.4} parent=23 // pred_region
        %p131 = scmp.lt.s32.totalorder %s9, 1
        %s132 = scalar_select %p131, %s9, 1
        %s133 = smul.addr %s132, 104
        %s134 = smul.addr %s133, 4
        %s135 = scalar_lea.vmem %s0, %s134
      $region28: #{forward.4} parent=23 // pred_fallthru
        _
    $region24: #{forward.4} parent=5 // pred_fallthru
      _
    %p136 = scmp.le.s32.totalorder 1, %s9
    %p137 = scmp.lt.s32.totalorder %s9, 3
    %p138 = pnand %p136, %p137
    %p139 = pneg %p138
    // Predicated region
    $region29: #{forward.4} parent=5 // pred_check
      _
    $region30: #{forward.4} parent=5 // pred_check_branch
      %141 = sbr.rel (%p138) target = $region32
    $region31: #{forward.4} parent=5 // pred_region
      %s142 = ssub.s32 %s9, 1
      %p143 = scmp.lt.s32.totalorder %s14, 1
      %s144 = scalar_select %p143, %s14, 1
      %s145 = smul.addr %s144, 104
      %s146 = smul.addr %s145, 4
      %s147 = scalar_lea.vmem %s0, %s146
      %p148 = pneg %p35
      %p149 = pneg %p32
      %p150 = pneg %p56
      %p151 = pneg %p53
      %p152 = pneg %p77
      %p153 = pneg %p74
      %p154 = pneg %p103
      %p155 = pneg %p100
      %p156 = scmp.lt.s32.totalorder %s14, 1
      %s157 = scalar_select %p156, %s14, 1
      %s158 = smul.addr %s157, 24
      %s159 = smul.addr %s158, 4
      %s160 = scalar_lea.vmem %s3, %s159
      %p161 = scmp.lt.s32.totalorder %s14, 1
      %s162 = scalar_select %p161, %s14, 1
      %s163 = smul.addr %s162, 104
      %s164 = smul.addr %s163, 4
      %s165 = scalar_lea.vmem %s0, %s164
      %p166 = scmp.lt.s32.totalorder %s14, 1
      %s167 = scalar_select %p166, %s14, 1
      %s168 = smul.addr %s167, 24
      %s169 = smul.addr %s168, 4
      %s170 = scalar_lea.vmem %s3, %s169
      %v172 = vld [vmem:[%s1] sm:$0xf]
      %v173 = vld [vmem:[%s1 + $0x4] sm:$0xf]
      %v174 = vld [vmem:[%s1 + $0x8] sm:$0xf]
      %v175 = vld [vmem:[%s1 + $0xc] sm:$0xf]
      %v176 = vld [vmem:[%s1 + $0x10] sm:$0xf]
      %v177 = vld [vmem:[%s1 + $0x14] sm:$0xf]
      %v178 = vld [vmem:[%s1 + $0x18] sm:$0xf]
      %v179 = vld [vmem:[%s1 + $0x1c] sm:$0xf]
      %v180 = vld [vmem:[%s1 + $0x20] sm:$0xf]
      %v181 = vld [vmem:[%s2] sm:$0x1]
      %v182 = vlaneseq
      %v183 = vshrl.u32 %v182, 7
      %v184 = vadd.s32 %v183, 8
      %v185 = vlaneseq
      %v186 = vand.u32 %v185, 127
      %v187 = vmul.u32 %v183, 2
      %v188 = vmul.u32 %v184, 2
      %vm189 = vcmp.eq.s32.totalorder %v186, %v187
      %vm190 = vcmp.eq.s32.totalorder %v186, %v188
      %v191 = vsel %vm189, 1, 0
      %v192 = vsel %vm190, 1, 0
      %v193 = vcvt.s32.f32 %v191
      %v194 = vcvt.s32.f32 %v192
      %v195 = vadd.s32 %v187, 1
      %v196 = vadd.s32 %v188, 1
      %vm197 = vcmp.eq.s32.totalorder %v186, %v195
      %vm198 = vcmp.eq.s32.totalorder %v186, %v196
      %v199 = vsel %vm197, 1, 0
      %v200 = vsel %vm198, 1, 0
      %v201 = vcvt.s32.f32 %v199
      %v202 = vcvt.s32.f32 %v200
      loop: start=0, step=1, limit=12
      $region33: #{forward.4} parent=31 // loop_pre_header
        _
      $region34: #{forward.4} parent=31 // loop_header
        %s204 = sphi 0, %s208
        %p205 = scmp.ge.s32.totalorder %s204, 12
      $region35: #{forward.4} parent=31 // loop_header_branch
        %207 = sbr.rel (%p205) target = $region39
      $region36: #{forward.4} parent=31 // loop_body
        %s209 = smul.u32 %s204, 2
        %s210 = smul.u32 %s209, 4
        %s211 = smul.addr %s210, 4
        %s212 = scalar_lea.vmem %s165, %s211
        %v213 = vld [vmem:[%s212] sm:$0xf]
        %v214 = vld [vmem:[%s212 + $0x4] sm:$0xf]
        %v215 = vld [vmem:[%s212 + $0x8] sm:$0xf]
        %v216 = vld [vmem:[%s212 + $0xc] sm:$0x1]
        %v221 = vunpack.c.l.b16 %v213
        %v222 = vunpack.c.l.b16 %v214
        %v223 = vunpack.c.l.b16 %v215
        %v224 = vunpack.c.l.b16 %v216
        %v225 = vpack.c.b16 %v222, %v221
        %v226 = vpack.c.b16 %v224, %v223
        %vm227 = vsmask.f32 7424
        %v229 = vshrl.u32 %v225, 16
        %v231 = vshll.u32 %v225, 16
        %v233 = vrot.slane %v231, 1
        %v234 = vor.u32 %v229, %v233
        %v236 = vshll.u32 %v226, 16
        %v238 = vrot.slane %v236, 1
        %v239 = vsel %vm227, %v234, %v238
        %v240 = vshrl.u32 %v226, 16
        %v242 = vor.u32 %v240, %v238
        %vm243 = vcmask 64512
        %v245 = vsel %vm243, %v239, 0
        %v248 = vsel %vm243, %v242, 0
        %vm250 = vcmask 1043456
        %v252 = vsel %vm250, %v173, 0
        %254 = vmatprep.subr.bf16.mxu0 0
        %255 = vmatpush1.bf16.msra.mxu0 %v252
        %256 = vmatprep.subr.bf16.mxu0 0
        %257 = vmatpush1.bf16.msra.mxu0 0
        %258 = vmatprep.subr.bf16.mxu0 0
        %259 = vmatpush1.bf16.msra.mxu0 0
        %260 = vmatprep.subr.bf16.mxu0 0
        %261 = vmatpush1.bf16.msra.mxu0 0
        %262 = vmatprep.subr.bf16.mxu0 0
        %263 = vmatpush1.bf16.msra.mxu0 0
        %264 = vmatprep.subr.bf16.mxu0 0
        %265 = vmatpush1.bf16.msra.mxu0 0
        %266 = vmatprep.subr.bf16.mxu0 0
        %267 = vmatpush1.bf16.msra.mxu0 0
        %268 = vmatprep.subr.bf16.mxu0 0
        %269 = vmatpush1.bf16.msra.mxu0 0
        %270 = vmatprep.subr.bf16.mxu0 0
        %271 = vmatpush1.bf16.msra.mxu0 0
        %272 = vmatprep.subr.bf16.mxu0 0
        %273 = vmatpush1.bf16.msra.mxu0 0
        %274 = vmatprep.subr.bf16.mxu0 0
        %275 = vmatpush1.bf16.msra.mxu0 0
        %276 = vmatprep.subr.bf16.mxu0 0
        %277 = vmatpush1.bf16.msra.mxu0 0
        %278 = vmatprep.subr.bf16.mxu0 0
        %279 = vmatpush1.bf16.msra.mxu0 0
        %280 = vmatprep.subr.bf16.mxu0 0
        %281 = vmatpush1.bf16.msra.mxu0 0
        %282 = vmatprep.subr.bf16.mxu0 0
        %283 = vmatpush1.bf16.msra.mxu0 0
        %284 = vmatprep.subr.bf16.mxu0 0
        %285 = vmatpush1.bf16.msra.mxu0 0
        %286 = vmatprep.mubr.bf16.mxu0 0
        %287 = vmatmul.mubr.bf16.gmra.mrb[0].mxu0 %v245
        %v288 = vpop.f32.mrb[0].mxu0
        %v289 = vadd.f32 0.0, %v288
        %v290 = vpop.f32.mrb[0].mxu0
        %v291 = vpop.f32.mrb[0].mxu0
        %v292 = vadd.f32 0.0, %v291
        %v293 = vpop.f32.mrb[0].mxu0
        %294 = vmatprep.mubr.bf16.mxu0 0
        %295 = vmatmul.mubr.bf16.gmra.mrb[0].mxu0 %v248
        %v296 = vpop.f32.mrb[0].mxu0
        %v297 = vadd.f32 0.0, %v296
        %v298 = vpop.f32.mrb[0].mxu0
        %v299 = vpop.f32.mrb[0].mxu0
        %v300 = vpop.f32.mrb[0].mxu0
        %301 = vdwg.mxu0
        %v302 = vpack.c.b16 %v223, %v223
        %v303 = vsel %vm243, %v225, 0
        %v306 = vsel %vm243, %v302, 0
        %v309 = vsel %vm250, %v172, 0
        %311 = vmatprep.subr.bf16.mxu0 0
        %312 = vmatpush1.bf16.msra.mxu0 %v309
        %313 = vmatprep.subr.bf16.mxu0 0
        %314 = vmatpush1.bf16.msra.mxu0 0
        %315 = vmatprep.subr.bf16.mxu0 0
        %316 = vmatpush1.bf16.msra.mxu0 0
        %317 = vmatprep.subr.bf16.mxu0 0
        %318 = vmatpush1.bf16.msra.mxu0 0
        %319 = vmatprep.subr.bf16.mxu0 0
        %320 = vmatpush1.bf16.msra.mxu0 0
        %321 = vmatprep.subr.bf16.mxu0 0
        %322 = vmatpush1.bf16.msra.mxu0 0
        %323 = vmatprep.subr.bf16.mxu0 0
        %324 = vmatpush1.bf16.msra.mxu0 0
        %325 = vmatprep.subr.bf16.mxu0 0
        %326 = vmatpush1.bf16.msra.mxu0 0
        %327 = vmatprep.subr.bf16.mxu0 0
        %328 = vmatpush1.bf16.msra.mxu0 0
        %329 = vmatprep.subr.bf16.mxu0 0
        %330 = vmatpush1.bf16.msra.mxu0 0
        %331 = vmatprep.subr.bf16.mxu0 0
        %332 = vmatpush1.bf16.msra.mxu0 0
        %333 = vmatprep.subr.bf16.mxu0 0
        %334 = vmatpush1.bf16.msra.mxu0 0
        %335 = vmatprep.subr.bf16.mxu0 0
        %336 = vmatpush1.bf16.msra.mxu0 0
        %337 = vmatprep.subr.bf16.mxu0 0
        %338 = vmatpush1.bf16.msra.mxu0 0
        %339 = vmatprep.subr.bf16.mxu0 0
        %340 = vmatpush1.bf16.msra.mxu0 0
        %341 = vmatprep.subr.bf16.mxu0 0
        %342 = vmatpush1.bf16.msra.mxu0 0
        %343 = vmatprep.mubr.bf16.mxu0 0
        %344 = vmatmul.mubr.bf16.gmra.mrb[0].mxu0 %v303
        %v345 = vpop.f32.mrb[0].mxu0
        %v346 = vadd.f32 %v289, %v345
        %v347 = vpop.f32.mrb[0].mxu0
        %v348 = vpop.f32.mrb[0].mxu0
        %v349 = vadd.f32 %v292, %v348
        %v350 = vpop.f32.mrb[0].mxu0
        %351 = vmatprep.mubr.bf16.mxu0 0
        %352 = vmatmul.mubr.bf16.gmra.mrb[0].mxu0 %v306
        %v353 = vpop.f32.mrb[0].mxu0
        %v354 = vadd.f32 %v297, %v353
        %v355 = vpop.f32.mrb[0].mxu0
        %v356 = vpop.f32.mrb[0].mxu0
        %v357 = vpop.f32.mrb[0].mxu0
        %358 = vdwg.mxu0
        %v359 = vld [vmem:[%s212] sm:$0xe]
        %v361 = vunpack.c.l.b16 %v359
        %v362 = vpack.c.b16 %v222, %v361
        %vm363 = vcmask 1046528
        %v364 = vrot.slane %v362, 1
        %v365 = vrot.slane %v226, 1
        %v366 = vsel %vm363, %v364, %v365
        %v368 = vsel %vm243, %v366, 0
        %v371 = vsel %vm243, %v365, 0
        %v374 = vsel %vm250, %v174, 0
        %376 = vmatprep.subr.bf16.mxu0 0
        %377 = vmatpush1.bf16.msra.mxu0 %v374
        %378 = vmatprep.subr.bf16.mxu0 0
        %379 = vmatpush1.bf16.msra.mxu0 0
        %380 = vmatprep.subr.bf16.mxu0 0
        %381 = vmatpush1.bf16.msra.mxu0 0
        %382 = vmatprep.subr.bf16.mxu0 0
        %383 = vmatpush1.bf16.msra.mxu0 0
        %384 = vmatprep.subr.bf16.mxu0 0
        %385 = vmatpush1.bf16.msra.mxu0 0
        %386 = vmatprep.subr.bf16.mxu0 0
        %387 = vmatpush1.bf16.msra.mxu0 0
        %388 = vmatprep.subr.bf16.mxu0 0
        %389 = vmatpush1.bf16.msra.mxu0 0
        %390 = vmatprep.subr.bf16.mxu0 0
        %391 = vmatpush1.bf16.msra.mxu0 0
        %392 = vmatprep.subr.bf16.mxu0 0
        %393 = vmatpush1.bf16.msra.mxu0 0
        %394 = vmatprep.subr.bf16.mxu0 0
        %395 = vmatpush1.bf16.msra.mxu0 0
        %396 = vmatprep.subr.bf16.mxu0 0
        %397 = vmatpush1.bf16.msra.mxu0 0
        %398 = vmatprep.subr.bf16.mxu0 0
        %399 = vmatpush1.bf16.msra.mxu0 0
        %400 = vmatprep.subr.bf16.mxu0 0
        %401 = vmatpush1.bf16.msra.mxu0 0
        %402 = vmatprep.subr.bf16.mxu0 0
        %403 = vmatpush1.bf16.msra.mxu0 0
        %404 = vmatprep.subr.bf16.mxu0 0
        %405 = vmatpush1.bf16.msra.mxu0 0
        %406 = vmatprep.subr.bf16.mxu0 0
        %407 = vmatpush1.bf16.msra.mxu0 0
        %408 = vmatprep.mubr.bf16.mxu0 0
        %409 = vmatmul.mubr.bf16.gmra.mrb[0].mxu0 %v368
        %v410 = vpop.f32.mrb[0].mxu0
        %v411 = vadd.f32 0.0, %v410
        %v412 = vpop.f32.mrb[0].mxu0
        %v413 = vpop.f32.mrb[0].mxu0
        %v414 = vadd.f32 0.0, %v413
        %v415 = vpop.f32.mrb[0].mxu0
        %416 = vmatprep.mubr.bf16.mxu0 0
        %417 = vmatmul.mubr.bf16.gmra.mrb[0].mxu0 %v371
        %v418 = vpop.f32.mrb[0].mxu0
        %v419 = vadd.f32 0.0, %v418
        %v420 = vpop.f32.mrb[0].mxu0
        %v421 = vpop.f32.mrb[0].mxu0
        %v422 = vpop.f32.mrb[0].mxu0
        %423 = vdwg.mxu0
        %v424 = vadd.f32 %v346, %v411
        %v425 = vadd.f32 %v349, %v414
        %v426 = vadd.f32 %v354, %v419
        %s427 = sadd.s32 %s209, 1
        %s428 = smul.u32 %s427, 4
        %s429 = smul.addr %s428, 4
        %s430 = scalar_lea.vmem %s165, %s429
        %v431 = vld [vmem:[%s430] sm:$0xf]
        %v432 = vld [vmem:[%s430 + $0x4] sm:$0xf]
        %v433 = vld [vmem:[%s430 + $0x8] sm:$0xf]
        %v437 = vunpack.c.l.b16 %v431
        %v438 = vunpack.c.l.b16 %v432
        %v439 = vunpack.c.l.b16 %v433
        %v440 = vpack.c.b16 %v438, %v437
        %v441 = vpack.c.b16 %v439, %v439
        %v443 = vsel %vm243, %v440, 0
        %v446 = vsel %vm243, %v441, 0
        %v449 = vsel %vm250, %v175, 0
        %451 = vmatprep.subr.bf16.mxu0 0
        %452 = vmatpush1.bf16.msra.mxu0 %v449
        %453 = vmatprep.subr.bf16.mxu0 0
        %454 = vmatpush1.bf16.msra.mxu0 0
        %455 = vmatprep.subr.bf16.mxu0 0
        %456 = vmatpush1.bf16.msra.mxu0 0
        %457 = vmatprep.subr.bf16.mxu0 0
        %458 = vmatpush1.bf16.msra.mxu0 0
        %459 = vmatprep.subr.bf16.mxu0 0
        %460 = vmatpush1.bf16.msra.mxu0 0
        %461 = vmatprep.subr.bf16.mxu0 0
        %462 = vmatpush1.bf16.msra.mxu0 0
        %463 = vmatprep.subr.bf16.mxu0 0
        %464 = vmatpush1.bf16.msra.mxu0 0
        %465 = vmatprep.subr.bf16.mxu0 0
        %466 = vmatpush1.bf16.msra.mxu0 0
        %467 = vmatprep.subr.bf16.mxu0 0
        %468 = vmatpush1.bf16.msra.mxu0 0
        %469 = vmatprep.subr.bf16.mxu0 0
        %470 = vmatpush1.bf16.msra.mxu0 0
        %471 = vmatprep.subr.bf16.mxu0 0
        %472 = vmatpush1.bf16.msra.mxu0 0
        %473 = vmatprep.subr.bf16.mxu0 0
        %474 = vmatpush1.bf16.msra.mxu0 0
        %475 = vmatprep.subr.bf16.mxu0 0
        %476 = vmatpush1.bf16.msra.mxu0 0
        %477 = vmatprep.subr.bf16.mxu0 0
        %478 = vmatpush1.bf16.msra.mxu0 0
        %479 = vmatprep.subr.bf16.mxu0 0
        %480 = vmatpush1.bf16.msra.mxu0 0
        %481 = vmatprep.subr.bf16.mxu0 0
        %482 = vmatpush1.bf16.msra.mxu0 0
        %483 = vmatprep.mubr.bf16.mxu0 0
        %484 = vmatmul.mubr.bf16.gmra.mrb[0].mxu0 %v443
        %v485 = vpop.f32.mrb[0].mxu0
        %v486 = vadd.f32 0.0, %v485
        %v487 = vpop.f32.mrb[0].mxu0
        %v488 = vpop.f32.mrb[0].mxu0
        %v489 = vadd.f32 0.0, %v488
        %v490 = vpop.f32.mrb[0].mxu0
        %491 = vmatprep.mubr.bf16.mxu0 0
        %492 = vmatmul.mubr.bf16.gmra.mrb[0].mxu0 %v446
        %v493 = vpop.f32.mrb[0].mxu0
        %v494 = vadd.f32 0.0, %v493
        %v495 = vpop.f32.mrb[0].mxu0
        %v496 = vpop.f32.mrb[0].mxu0
        %v497 = vpop.f32.mrb[0].mxu0
        %498 = vdwg.mxu0
        %v499 = vadd.f32 %v424, %v486
        %v500 = vadd.f32 %v425, %v489
        %v501 = vadd.f32 %v426, %v494
        %v502 = vld [vmem:[%s430] sm:$0xf]
        %v503 = vld [vmem:[%s430 + $0x4] sm:$0xf]
        %v504 = vld [vmem:[%s430 + $0x8] sm:$0xf]
        %v505 = vld [vmem:[%s430 + $0xc] sm:$0x1]
        %v510 = vunpack.c.l.b16 %v502
        %v511 = vunpack.c.l.b16 %v503
        %v512 = vunpack.c.l.b16 %v504
        %v513 = vunpack.c.l.b16 %v505
        %v514 = vpack.c.b16 %v511, %v510
        %v515 = vpack.c.b16 %v513, %v512
        %v517 = vshrl.u32 %v514, 16
        %v519 = vshll.u32 %v514, 16
        %v521 = vrot.slane %v519, 1
        %v522 = vor.u32 %v517, %v521
        %v524 = vshll.u32 %v515, 16
        %v526 = vrot.slane %v524, 1
        %v527 = vsel %vm227, %v522, %v526
        %v528 = vshrl.u32 %v515, 16
        %v530 = vor.u32 %v528, %v526
        %v532 = vsel %vm243, %v527, 0
        %v535 = vsel %vm243, %v530, 0
        %v538 = vsel %vm250, %v176, 0
        %540 = vmatprep.subr.bf16.mxu0 0
        %541 = vmatpush1.bf16.msra.mxu0 %v538
        %542 = vmatprep.subr.bf16.mxu0 0
        %543 = vmatpush1.bf16.msra.mxu0 0
        %544 = vmatprep.subr.bf16.mxu0 0
        %545 = vmatpush1.bf16.msra.mxu0 0
        %546 = vmatprep.subr.bf16.mxu0 0
        %547 = vmatpush1.bf16.msra.mxu0 0
        %548 = vmatprep.subr.bf16.mxu0 0
        %549 = vmatpush1.bf16.msra.mxu0 0
        %550 = vmatprep.subr.bf16.mxu0 0
        %551 = vmatpush1.bf16.msra.mxu0 0
        %552 = vmatprep.subr.bf16.mxu0 0
        %553 = vmatpush1.bf16.msra.mxu0 0
        %554 = vmatprep.subr.bf16.mxu0 0
        %555 = vmatpush1.bf16.msra.mxu0 0
        %556 = vmatprep.subr.bf16.mxu0 0
        %557 = vmatpush1.bf16.msra.mxu0 0
        %558 = vmatprep.subr.bf16.mxu0 0
        %559 = vmatpush1.bf16.msra.mxu0 0
        %560 = vmatprep.subr.bf16.mxu0 0
        %561 = vmatpush1.bf16.msra.mxu0 0
        %562 = vmatprep.subr.bf16.mxu0 0
        %563 = vmatpush1.bf16.msra.mxu0 0
        %564 = vmatprep.subr.bf16.mxu0 0
        %565 = vmatpush1.bf16.msra.mxu0 0
        %566 = vmatprep.subr.bf16.mxu0 0
        %567 = vmatpush1.bf16.msra.mxu0 0
        %568 = vmatprep.subr.bf16.mxu0 0
        %569 = vmatpush1.bf16.msra.mxu0 0
        %570 = vmatprep.subr.bf16.mxu0 0
        %571 = vmatpush1.bf16.msra.mxu0 0
        %572 = vmatprep.mubr.bf16.mxu0 0
        %573 = vmatmul.mubr.bf16.gmra.mrb[0].mxu0 %v532
        %v574 = vpop.f32.mrb[0].mxu0
        %v575 = vadd.f32 0.0, %v574
        %v576 = vpop.f32.mrb[0].mxu0
        %v577 = vpop.f32.mrb[0].mxu0
        %v578 = vadd.f32 0.0, %v577
        %v579 = vpop.f32.mrb[0].mxu0
        %580 = vmatprep.mubr.bf16.mxu0 0
        %581 = vmatmul.mubr.bf16.gmra.mrb[0].mxu0 %v535
        %v582 = vpop.f32.mrb[0].mxu0
        %v583 = vadd.f32 0.0, %v582
        %v584 = vpop.f32.mrb[0].mxu0
        %v585 = vpop.f32.mrb[0].mxu0
        %v586 = vpop.f32.mrb[0].mxu0
        %587 = vdwg.mxu0
        %v588 = vadd.f32 %v499, %v575
        %v589 = vadd.f32 %v500, %v578
        %v590 = vadd.f32 %v501, %v583
        %v591 = vld [vmem:[%s430] sm:$0xe]
        %v593 = vunpack.c.l.b16 %v591
        %v594 = vpack.c.b16 %v511, %v593
        %v595 = vrot.slane %v594, 1
        %v596 = vrot.slane %v515, 1
        %v597 = vsel %vm363, %v595, %v596
        %v599 = vsel %vm243, %v597, 0
        %v602 = vsel %vm243, %v596, 0
        %v605 = vsel %vm250, %v177, 0
        %607 = vmatprep.subr.bf16.mxu0 0
        %608 = vmatpush1.bf16.msra.mxu0 %v605
        %609 = vmatprep.subr.bf16.mxu0 0
        %610 = vmatpush1.bf16.msra.mxu0 0
        %611 = vmatprep.subr.bf16.mxu0 0
        %612 = vmatpush1.bf16.msra.mxu0 0
        %613 = vmatprep.subr.bf16.mxu0 0
        %614 = vmatpush1.bf16.msra.mxu0 0
        %615 = vmatprep.subr.bf16.mxu0 0
        %616 = vmatpush1.bf16.msra.mxu0 0
        %617 = vmatprep.subr.bf16.mxu0 0
        %618 = vmatpush1.bf16.msra.mxu0 0
        %619 = vmatprep.subr.bf16.mxu0 0
        %620 = vmatpush1.bf16.msra.mxu0 0
        %621 = vmatprep.subr.bf16.mxu0 0
        %622 = vmatpush1.bf16.msra.mxu0 0
        %623 = vmatprep.subr.bf16.mxu0 0
        %624 = vmatpush1.bf16.msra.mxu0 0
        %625 = vmatprep.subr.bf16.mxu0 0
        %626 = vmatpush1.bf16.msra.mxu0 0
        %627 = vmatprep.subr.bf16.mxu0 0
        %628 = vmatpush1.bf16.msra.mxu0 0
        %629 = vmatprep.subr.bf16.mxu0 0
        %630 = vmatpush1.bf16.msra.mxu0 0
        %631 = vmatprep.subr.bf16.mxu0 0
        %632 = vmatpush1.bf16.msra.mxu0 0
        %633 = vmatprep.subr.bf16.mxu0 0
        %634 = vmatpush1.bf16.msra.mxu0 0
        %635 = vmatprep.subr.bf16.mxu0 0
        %636 = vmatpush1.bf16.msra.mxu0 0
        %637 = vmatprep.subr.bf16.mxu0 0
        %638 = vmatpush1.bf16.msra.mxu0 0
        %639 = vmatprep.mubr.bf16.mxu0 0
        %640 = vmatmul.mubr.bf16.gmra.mrb[0].mxu0 %v599
        %v641 = vpop.f32.mrb[0].mxu0
        %v642 = vadd.f32 0.0, %v641
        %v643 = vpop.f32.mrb[0].mxu0
        %v644 = vpop.f32.mrb[0].mxu0
        %v645 = vadd.f32 0.0, %v644
        %v646 = vpop.f32.mrb[0].mxu0
        %647 = vmatprep.mubr.bf16.mxu0 0
        %648 = vmatmul.mubr.bf16.gmra.mrb[0].mxu0 %v602
        %v649 = vpop.f32.mrb[0].mxu0
        %v650 = vadd.f32 0.0, %v649
        %v651 = vpop.f32.mrb[0].mxu0
        %v652 = vpop.f32.mrb[0].mxu0
        %v653 = vpop.f32.mrb[0].mxu0
        %654 = vdwg.mxu0
        %v655 = vadd.f32 %v588, %v642
        %v656 = vadd.f32 %v589, %v645
        %v657 = vadd.f32 %v590, %v650
        %s658 = sadd.s32 %s209, 2
        %s659 = smul.u32 %s658, 4
        %s660 = smul.addr %s659, 4
        %s661 = scalar_lea.vmem %s165, %s660
        %v662 = vld [vmem:[%s661] sm:$0xf]
        %v663 = vld [vmem:[%s661 + $0x4] sm:$0xf]
        %v664 = vld [vmem:[%s661 + $0x8] sm:$0xf]
        %v668 = vunpack.c.l.b16 %v662
        %v669 = vunpack.c.l.b16 %v663
        %v670 = vunpack.c.l.b16 %v664
        %v671 = vpack.c.b16 %v669, %v668
        %v672 = vpack.c.b16 %v670, %v670
        %v674 = vsel %vm243, %v671, 0
        %v677 = vsel %vm243, %v672, 0
        %v680 = vsel %vm250, %v178, 0
        %682 = vmatprep.subr.bf16.mxu0 0
        %683 = vmatpush1.bf16.msra.mxu0 %v680
        %684 = vmatprep.subr.bf16.mxu0 0
        %685 = vmatpush1.bf16.msra.mxu0 0
        %686 = vmatprep.subr.bf16.mxu0 0
        %687 = vmatpush1.bf16.msra.mxu0 0
        %688 = vmatprep.subr.bf16.mxu0 0
        %689 = vmatpush1.bf16.msra.mxu0 0
        %690 = vmatprep.subr.bf16.mxu0 0
        %691 = vmatpush1.bf16.msra.mxu0 0
        %692 = vmatprep.subr.bf16.mxu0 0
        %693 = vmatpush1.bf16.msra.mxu0 0
        %694 = vmatprep.subr.bf16.mxu0 0
        %695 = vmatpush1.bf16.msra.mxu0 0
        %696 = vmatprep.subr.bf16.mxu0 0
        %697 = vmatpush1.bf16.msra.mxu0 0
        %698 = vmatprep.subr.bf16.mxu0 0
        %699 = vmatpush1.bf16.msra.mxu0 0
        %700 = vmatprep.subr.bf16.mxu0 0
        %701 = vmatpush1.bf16.msra.mxu0 0
        %702 = vmatprep.subr.bf16.mxu0 0
        %703 = vmatpush1.bf16.msra.mxu0 0
        %704 = vmatprep.subr.bf16.mxu0 0
        %705 = vmatpush1.bf16.msra.mxu0 0
        %706 = vmatprep.subr.bf16.mxu0 0
        %707 = vmatpush1.bf16.msra.mxu0 0
        %708 = vmatprep.subr.bf16.mxu0 0
        %709 = vmatpush1.bf16.msra.mxu0 0
        %710 = vmatprep.subr.bf16.mxu0 0
        %711 = vmatpush1.bf16.msra.mxu0 0
        %712 = vmatprep.subr.bf16.mxu0 0
        %713 = vmatpush1.bf16.msra.mxu0 0
        %714 = vmatprep.mubr.bf16.mxu0 0
        %715 = vmatmul.mubr.bf16.gmra.mrb[0].mxu0 %v674
        %v716 = vpop.f32.mrb[0].mxu0
        %v717 = vadd.f32 0.0, %v716
        %v718 = vpop.f32.mrb[0].mxu0
        %v719 = vpop.f32.mrb[0].mxu0
        %v720 = vadd.f32 0.0, %v719
        %v721 = vpop.f32.mrb[0].mxu0
        %722 = vmatprep.mubr.bf16.mxu0 0
        %723 = vmatmul.mubr.bf16.gmra.mrb[0].mxu0 %v677
        %v724 = vpop.f32.mrb[0].mxu0
        %v725 = vadd.f32 0.0, %v724
        %v726 = vpop.f32.mrb[0].mxu0
        %v727 = vpop.f32.mrb[0].mxu0
        %v728 = vpop.f32.mrb[0].mxu0
        %729 = vdwg.mxu0
        %v730 = vadd.f32 %v655, %v717
        %v731 = vadd.f32 %v656, %v720
        %v732 = vadd.f32 %v657, %v725
        %v733 = vld [vmem:[%s661] sm:$0xf]
        %v734 = vld [vmem:[%s661 + $0x4] sm:$0xf]
        %v735 = vld [vmem:[%s661 + $0x8] sm:$0xf]
        %v736 = vld [vmem:[%s661 + $0xc] sm:$0x1]
        %v741 = vunpack.c.l.b16 %v733
        %v742 = vunpack.c.l.b16 %v734
        %v743 = vunpack.c.l.b16 %v735
        %v744 = vunpack.c.l.b16 %v736
        %v745 = vpack.c.b16 %v742, %v741
        %v746 = vpack.c.b16 %v744, %v743
        %v748 = vshrl.u32 %v745, 16
        %v750 = vshll.u32 %v745, 16
        %v752 = vrot.slane %v750, 1
        %v753 = vor.u32 %v748, %v752
        %v755 = vshll.u32 %v746, 16
        %v757 = vrot.slane %v755, 1
        %v758 = vsel %vm227, %v753, %v757
        %v759 = vshrl.u32 %v746, 16
        %v761 = vor.u32 %v759, %v757
        %v763 = vsel %vm243, %v758, 0
        %v766 = vsel %vm243, %v761, 0
        %v769 = vsel %vm250, %v179, 0
        %771 = vmatprep.subr.bf16.mxu0 0
        %772 = vmatpush1.bf16.msra.mxu0 %v769
        %773 = vmatprep.subr.bf16.mxu0 0
        %774 = vmatpush1.bf16.msra.mxu0 0
        %775 = vmatprep.subr.bf16.mxu0 0
        %776 = vmatpush1.bf16.msra.mxu0 0
        %777 = vmatprep.subr.bf16.mxu0 0
        %778 = vmatpush1.bf16.msra.mxu0 0
        %779 = vmatprep.subr.bf16.mxu0 0
        %780 = vmatpush1.bf16.msra.mxu0 0
        %781 = vmatprep.subr.bf16.mxu0 0
        %782 = vmatpush1.bf16.msra.mxu0 0
        %783 = vmatprep.subr.bf16.mxu0 0
        %784 = vmatpush1.bf16.msra.mxu0 0
        %785 = vmatprep.subr.bf16.mxu0 0
        %786 = vmatpush1.bf16.msra.mxu0 0
        %787 = vmatprep.subr.bf16.mxu0 0
        %788 = vmatpush1.bf16.msra.mxu0 0
        %789 = vmatprep.subr.bf16.mxu0 0
        %790 = vmatpush1.bf16.msra.mxu0 0
        %791 = vmatprep.subr.bf16.mxu0 0
        %792 = vmatpush1.bf16.msra.mxu0 0
        %793 = vmatprep.subr.bf16.mxu0 0
        %794 = vmatpush1.bf16.msra.mxu0 0
        %795 = vmatprep.subr.bf16.mxu0 0
        %796 = vmatpush1.bf16.msra.mxu0 0
        %797 = vmatprep.subr.bf16.mxu0 0
        %798 = vmatpush1.bf16.msra.mxu0 0
        %799 = vmatprep.subr.bf16.mxu0 0
        %800 = vmatpush1.bf16.msra.mxu0 0
        %801 = vmatprep.subr.bf16.mxu0 0
        %802 = vmatpush1.bf16.msra.mxu0 0
        %803 = vmatprep.mubr.bf16.mxu0 0
        %804 = vmatmul.mubr.bf16.gmra.mrb[0].mxu0 %v763
        %v805 = vpop.f32.mrb[0].mxu0
        %v806 = vadd.f32 0.0, %v805
        %v807 = vpop.f32.mrb[0].mxu0
        %v808 = vpop.f32.mrb[0].mxu0
        %v809 = vadd.f32 0.0, %v808
        %v810 = vpop.f32.mrb[0].mxu0
        %811 = vmatprep.mubr.bf16.mxu0 0
        %812 = vmatmul.mubr.bf16.gmra.mrb[0].mxu0 %v766
        %v813 = vpop.f32.mrb[0].mxu0
        %v814 = vadd.f32 0.0, %v813
        %v815 = vpop.f32.mrb[0].mxu0
        %v816 = vpop.f32.mrb[0].mxu0
        %v817 = vpop.f32.mrb[0].mxu0
        %818 = vdwg.mxu0
        %v819 = vadd.f32 %v730, %v806
        %v820 = vadd.f32 %v731, %v809
        %v821 = vadd.f32 %v732, %v814
        %v822 = vld [vmem:[%s661] sm:$0xe]
        %v824 = vunpack.c.l.b16 %v822
        %v825 = vpack.c.b16 %v742, %v824
        %v826 = vrot.slane %v825, 1
        %v827 = vrot.slane %v746, 1
        %v828 = vsel %vm363, %v826, %v827
        %v830 = vsel %vm243, %v828, 0
        %v833 = vsel %vm243, %v827, 0
        %v836 = vsel %vm250, %v180, 0
        %838 = vmatprep.subr.bf16.mxu0 0
        %839 = vmatpush1.bf16.msra.mxu0 %v836
        %840 = vmatprep.subr.bf16.mxu0 0
        %841 = vmatpush1.bf16.msra.mxu0 0
        %842 = vmatprep.subr.bf16.mxu0 0
        %843 = vmatpush1.bf16.msra.mxu0 0
        %844 = vmatprep.subr.bf16.mxu0 0
        %845 = vmatpush1.bf16.msra.mxu0 0
        %846 = vmatprep.subr.bf16.mxu0 0
        %847 = vmatpush1.bf16.msra.mxu0 0
        %848 = vmatprep.subr.bf16.mxu0 0
        %849 = vmatpush1.bf16.msra.mxu0 0
        %850 = vmatprep.subr.bf16.mxu0 0
        %851 = vmatpush1.bf16.msra.mxu0 0
        %852 = vmatprep.subr.bf16.mxu0 0
        %853 = vmatpush1.bf16.msra.mxu0 0
        %854 = vmatprep.subr.bf16.mxu0 0
        %855 = vmatpush1.bf16.msra.mxu0 0
        %856 = vmatprep.subr.bf16.mxu0 0
        %857 = vmatpush1.bf16.msra.mxu0 0
        %858 = vmatprep.subr.bf16.mxu0 0
        %859 = vmatpush1.bf16.msra.mxu0 0
        %860 = vmatprep.subr.bf16.mxu0 0
        %861 = vmatpush1.bf16.msra.mxu0 0
        %862 = vmatprep.subr.bf16.mxu0 0
        %863 = vmatpush1.bf16.msra.mxu0 0
        %864 = vmatprep.subr.bf16.mxu0 0
        %865 = vmatpush1.bf16.msra.mxu0 0
        %866 = vmatprep.subr.bf16.mxu0 0
        %867 = vmatpush1.bf16.msra.mxu0 0
        %868 = vmatprep.subr.bf16.mxu0 0
        %869 = vmatpush1.bf16.msra.mxu0 0
        %870 = vmatprep.mubr.bf16.mxu0 0
        %871 = vmatmul.mubr.bf16.gmra.mrb[0].mxu0 %v830
        %v872 = vpop.f32.mrb[0].mxu0
        %v873 = vadd.f32 0.0, %v872
        %v874 = vpop.f32.mrb[0].mxu0
        %v875 = vpop.f32.mrb[0].mxu0
        %v876 = vadd.f32 0.0, %v875
        %v877 = vpop.f32.mrb[0].mxu0
        %878 = vmatprep.mubr.bf16.mxu0 0
        %879 = vmatmul.mubr.bf16.gmra.mrb[0].mxu0 %v833
        %v880 = vpop.f32.mrb[0].mxu0
        %v881 = vadd.f32 0.0, %v880
        %v882 = vpop.f32.mrb[0].mxu0
        %v883 = vpop.f32.mrb[0].mxu0
        %v884 = vpop.f32.mrb[0].mxu0
        %885 = vdwg.mxu0
        %v886 = vadd.f32 %v819, %v873
        %v887 = vadd.f32 %v820, %v876
        %v888 = vadd.f32 %v821, %v881
        %889 = vmatprep.subr.bf16.mxu0 0
        %890 = vmatpush1.bf16.msra.mxu0 %v252
        %891 = vmatprep.subr.bf16.mxu0 0
        %892 = vmatpush1.bf16.msra.mxu0 0
        %893 = vmatprep.subr.bf16.mxu0 0
        %894 = vmatpush1.bf16.msra.mxu0 0
        %895 = vmatprep.subr.bf16.mxu0 0
        %896 = vmatpush1.bf16.msra.mxu0 0
        %897 = vmatprep.subr.bf16.mxu0 0
        %898 = vmatpush1.bf16.msra.mxu0 0
        %899 = vmatprep.subr.bf16.mxu0 0
        %900 = vmatpush1.bf16.msra.mxu0 0
        %901 = vmatprep.subr.bf16.mxu0 0
        %902 = vmatpush1.bf16.msra.mxu0 0
        %903 = vmatprep.subr.bf16.mxu0 0
        %904 = vmatpush1.bf16.msra.mxu0 0
        %905 = vmatprep.subr.bf16.mxu0 0
        %906 = vmatpush1.bf16.msra.mxu0 0
        %907 = vmatprep.subr.bf16.mxu0 0
        %908 = vmatpush1.bf16.msra.mxu0 0
        %909 = vmatprep.subr.bf16.mxu0 0
        %910 = vmatpush1.bf16.msra.mxu0 0
        %911 = vmatprep.subr.bf16.mxu0 0
        %912 = vmatpush1.bf16.msra.mxu0 0
        %913 = vmatprep.subr.bf16.mxu0 0
        %914 = vmatpush1.bf16.msra.mxu0 0
        %915 = vmatprep.subr.bf16.mxu0 0
        %916 = vmatpush1.bf16.msra.mxu0 0
        %917 = vmatprep.subr.bf16.mxu0 0
        %918 = vmatpush1.bf16.msra.mxu0 0
        %919 = vmatprep.subr.bf16.mxu0 0
        %920 = vmatpush1.bf16.msra.mxu0 0
        %921 = vmatprep.mubr.bf16.mxu0 0
        %922 = vmatmul.mubr.bf16.gmra.mrb[0].mxu0 %v532
        %v923 = vpop.f32.mrb[0].mxu0
        %v924 = vadd.f32 0.0, %v923
        %v925 = vpop.f32.mrb[0].mxu0
        %v926 = vpop.f32.mrb[0].mxu0
        %v927 = vadd.f32 0.0, %v926
        %v928 = vpop.f32.mrb[0].mxu0
        %929 = vmatprep.mubr.bf16.mxu0 0
        %930 = vmatmul.mubr.bf16.gmra.mrb[0].mxu0 %v535
        %v931 = vpop.f32.mrb[0].mxu0
        %v932 = vadd.f32 0.0, %v931
        %v933 = vpop.f32.mrb[0].mxu0
        %v934 = vpop.f32.mrb[0].mxu0
        %v935 = vpop.f32.mrb[0].mxu0
        %936 = vdwg.mxu0
        %937 = vmatprep.subr.bf16.mxu0 0
        %938 = vmatpush1.bf16.msra.mxu0 %v309
        %939 = vmatprep.subr.bf16.mxu0 0
        %940 = vmatpush1.bf16.msra.mxu0 0
        %941 = vmatprep.subr.bf16.mxu0 0
        %942 = vmatpush1.bf16.msra.mxu0 0
        %943 = vmatprep.subr.bf16.mxu0 0
        %944 = vmatpush1.bf16.msra.mxu0 0
        %945 = vmatprep.subr.bf16.mxu0 0
        %946 = vmatpush1.bf16.msra.mxu0 0
        %947 = vmatprep.subr.bf16.mxu0 0
        %948 = vmatpush1.bf16.msra.mxu0 0
        %949 = vmatprep.subr.bf16.mxu0 0
        %950 = vmatpush1.bf16.msra.mxu0 0
        %951 = vmatprep.subr.bf16.mxu0 0
        %952 = vmatpush1.bf16.msra.mxu0 0
        %953 = vmatprep.subr.bf16.mxu0 0
        %954 = vmatpush1.bf16.msra.mxu0 0
        %955 = vmatprep.subr.bf16.mxu0 0
        %956 = vmatpush1.bf16.msra.mxu0 0
        %957 = vmatprep.subr.bf16.mxu0 0
        %958 = vmatpush1.bf16.msra.mxu0 0
        %959 = vmatprep.subr.bf16.mxu0 0
        %960 = vmatpush1.bf16.msra.mxu0 0
        %961 = vmatprep.subr.bf16.mxu0 0
        %962 = vmatpush1.bf16.msra.mxu0 0
        %963 = vmatprep.subr.bf16.mxu0 0
        %964 = vmatpush1.bf16.msra.mxu0 0
        %965 = vmatprep.subr.bf16.mxu0 0
        %966 = vmatpush1.bf16.msra.mxu0 0
        %967 = vmatprep.subr.bf16.mxu0 0
        %968 = vmatpush1.bf16.msra.mxu0 0
        %969 = vmatprep.mubr.bf16.mxu0 0
        %970 = vmatmul.mubr.bf16.gmra.mrb[0].mxu0 %v443
        %v971 = vpop.f32.mrb[0].mxu0
        %v972 = vadd.f32 %v924, %v971
        %v973 = vpop.f32.mrb[0].mxu0
        %v974 = vpop.f32.mrb[0].mxu0
        %v975 = vadd.f32 %v927, %v974
        %v976 = vpop.f32.mrb[0].mxu0
        %977 = vmatprep.mubr.bf16.mxu0 0
        %978 = vmatmul.mubr.bf16.gmra.mrb[0].mxu0 %v446
        %v979 = vpop.f32.mrb[0].mxu0
        %v980 = vadd.f32 %v932, %v979
        %v981 = vpop.f32.mrb[0].mxu0
        %v982 = vpop.f32.mrb[0].mxu0
        %v983 = vpop.f32.mrb[0].mxu0
        %984 = vdwg.mxu0
        %985 = vmatprep.subr.bf16.mxu0 0
        %986 = vmatpush1.bf16.msra.mxu0 %v374
        %987 = vmatprep.subr.bf16.mxu0 0
        %988 = vmatpush1.bf16.msra.mxu0 0
        %989 = vmatprep.subr.bf16.mxu0 0
        %990 = vmatpush1.bf16.msra.mxu0 0
        %991 = vmatprep.subr.bf16.mxu0 0
        %992 = vmatpush1.bf16.msra.mxu0 0
        %993 = vmatprep.subr.bf16.mxu0 0
        %994 = vmatpush1.bf16.msra.mxu0 0
        %995 = vmatprep.subr.bf16.mxu0 0
        %996 = vmatpush1.bf16.msra.mxu0 0
        %997 = vmatprep.subr.bf16.mxu0 0
        %998 = vmatpush1.bf16.msra.mxu0 0
        %999 = vmatprep.subr.bf16.mxu0 0
        %1000 = vmatpush1.bf16.msra.mxu0 0
        %1001 = vmatprep.subr.bf16.mxu0 0
        %1002 = vmatpush1.bf16.msra.mxu0 0
        %1003 = vmatprep.subr.bf16.mxu0 0
        %1004 = vmatpush1.bf16.msra.mxu0 0
        %1005 = vmatprep.subr.bf16.mxu0 0
        %1006 = vmatpush1.bf16.msra.mxu0 0
        %1007 = vmatprep.subr.bf16.mxu0 0
        %1008 = vmatpush1.bf16.msra.mxu0 0
        %1009 = vmatprep.subr.bf16.mxu0 0
        %1010 = vmatpush1.bf16.msra.mxu0 0
        %1011 = vmatprep.subr.bf16.mxu0 0
        %1012 = vmatpush1.bf16.msra.mxu0 0
        %1013 = vmatprep.subr.bf16.mxu0 0
        %1014 = vmatpush1.bf16.msra.mxu0 0
        %1015 = vmatprep.subr.bf16.mxu0 0
        %1016 = vmatpush1.bf16.msra.mxu0 0
        %1017 = vmatprep.mubr.bf16.mxu0 0
        %1018 = vmatmul.mubr.bf16.gmra.mrb[0].mxu0 %v599
        %v1019 = vpop.f32.mrb[0].mxu0
        %v1020 = vadd.f32 0.0, %v1019
        %v1021 = vpop.f32.mrb[0].mxu0
        %v1022 = vpop.f32.mrb[0].mxu0
        %v1023 = vadd.f32 0.0, %v1022
        %v1024 = vpop.f32.mrb[0].mxu0
        %1025 = vmatprep.mubr.bf16.mxu0 0
        %1026 = vmatmul.mubr.bf16.gmra.mrb[0].mxu0 %v602
        %v1027 = vpop.f32.mrb[0].mxu0
        %v1028 = vadd.f32 0.0, %v1027
        %v1029 = vpop.f32.mrb[0].mxu0
        %v1030 = vpop.f32.mrb[0].mxu0
        %v1031 = vpop.f32.mrb[0].mxu0
        %1032 = vdwg.mxu0
        %v1033 = vadd.f32 %v972, %v1020
        %v1034 = vadd.f32 %v975, %v1023
        %v1035 = vadd.f32 %v980, %v1028
        %1036 = vmatprep.subr.bf16.mxu0 0
        %1037 = vmatpush1.bf16.msra.mxu0 %v449
        %1038 = vmatprep.subr.bf16.mxu0 0
        %1039 = vmatpush1.bf16.msra.mxu0 0
        %1040 = vmatprep.subr.bf16.mxu0 0
        %1041 = vmatpush1.bf16.msra.mxu0 0
        %1042 = vmatprep.subr.bf16.mxu0 0
        %1043 = vmatpush1.bf16.msra.mxu0 0
        %1044 = vmatprep.subr.bf16.mxu0 0
        %1045 = vmatpush1.bf16.msra.mxu0 0
        %1046 = vmatprep.subr.bf16.mxu0 0
        %1047 = vmatpush1.bf16.msra.mxu0 0
        %1048 = vmatprep.subr.bf16.mxu0 0
        %1049 = vmatpush1.bf16.msra.mxu0 0
        %1050 = vmatprep.subr.bf16.mxu0 0
        %1051 = vmatpush1.bf16.msra.mxu0 0
        %1052 = vmatprep.subr.bf16.mxu0 0
        %1053 = vmatpush1.bf16.msra.mxu0 0
        %1054 = vmatprep.subr.bf16.mxu0 0
        %1055 = vmatpush1.bf16.msra.mxu0 0
        %1056 = vmatprep.subr.bf16.mxu0 0
        %1057 = vmatpush1.bf16.msra.mxu0 0
        %1058 = vmatprep.subr.bf16.mxu0 0
        %1059 = vmatpush1.bf16.msra.mxu0 0
        %1060 = vmatprep.subr.bf16.mxu0 0
        %1061 = vmatpush1.bf16.msra.mxu0 0
        %1062 = vmatprep.subr.bf16.mxu0 0
        %1063 = vmatpush1.bf16.msra.mxu0 0
        %1064 = vmatprep.subr.bf16.mxu0 0
        %1065 = vmatpush1.bf16.msra.mxu0 0
        %1066 = vmatprep.subr.bf16.mxu0 0
        %1067 = vmatpush1.bf16.msra.mxu0 0
        %1068 = vmatprep.mubr.bf16.mxu0 0
        %1069 = vmatmul.mubr.bf16.gmra.mrb[0].mxu0 %v674
        %v1070 = vpop.f32.mrb[0].mxu0
        %v1071 = vadd.f32 0.0, %v1070
        %v1072 = vpop.f32.mrb[0].mxu0
        %v1073 = vpop.f32.mrb[0].mxu0
        %v1074 = vadd.f32 0.0, %v1073
        %v1075 = vpop.f32.mrb[0].mxu0
        %1076 = vmatprep.mubr.bf16.mxu0 0
        %1077 = vmatmul.mubr.bf16.gmra.mrb[0].mxu0 %v677
        %v1078 = vpop.f32.mrb[0].mxu0
        %v1079 = vadd.f32 0.0, %v1078
        %v1080 = vpop.f32.mrb[0].mxu0
        %v1081 = vpop.f32.mrb[0].mxu0
        %v1082 = vpop.f32.mrb[0].mxu0
        %1083 = vdwg.mxu0
        %v1084 = vadd.f32 %v1033, %v1071
        %v1085 = vadd.f32 %v1034, %v1074
        %v1086 = vadd.f32 %v1035, %v1079
        %1087 = vmatprep.subr.bf16.mxu0 0
        %1088 = vmatpush1.bf16.msra.mxu0 %v538
        %1089 = vmatprep.subr.bf16.mxu0 0
        %1090 = vmatpush1.bf16.msra.mxu0 0
        %1091 = vmatprep.subr.bf16.mxu0 0
        %1092 = vmatpush1.bf16.msra.mxu0 0
        %1093 = vmatprep.subr.bf16.mxu0 0
        %1094 = vmatpush1.bf16.msra.mxu0 0
        %1095 = vmatprep.subr.bf16.mxu0 0
        %1096 = vmatpush1.bf16.msra.mxu0 0
        %1097 = vmatprep.subr.bf16.mxu0 0
        %1098 = vmatpush1.bf16.msra.mxu0 0
        %1099 = vmatprep.subr.bf16.mxu0 0
        %1100 = vmatpush1.bf16.msra.mxu0 0
        %1101 = vmatprep.subr.bf16.mxu0 0
        %1102 = vmatpush1.bf16.msra.mxu0 0
        %1103 = vmatprep.subr.bf16.mxu0 0
        %1104 = vmatpush1.bf16.msra.mxu0 0
        %1105 = vmatprep.subr.bf16.mxu0 0
        %1106 = vmatpush1.bf16.msra.mxu0 0
        %1107 = vmatprep.subr.bf16.mxu0 0
        %1108 = vmatpush1.bf16.msra.mxu0 0
        %1109 = vmatprep.subr.bf16.mxu0 0
        %1110 = vmatpush1.bf16.msra.mxu0 0
        %1111 = vmatprep.subr.bf16.mxu0 0
        %1112 = vmatpush1.bf16.msra.mxu0 0
        %1113 = vmatprep.subr.bf16.mxu0 0
        %1114 = vmatpush1.bf16.msra.mxu0 0
        %1115 = vmatprep.subr.bf16.mxu0 0
        %1116 = vmatpush1.bf16.msra.mxu0 0
        %1117 = vmatprep.subr.bf16.mxu0 0
        %1118 = vmatpush1.bf16.msra.mxu0 0
        %1119 = vmatprep.mubr.bf16.mxu0 0
        %1120 = vmatmul.mubr.bf16.gmra.mrb[0].mxu0 %v763
        %v1121 = vpop.f32.mrb[0].mxu0
        %v1122 = vadd.f32 0.0, %v1121
        %v1123 = vpop.f32.mrb[0].mxu0
        %v1124 = vpop.f32.mrb[0].mxu0
        %v1125 = vadd.f32 0.0, %v1124
        %v1126 = vpop.f32.mrb[0].mxu0
        %1127 = vmatprep.mubr.bf16.mxu0 0
        %1128 = vmatmul.mubr.bf16.gmra.mrb[0].mxu0 %v766
        %v1129 = vpop.f32.mrb[0].mxu0
        %v1130 = vadd.f32 0.0, %v1129
        %v1131 = vpop.f32.mrb[0].mxu0
        %v1132 = vpop.f32.mrb[0].mxu0
        %v1133 = vpop.f32.mrb[0].mxu0
        %1134 = vdwg.mxu0
        %v1135 = vadd.f32 %v1084, %v1122
        %v1136 = vadd.f32 %v1085, %v1125
        %v1137 = vadd.f32 %v1086, %v1130
        %1138 = vmatprep.subr.bf16.mxu0 0
        %1139 = vmatpush1.bf16.msra.mxu0 %v605
        %1140 = vmatprep.subr.bf16.mxu0 0
        %1141 = vmatpush1.bf16.msra.mxu0 0
        %1142 = vmatprep.subr.bf16.mxu0 0
        %1143 = vmatpush1.bf16.msra.mxu0 0
        %1144 = vmatprep.subr.bf16.mxu0 0
        %1145 = vmatpush1.bf16.msra.mxu0 0
        %1146 = vmatprep.subr.bf16.mxu0 0
        %1147 = vmatpush1.bf16.msra.mxu0 0
        %1148 = vmatprep.subr.bf16.mxu0 0
        %1149 = vmatpush1.bf16.msra.mxu0 0
        %1150 = vmatprep.subr.bf16.mxu0 0
        %1151 = vmatpush1.bf16.msra.mxu0 0
        %1152 = vmatprep.subr.bf16.mxu0 0
        %1153 = vmatpush1.bf16.msra.mxu0 0
        %1154 = vmatprep.subr.bf16.mxu0 0
        %1155 = vmatpush1.bf16.msra.mxu0 0
        %1156 = vmatprep.subr.bf16.mxu0 0
        %1157 = vmatpush1.bf16.msra.mxu0 0
        %1158 = vmatprep.subr.bf16.mxu0 0
        %1159 = vmatpush1.bf16.msra.mxu0 0
        %1160 = vmatprep.subr.bf16.mxu0 0
        %1161 = vmatpush1.bf16.msra.mxu0 0
        %1162 = vmatprep.subr.bf16.mxu0 0
        %1163 = vmatpush1.bf16.msra.mxu0 0
        %1164 = vmatprep.subr.bf16.mxu0 0
        %1165 = vmatpush1.bf16.msra.mxu0 0
        %1166 = vmatprep.subr.bf16.mxu0 0
        %1167 = vmatpush1.bf16.msra.mxu0 0
        %1168 = vmatprep.subr.bf16.mxu0 0
        %1169 = vmatpush1.bf16.msra.mxu0 0
        %1170 = vmatprep.mubr.bf16.mxu0 0
        %1171 = vmatmul.mubr.bf16.gmra.mrb[0].mxu0 %v830
        %v1172 = vpop.f32.mrb[0].mxu0
        %v1173 = vadd.f32 0.0, %v1172
        %v1174 = vpop.f32.mrb[0].mxu0
        %v1175 = vpop.f32.mrb[0].mxu0
        %v1176 = vadd.f32 0.0, %v1175
        %v1177 = vpop.f32.mrb[0].mxu0
        %1178 = vmatprep.mubr.bf16.mxu0 0
        %1179 = vmatmul.mubr.bf16.gmra.mrb[0].mxu0 %v833
        %v1180 = vpop.f32.mrb[0].mxu0
        %v1181 = vadd.f32 0.0, %v1180
        %v1182 = vpop.f32.mrb[0].mxu0
        %v1183 = vpop.f32.mrb[0].mxu0
        %v1184 = vpop.f32.mrb[0].mxu0
        %1185 = vdwg.mxu0
        %v1186 = vadd.f32 %v1135, %v1173
        %v1187 = vadd.f32 %v1136, %v1176
        %v1188 = vadd.f32 %v1137, %v1181
        %s1189 = sadd.s32 %s209, 3
        %s1190 = smul.u32 %s1189, 4
        %s1191 = smul.addr %s1190, 4
        %s1192 = scalar_lea.vmem %s165, %s1191
        %v1193 = vld [vmem:[%s1192] sm:$0xf]
        %v1194 = vld [vmem:[%s1192 + $0x4] sm:$0xf]
        %v1195 = vld [vmem:[%s1192 + $0x8] sm:$0xf]
        %v1199 = vunpack.c.l.b16 %v1193
        %v1200 = vunpack.c.l.b16 %v1194
        %v1201 = vunpack.c.l.b16 %v1195
        %v1202 = vpack.c.b16 %v1200, %v1199
        %v1203 = vpack.c.b16 %v1201, %v1201
        %v1205 = vsel %vm243, %v1202, 0
        %v1208 = vsel %vm243, %v1203, 0
        %1210 = vmatprep.subr.bf16.mxu0 0
        %1211 = vmatpush1.bf16.msra.mxu0 %v680
        %1212 = vmatprep.subr.bf16.mxu0 0
        %1213 = vmatpush1.bf16.msra.mxu0 0
        %1214 = vmatprep.subr.bf16.mxu0 0
        %1215 = vmatpush1.bf16.msra.mxu0 0
        %1216 = vmatprep.subr.bf16.mxu0 0
        %1217 = vmatpush1.bf16.msra.mxu0 0
        %1218 = vmatprep.subr.bf16.mxu0 0
        %1219 = vmatpush1.bf16.msra.mxu0 0
        %1220 = vmatprep.subr.bf16.mxu0 0
        %1221 = vmatpush1.bf16.msra.mxu0 0
        %1222 = vmatprep.subr.bf16.mxu0 0
        %1223 = vmatpush1.bf16.msra.mxu0 0
        %1224 = vmatprep.subr.bf16.mxu0 0
        %1225 = vmatpush1.bf16.msra.mxu0 0
        %1226 = vmatprep.subr.bf16.mxu0 0
        %1227 = vmatpush1.bf16.msra.mxu0 0
        %1228 = vmatprep.subr.bf16.mxu0 0
        %1229 = vmatpush1.bf16.msra.mxu0 0
        %1230 = vmatprep.subr.bf16.mxu0 0
        %1231 = vmatpush1.bf16.msra.mxu0 0
        %1232 = vmatprep.subr.bf16.mxu0 0
        %1233 = vmatpush1.bf16.msra.mxu0 0
        %1234 = vmatprep.subr.bf16.mxu0 0
        %1235 = vmatpush1.bf16.msra.mxu0 0
        %1236 = vmatprep.subr.bf16.mxu0 0
        %1237 = vmatpush1.bf16.msra.mxu0 0
        %1238 = vmatprep.subr.bf16.mxu0 0
        %1239 = vmatpush1.bf16.msra.mxu0 0
        %1240 = vmatprep.subr.bf16.mxu0 0
        %1241 = vmatpush1.bf16.msra.mxu0 0
        %1242 = vmatprep.mubr.bf16.mxu0 0
        %1243 = vmatmul.mubr.bf16.gmra.mrb[0].mxu0 %v1205
        %v1244 = vpop.f32.mrb[0].mxu0
        %v1245 = vadd.f32 0.0, %v1244
        %v1246 = vpop.f32.mrb[0].mxu0
        %v1247 = vpop.f32.mrb[0].mxu0
        %v1248 = vadd.f32 0.0, %v1247
        %v1249 = vpop.f32.mrb[0].mxu0
        %1250 = vmatprep.mubr.bf16.mxu0 0
        %1251 = vmatmul.mubr.bf16.gmra.mrb[0].mxu0 %v1208
        %v1252 = vpop.f32.mrb[0].mxu0
        %v1253 = vadd.f32 0.0, %v1252
        %v1254 = vpop.f32.mrb[0].mxu0
        %v1255 = vpop.f32.mrb[0].mxu0
        %v1256 = vpop.f32.mrb[0].mxu0
        %1257 = vdwg.mxu0
        %v1258 = vadd.f32 %v1186, %v1245
        %v1259 = vadd.f32 %v1187, %v1248
        %v1260 = vadd.f32 %v1188, %v1253
        %v1261 = vld [vmem:[%s1192] sm:$0xf]
        %v1262 = vld [vmem:[%s1192 + $0x4] sm:$0xf]
        %v1263 = vld [vmem:[%s1192 + $0x8] sm:$0xf]
        %v1264 = vld [vmem:[%s1192 + $0xc] sm:$0x1]
        %v1269 = vunpack.c.l.b16 %v1261
        %v1270 = vunpack.c.l.b16 %v1262
        %v1271 = vunpack.c.l.b16 %v1263
        %v1272 = vunpack.c.l.b16 %v1264
        %v1273 = vpack.c.b16 %v1270, %v1269
        %v1274 = vpack.c.b16 %v1272, %v1271
        %v1276 = vshrl.u32 %v1273, 16
        %v1278 = vshll.u32 %v1273, 16
        %v1280 = vrot.slane %v1278, 1
        %v1281 = vor.u32 %v1276, %v1280
        %v1283 = vshll.u32 %v1274, 16
        %v1285 = vrot.slane %v1283, 1
        %v1286 = vsel %vm227, %v1281, %v1285
        %v1287 = vshrl.u32 %v1274, 16
        %v1289 = vor.u32 %v1287, %v1285
        %v1291 = vsel %vm243, %v1286, 0
        %v1294 = vsel %vm243, %v1289, 0
        %1296 = vmatprep.subr.bf16.mxu0 0
        %1297 = vmatpush1.bf16.msra.mxu0 %v769
        %1298 = vmatprep.subr.bf16.mxu0 0
        %1299 = vmatpush1.bf16.msra.mxu0 0
        %1300 = vmatprep.subr.bf16.mxu0 0
        %1301 = vmatpush1.bf16.msra.mxu0 0
        %1302 = vmatprep.subr.bf16.mxu0 0
        %1303 = vmatpush1.bf16.msra.mxu0 0
        %1304 = vmatprep.subr.bf16.mxu0 0
        %1305 = vmatpush1.bf16.msra.mxu0 0
        %1306 = vmatprep.subr.bf16.mxu0 0
        %1307 = vmatpush1.bf16.msra.mxu0 0
        %1308 = vmatprep.subr.bf16.mxu0 0
        %1309 = vmatpush1.bf16.msra.mxu0 0
        %1310 = vmatprep.subr.bf16.mxu0 0
        %1311 = vmatpush1.bf16.msra.mxu0 0
        %1312 = vmatprep.subr.bf16.mxu0 0
        %1313 = vmatpush1.bf16.msra.mxu0 0
        %1314 = vmatprep.subr.bf16.mxu0 0
        %1315 = vmatpush1.bf16.msra.mxu0 0
        %1316 = vmatprep.subr.bf16.mxu0 0
        %1317 = vmatpush1.bf16.msra.mxu0 0
        %1318 = vmatprep.subr.bf16.mxu0 0
        %1319 = vmatpush1.bf16.msra.mxu0 0
        %1320 = vmatprep.subr.bf16.mxu0 0
        %1321 = vmatpush1.bf16.msra.mxu0 0
        %1322 = vmatprep.subr.bf16.mxu0 0
        %1323 = vmatpush1.bf16.msra.mxu0 0
        %1324 = vmatprep.subr.bf16.mxu0 0
        %1325 = vmatpush1.bf16.msra.mxu0 0
        %1326 = vmatprep.subr.bf16.mxu0 0
        %1327 = vmatpush1.bf16.msra.mxu0 0
        %1328 = vmatprep.mubr.bf16.mxu0 0
        %1329 = vmatmul.mubr.bf16.gmra.mrb[0].mxu0 %v1291
        %v1330 = vpop.f32.mrb[0].mxu0
        %v1331 = vadd.f32 0.0, %v1330
        %v1332 = vpop.f32.mrb[0].mxu0
        %v1333 = vpop.f32.mrb[0].mxu0
        %v1334 = vadd.f32 0.0, %v1333
        %v1335 = vpop.f32.mrb[0].mxu0
        %1336 = vmatprep.mubr.bf16.mxu0 0
        %1337 = vmatmul.mubr.bf16.gmra.mrb[0].mxu0 %v1294
        %v1338 = vpop.f32.mrb[0].mxu0
        %v1339 = vadd.f32 0.0, %v1338
        %v1340 = vpop.f32.mrb[0].mxu0
        %v1341 = vpop.f32.mrb[0].mxu0
        %v1342 = vpop.f32.mrb[0].mxu0
        %1343 = vdwg.mxu0
        %v1344 = vadd.f32 %v1258, %v1331
        %v1345 = vadd.f32 %v1259, %v1334
        %v1346 = vadd.f32 %v1260, %v1339
        %v1347 = vld [vmem:[%s1192] sm:$0xe]
        %v1349 = vunpack.c.l.b16 %v1347
        %v1350 = vpack.c.b16 %v1270, %v1349
        %v1351 = vrot.slane %v1350, 1
        %v1352 = vrot.slane %v1274, 1
        %v1353 = vsel %vm363, %v1351, %v1352
        %v1355 = vsel %vm243, %v1353, 0
        %v1358 = vsel %vm243, %v1352, 0
        %1360 = vmatprep.subr.bf16.mxu0 0
        %1361 = vmatpush1.bf16.msra.mxu0 %v836
        %1362 = vmatprep.subr.bf16.mxu0 0
        %1363 = vmatpush1.bf16.msra.mxu0 0
        %1364 = vmatprep.subr.bf16.mxu0 0
        %1365 = vmatpush1.bf16.msra.mxu0 0
        %1366 = vmatprep.subr.bf16.mxu0 0
        %1367 = vmatpush1.bf16.msra.mxu0 0
        %1368 = vmatprep.subr.bf16.mxu0 0
        %1369 = vmatpush1.bf16.msra.mxu0 0
        %1370 = vmatprep.subr.bf16.mxu0 0
        %1371 = vmatpush1.bf16.msra.mxu0 0
        %1372 = vmatprep.subr.bf16.mxu0 0
        %1373 = vmatpush1.bf16.msra.mxu0 0
        %1374 = vmatprep.subr.bf16.mxu0 0
        %1375 = vmatpush1.bf16.msra.mxu0 0
        %1376 = vmatprep.subr.bf16.mxu0 0
        %1377 = vmatpush1.bf16.msra.mxu0 0
        %1378 = vmatprep.subr.bf16.mxu0 0
        %1379 = vmatpush1.bf16.msra.mxu0 0
        %1380 = vmatprep.subr.bf16.mxu0 0
        %1381 = vmatpush1.bf16.msra.mxu0 0
        %1382 = vmatprep.subr.bf16.mxu0 0
        %1383 = vmatpush1.bf16.msra.mxu0 0
        %1384 = vmatprep.subr.bf16.mxu0 0
        %1385 = vmatpush1.bf16.msra.mxu0 0
        %1386 = vmatprep.subr.bf16.mxu0 0
        %1387 = vmatpush1.bf16.msra.mxu0 0
        %1388 = vmatprep.subr.bf16.mxu0 0
        %1389 = vmatpush1.bf16.msra.mxu0 0
        %1390 = vmatprep.subr.bf16.mxu0 0
        %1391 = vmatpush1.bf16.msra.mxu0 0
        %1392 = vmatprep.mubr.bf16.mxu0 0
        %1393 = vmatmul.mubr.bf16.gmra.mrb[0].mxu0 %v1355
        %v1394 = vpop.f32.mrb[0].mxu0
        %v1395 = vadd.f32 0.0, %v1394
        %v1396 = vpop.f32.mrb[0].mxu0
        %v1397 = vpop.f32.mrb[0].mxu0
        %v1398 = vadd.f32 0.0, %v1397
        %v1399 = vpop.f32.mrb[0].mxu0
        %1400 = vmatprep.mubr.bf16.mxu0 0
        %1401 = vmatmul.mubr.bf16.gmra.mrb[0].mxu0 %v1358
        %v1402 = vpop.f32.mrb[0].mxu0
        %v1403 = vadd.f32 0.0, %v1402
        %v1404 = vpop.f32.mrb[0].mxu0
        %v1405 = vpop.f32.mrb[0].mxu0
        %v1406 = vpop.f32.mrb[0].mxu0
        %1407 = vdwg.mxu0
        %v1408 = vadd.f32 %v1344, %v1395
        %v1409 = vadd.f32 %v1345, %v1398
        %v1410 = vadd.f32 %v1346, %v1403
        %v1411 = vmax.f32 %v886, %v1408
        %v1412 = vmax.f32 %v887, %v1409
        %v1413 = vmax.f32 %v888, %v1410
        %vm1414 = vcmask 195584
        %v1416 = vsel %vm1414, %v193, 0
        %v1419 = vsel %vm1414, %v194, 0
        %1421 = vmatprep.subr.mxu0 0.0
        %1422 = vmatpush1.msra.mxu0 %v1411
        %1423 = vmatprep.subr.mxu0 0.0
        %1424 = vmatpush1.msra.mxu0 %v1412
        %1425 = vmatprep.subr.mxu0 0.0
        %1426 = vmatpush1.msra.mxu0 %v1413
        %1427 = vmatprep.subr.mxu0 0.0
        %1428 = vmatpush1.msra.mxu0 0.0
        %1429 = vmatprep.subr.mxu0 0.0
        %1430 = vmatpush1.msra.mxu0 0.0
        %1431 = vmatprep.subr.mxu0 0.0
        %1432 = vmatpush1.msra.mxu0 0.0
        %1433 = vmatprep.subr.mxu0 0.0
        %1434 = vmatpush1.msra.mxu0 0.0
        %1435 = vmatprep.subr.mxu0 0.0
        %1436 = vmatpush1.msra.mxu0 0.0
        %1437 = vmatprep.subr.mxu0 0.0
        %1438 = vmatpush1.msra.mxu0 0.0
        %1439 = vmatprep.subr.mxu0 0.0
        %1440 = vmatpush1.msra.mxu0 0.0
        %1441 = vmatprep.subr.mxu0 0.0
        %1442 = vmatpush1.msra.mxu0 0.0
        %1443 = vmatprep.subr.mxu0 0.0
        %1444 = vmatpush1.msra.mxu0 0.0
        %1445 = vmatprep.subr.mxu0 0.0
        %1446 = vmatpush1.msra.mxu0 0.0
        %1447 = vmatprep.subr.mxu0 0.0
        %1448 = vmatpush1.msra.mxu0 0.0
        %1449 = vmatprep.subr.mxu0 0.0
        %1450 = vmatpush1.msra.mxu0 0.0
        %1451 = vmatprep.subr.mxu0 0.0
        %1452 = vmatpush1.msra.mxu0 0.0
        %1453 = vmatprep.subr.mxu0 0.0
        %1454 = vmatpush1.msra.mxu0 0.0
        %1455 = vmatprep.subr.mxu0 0.0
        %1456 = vmatpush1.msra.mxu0 0.0
        %1457 = vmatprep.subr.mxu0 0.0
        %1458 = vmatpush1.msra.mxu0 0.0
        %1459 = vmatprep.subr.mxu0 0.0
        %1460 = vmatpush1.msra.mxu0 0.0
        %1461 = vmatprep.subr.mxu0 0.0
        %1462 = vmatpush1.msra.mxu0 0.0
        %1463 = vmatprep.subr.mxu0 0.0
        %1464 = vmatpush1.msra.mxu0 0.0
        %1465 = vmatprep.subr.mxu0 0.0
        %1466 = vmatpush1.msra.mxu0 0.0
        %1467 = vmatprep.subr.mxu0 0.0
        %1468 = vmatpush1.msra.mxu0 0.0
        %1469 = vmatprep.subr.mxu0 0.0
        %1470 = vmatpush1.msra.mxu0 0.0
        %1471 = vmatprep.subr.mxu0 0.0
        %1472 = vmatpush1.msra.mxu0 0.0
        %1473 = vmatprep.subr.mxu0 0.0
        %1474 = vmatpush1.msra.mxu0 0.0
        %1475 = vmatprep.subr.mxu0 0.0
        %1476 = vmatpush1.msra.mxu0 0.0
        %1477 = vmatprep.subr.mxu0 0.0
        %1478 = vmatpush1.msra.mxu0 0.0
        %1479 = vmatprep.subr.mxu0 0.0
        %1480 = vmatpush1.msra.mxu0 0.0
        %1481 = vmatprep.subr.mxu0 0.0
        %1482 = vmatpush1.msra.mxu0 0.0
        %1483 = vmatprep.subr.mxu0 0.0
        %1484 = vmatpush1.msra.mxu0 0.0
        %1485 = vmatprep.mubr.f32.mxu0 0.0
        %1486 = vmatmul.mubr.f32.gmra.mrb[0].mxu0 %v1416
        %v1487 = vpop.f32.mrb[0].mxu0
        %v1488 = vadd.f32 0.0, %v1487
        %v1489 = vpop.f32.mrb[0].mxu0
        %1490 = vmatprep.mubr.f32.mxu0 0.0
        %1491 = vmatmul.mubr.f32.gmra.mrb[0].mxu0 %v1419
        %v1492 = vpop.f32.mrb[0].mxu0
        %v1493 = vadd.f32 0.0, %v1492
        %v1494 = vpop.f32.mrb[0].mxu0
        %1495 = vdwg.mxu0
        %v1497 = vsel %vm1414, %v201, 0
        %v1500 = vsel %vm1414, %v202, 0
        %1502 = vmatprep.subr.mxu0 0.0
        %1503 = vmatpush1.msra.mxu0 %v1411
        %1504 = vmatprep.subr.mxu0 0.0
        %1505 = vmatpush1.msra.mxu0 %v1412
        %1506 = vmatprep.subr.mxu0 0.0
        %1507 = vmatpush1.msra.mxu0 %v1413
        %1508 = vmatprep.subr.mxu0 0.0
        %1509 = vmatpush1.msra.mxu0 0.0
        %1510 = vmatprep.subr.mxu0 0.0
        %1511 = vmatpush1.msra.mxu0 0.0
        %1512 = vmatprep.subr.mxu0 0.0
        %1513 = vmatpush1.msra.mxu0 0.0
        %1514 = vmatprep.subr.mxu0 0.0
        %1515 = vmatpush1.msra.mxu0 0.0
        %1516 = vmatprep.subr.mxu0 0.0
        %1517 = vmatpush1.msra.mxu0 0.0
        %1518 = vmatprep.subr.mxu0 0.0
        %1519 = vmatpush1.msra.mxu0 0.0
        %1520 = vmatprep.subr.mxu0 0.0
        %1521 = vmatpush1.msra.mxu0 0.0
        %1522 = vmatprep.subr.mxu0 0.0
        %1523 = vmatpush1.msra.mxu0 0.0
        %1524 = vmatprep.subr.mxu0 0.0
        %1525 = vmatpush1.msra.mxu0 0.0
        %1526 = vmatprep.subr.mxu0 0.0
        %1527 = vmatpush1.msra.mxu0 0.0
        %1528 = vmatprep.subr.mxu0 0.0
        %1529 = vmatpush1.msra.mxu0 0.0
        %1530 = vmatprep.subr.mxu0 0.0
        %1531 = vmatpush1.msra.mxu0 0.0
        %1532 = vmatprep.subr.mxu0 0.0
        %1533 = vmatpush1.msra.mxu0 0.0
        %1534 = vmatprep.subr.mxu0 0.0
        %1535 = vmatpush1.msra.mxu0 0.0
        %1536 = vmatprep.subr.mxu0 0.0
        %1537 = vmatpush1.msra.mxu0 0.0
        %1538 = vmatprep.subr.mxu0 0.0
        %1539 = vmatpush1.msra.mxu0 0.0
        %1540 = vmatprep.subr.mxu0 0.0
        %1541 = vmatpush1.msra.mxu0 0.0
        %1542 = vmatprep.subr.mxu0 0.0
        %1543 = vmatpush1.msra.mxu0 0.0
        %1544 = vmatprep.subr.mxu0 0.0
        %1545 = vmatpush1.msra.mxu0 0.0
        %1546 = vmatprep.subr.mxu0 0.0
        %1547 = vmatpush1.msra.mxu0 0.0
        %1548 = vmatprep.subr.mxu0 0.0
        %1549 = vmatpush1.msra.mxu0 0.0
        %1550 = vmatprep.subr.mxu0 0.0
        %1551 = vmatpush1.msra.mxu0 0.0
        %1552 = vmatprep.subr.mxu0 0.0
        %1553 = vmatpush1.msra.mxu0 0.0
        %1554 = vmatprep.subr.mxu0 0.0
        %1555 = vmatpush1.msra.mxu0 0.0
        %1556 = vmatprep.subr.mxu0 0.0
        %1557 = vmatpush1.msra.mxu0 0.0
        %1558 = vmatprep.subr.mxu0 0.0
        %1559 = vmatpush1.msra.mxu0 0.0
        %1560 = vmatprep.subr.mxu0 0.0
        %1561 = vmatpush1.msra.mxu0 0.0
        %1562 = vmatprep.subr.mxu0 0.0
        %1563 = vmatpush1.msra.mxu0 0.0
        %1564 = vmatprep.subr.mxu0 0.0
        %1565 = vmatpush1.msra.mxu0 0.0
        %1566 = vmatprep.mubr.f32.mxu0 0.0
        %1567 = vmatmul.mubr.f32.gmra.mrb[0].mxu0 %v1497
        %v1568 = vpop.f32.mrb[0].mxu0
        %v1569 = vadd.f32 0.0, %v1568
        %v1570 = vpop.f32.mrb[0].mxu0
        %1571 = vmatprep.mubr.f32.mxu0 0.0
        %1572 = vmatmul.mubr.f32.gmra.mrb[0].mxu0 %v1500
        %v1573 = vpop.f32.mrb[0].mxu0
        %v1574 = vadd.f32 0.0, %v1573
        %v1575 = vpop.f32.mrb[0].mxu0
        %1576 = vdwg.mxu0
        %v1577 = vmax.f32 %v1488, %v1569
        %v1578 = vmax.f32 %v1493, %v1574
        %v1580 = vlaneseq
        %v1581 = vshrl.u32 %v1580, 7
        %v1582 = vsub.s32 0, %v1581
        %v1583 = vrot.slane %v181, %v1582
        %v1585 = vadd.f32 %v1577, %v1583
        %v1586 = vadd.f32 %v1578, %v1583
        %v1587 = vmax.f32 %v1585, 0.0
        %v1588 = vmax.f32 %v1586, 0.0
        %v1589 = vpack.c.bf16 %v1588, %v1587
        %v1591 = vunpack.c.l.b16 %v1589
        %v1592 = vunpack.c.h.b16 %v1589
        %v1593 = vpack.c.b16 %v1591, %v1591
        %v1594 = vpack.c.b16 %v1592, %v1592
        %s1597 = smul.addr %s209, 4
        %s1598 = scalar_lea.vmem %s170, %s1597
        %vm1599 = vcmask 125952
        %1600 = vst.msk [vmem:[%s1598] sm:$0xf] %vm1599, %v1593
        %vm1601 = vcmask 123904
        %1602 = vst.msk [vmem:[%s1598 + $0x4] sm:$0x3] %vm1601, %v1594
      $region37: #{forward.4} parent=31 // loop_footer
        %s208 = sadd.s32 1, %s204
      $region38: #{forward.4} parent=31 // loop_footer_branch
        %203 = sbr.rel target = $region34
      $region39: #{forward.4} parent=31 // loop_exit
        _
      %p1603 = scmp.lt.s32.totalorder %s14, 1
      %s1604 = scalar_select %p1603, %s14, 1
      %s1605 = smul.addr %s1604, 24
      %s1606 = smul.addr %s1605, 4
      %s1607 = scalar_lea.vmem %s3, %s1606
      // Predicated region
      $region40: #{forward.4} parent=31 // pred_check
        %p1608 = pneg %p100
      $region41: #{forward.4} parent=31 // pred_check_branch
        %1610 = sbr.rel (%p1608) target = $region43
      $region42: #{forward.4} parent=31 // pred_region
        _
      $region43: #{forward.4} parent=31 // pred_fallthru
        _
    $region32: #{forward.4} parent=5 // pred_fallthru
      _
    %p1611 = scmp.le.s32.totalorder 2, %s9
    // Predicated region
    $region44: #{forward.4} parent=5 // pred_check
      %p1612 = pneg %p1611
    $region45: #{forward.4} parent=5 // pred_check_branch
      %1614 = sbr.rel (%p1612) target = $region47
    $region46: #{forward.4} parent=5 // pred_region
      %s1615 = ssub.s32 %s9, 2
      // Predicated region
      $region48: #{forward.4} parent=46 // pred_check
        %p1616 = pneg %p106
      $region49: #{forward.4} parent=46 // pred_check_branch
        %1618 = sbr.rel (%p1616) target = $region51
      $region50: #{forward.4} parent=46 // pred_region
        %p1619 = scmp.lt.s32.totalorder %s15, 1
        %s1620 = scalar_select %p1619, %s15, 1
        %s1621 = smul.addr %s1620, 24
        %s1622 = smul.addr %s1621, 4
        %s1623 = scalar_lea.vmem %s3, %s1622
      $region51: #{forward.4} parent=46 // pred_fallthru
        _
    $region47: #{forward.4} parent=5 // pred_fallthru
      _
  $region6: #{forward.4} parent=0 // loop_footer
    %s13 = sadd.s32 1, %s9
  $region7: #{forward.4} parent=0 // loop_footer_branch
    %8 = sbr.rel target = $region3
  $region8: #{forward.4} parent=0 // loop_exit
    _

// kernel: forward.5
$region0: #{forward.5}
  #allocation0 [shape = 'u32[]', space=smem, size = 0x4, offset = 0x4, fixed_abs, tag = 'smem constant byte address 0x4 - core index']
  #allocation1 [shape = 'u32[144,128]{1,0:T(1,128)}', space=vmem, size = 0x12000, scoped, tag = 'internal scratch']
  %s0 = inlined_call_operand.vmem [shape: bf16[8,2304], index: 0, kind: input, shape index: {}]
  %s1 = inlined_call_operand.vmem [shape: bf16[2304,32], index: 1, kind: input, shape index: {}]
  %s2 = inlined_call_operand.vmem [shape: f32[1,32], index: 2, kind: input, shape index: {}]
  %s3 = inlined_call_operand.vmem [shape: bf16[32,10], index: 3, kind: input, shape index: {}]
  %s4 = inlined_call_operand.vmem [shape: f32[1,10], index: 4, kind: input, shape index: {}]
  %s5 = inlined_call_operand.vmem [shape: f32[8,10], index: 5, kind: output, shape index: {}]
  %s6 = sld [smem:[#allocation0]]
  $region30: #{forward.5} parent=0
    _
  %s8 = ssub.s32 1, %s6
  %s9 = scalar_select 0, %s8, %s6
  // Predicated region
  $region2: #{forward.5} parent=0 // pred_check
    _
  $region3: #{forward.5} parent=0 // pred_check_branch
    %11 = sbr.rel (0) target = $region5
  $region4: #{forward.5} parent=0 // pred_region
    _
  $region5: #{forward.5} parent=0 // pred_fallthru
    _
  // Predicated region
  $region6: #{forward.5} parent=0 // pred_check
    _
  $region7: #{forward.5} parent=0 // pred_check_branch
    %13 = sbr.rel (0) target = $region9
  $region8: #{forward.5} parent=0 // pred_region
    _
  $region9: #{forward.5} parent=0 // pred_fallthru
    _
  // Predicated region
  $region10: #{forward.5} parent=0 // pred_check
    _
  $region11: #{forward.5} parent=0 // pred_check_branch
    %15 = sbr.rel (0) target = $region13
  $region12: #{forward.5} parent=0 // pred_region
    _
  $region13: #{forward.5} parent=0 // pred_fallthru
    _
  // Predicated region
  $region14: #{forward.5} parent=0 // pred_check
    _
  $region15: #{forward.5} parent=0 // pred_check_branch
    %17 = sbr.rel (0) target = $region17
  $region16: #{forward.5} parent=0 // pred_region
    _
  $region17: #{forward.5} parent=0 // pred_fallthru
    _
  // Predicated region
  $region18: #{forward.5} parent=0 // pred_check
    _
  $region19: #{forward.5} parent=0 // pred_check_branch
    %19 = sbr.rel (0) target = $region21
  $region20: #{forward.5} parent=0 // pred_region
    _
  $region21: #{forward.5} parent=0 // pred_fallthru
    _
  %v21 = vld [vmem:[%s0] sm:$0xff]
  %v22 = vld [vmem:[%s0 + $0x8] sm:$0xff]
  %v23 = vld [vmem:[%s0 + $0x10] sm:$0xff]
  %v24 = vld [vmem:[%s0 + $0x18] sm:$0xff]
  %v25 = vld [vmem:[%s0 + $0x20] sm:$0xff]
  %v26 = vld [vmem:[%s0 + $0x28] sm:$0xff]
  %v27 = vld [vmem:[%s0 + $0x30] sm:$0xff]
  %v28 = vld [vmem:[%s0 + $0x38] sm:$0xff]
  %v29 = vld [vmem:[%s0 + $0x40] sm:$0xff]
  %v30 = vld [vmem:[%s1] sm:$0xf]
  %v31 = vld [vmem:[%s1 + $0x4] sm:$0xf]
  %v32 = vld [vmem:[%s1 + $0x8] sm:$0xf]
  %v33 = vld [vmem:[%s1 + $0xc] sm:$0xf]
  %v34 = vld [vmem:[%s1 + $0x10] sm:$0xf]
  %v35 = vld [vmem:[%s1 + $0x14] sm:$0xf]
  %v36 = vld [vmem:[%s1 + $0x18] sm:$0xf]
  %v37 = vld [vmem:[%s1 + $0x1c] sm:$0xf]
  %v38 = vld [vmem:[%s1 + $0x20] sm:$0xf]
  %v39 = vld [vmem:[%s1 + $0x24] sm:$0xf]
  %v40 = vld [vmem:[%s1 + $0x28] sm:$0xf]
  %v41 = vld [vmem:[%s1 + $0x2c] sm:$0xf]
  %v42 = vld [vmem:[%s1 + $0x30] sm:$0xf]
  %v43 = vld [vmem:[%s1 + $0x34] sm:$0xf]
  %v44 = vld [vmem:[%s1 + $0x38] sm:$0xf]
  %v45 = vld [vmem:[%s1 + $0x3c] sm:$0xf]
  %v46 = vld [vmem:[%s1 + $0x40] sm:$0xf]
  %v47 = vld [vmem:[%s1 + $0x44] sm:$0xf]
  %v48 = vld [vmem:[%s1 + $0x48] sm:$0xf]
  %v49 = vld [vmem:[%s1 + $0x4c] sm:$0xf]
  %v50 = vld [vmem:[%s1 + $0x50] sm:$0xf]
  %v51 = vld [vmem:[%s1 + $0x54] sm:$0xf]
  %v52 = vld [vmem:[%s1 + $0x58] sm:$0xf]
  %v53 = vld [vmem:[%s1 + $0x5c] sm:$0xf]
  %v54 = vld [vmem:[%s1 + $0x60] sm:$0xf]
  %v55 = vld [vmem:[%s1 + $0x64] sm:$0xf]
  %v56 = vld [vmem:[%s1 + $0x68] sm:$0xf]
  %v57 = vld [vmem:[%s1 + $0x6c] sm:$0xf]
  %v58 = vld [vmem:[%s1 + $0x70] sm:$0xf]
  %v59 = vld [vmem:[%s1 + $0x74] sm:$0xf]
  %v60 = vld [vmem:[%s1 + $0x78] sm:$0xf]
  %v61 = vld [vmem:[%s1 + $0x7c] sm:$0xf]
  %v62 = vld [vmem:[%s1 + $0x80] sm:$0xf]
  %v63 = vld [vmem:[%s1 + $0x84] sm:$0xf]
  %v64 = vld [vmem:[%s1 + $0x88] sm:$0xf]
  %v65 = vld [vmem:[%s1 + $0x8c] sm:$0xf]
  %v66 = vld [vmem:[%s1 + $0x90] sm:$0xf]
  %v67 = vld [vmem:[%s1 + $0x94] sm:$0xf]
  %v68 = vld [vmem:[%s1 + $0x98] sm:$0xf]
  %v69 = vld [vmem:[%s1 + $0x9c] sm:$0xf]
  %v70 = vld [vmem:[%s1 + $0xa0] sm:$0xf]
  %v71 = vld [vmem:[%s1 + $0xa4] sm:$0xf]
  %v72 = vld [vmem:[%s1 + $0xa8] sm:$0xf]
  %v73 = vld [vmem:[%s1 + $0xac] sm:$0xf]
  %v74 = vld [vmem:[%s1 + $0xb0] sm:$0xf]
  %v75 = vld [vmem:[%s1 + $0xb4] sm:$0xf]
  %v76 = vld [vmem:[%s1 + $0xb8] sm:$0xf]
  %v77 = vld [vmem:[%s1 + $0xbc] sm:$0xf]
  %v78 = vld [vmem:[%s1 + $0xc0] sm:$0xf]
  %v79 = vld [vmem:[%s1 + $0xc4] sm:$0xf]
  %v80 = vld [vmem:[%s1 + $0xc8] sm:$0xf]
  %v81 = vld [vmem:[%s1 + $0xcc] sm:$0xf]
  %v82 = vld [vmem:[%s1 + $0xd0] sm:$0xf]
  %v83 = vld [vmem:[%s1 + $0xd4] sm:$0xf]
  %v84 = vld [vmem:[%s1 + $0xd8] sm:$0xf]
  %v85 = vld [vmem:[%s1 + $0xdc] sm:$0xf]
  %v86 = vld [vmem:[%s1 + $0xe0] sm:$0xf]
  %v87 = vld [vmem:[%s1 + $0xe4] sm:$0xf]
  %v88 = vld [vmem:[%s1 + $0xe8] sm:$0xf]
  %v89 = vld [vmem:[%s1 + $0xec] sm:$0xf]
  %v90 = vld [vmem:[%s1 + $0xf0] sm:$0xf]
  %v91 = vld [vmem:[%s1 + $0xf4] sm:$0xf]
  %v92 = vld [vmem:[%s1 + $0xf8] sm:$0xf]
  %v93 = vld [vmem:[%s1 + $0xfc] sm:$0xf]
  %v94 = vld [vmem:[%s1 + $0x100] sm:$0xf]
  %v95 = vld [vmem:[%s1 + $0x104] sm:$0xf]
  %v96 = vld [vmem:[%s1 + $0x108] sm:$0xf]
  %v97 = vld [vmem:[%s1 + $0x10c] sm:$0xf]
  %v98 = vld [vmem:[%s1 + $0x110] sm:$0xf]
  %v99 = vld [vmem:[%s1 + $0x114] sm:$0xf]
  %v100 = vld [vmem:[%s1 + $0x118] sm:$0xf]
  %v101 = vld [vmem:[%s1 + $0x11c] sm:$0xf]
  %v102 = vld [vmem:[%s1 + $0x120] sm:$0xf]
  %v103 = vld [vmem:[%s1 + $0x124] sm:$0xf]
  %v104 = vld [vmem:[%s1 + $0x128] sm:$0xf]
  %v105 = vld [vmem:[%s1 + $0x12c] sm:$0xf]
  %v106 = vld [vmem:[%s1 + $0x130] sm:$0xf]
  %v107 = vld [vmem:[%s1 + $0x134] sm:$0xf]
  %v108 = vld [vmem:[%s1 + $0x138] sm:$0xf]
  %v109 = vld [vmem:[%s1 + $0x13c] sm:$0xf]
  %v110 = vld [vmem:[%s1 + $0x140] sm:$0xf]
  %v111 = vld [vmem:[%s1 + $0x144] sm:$0xf]
  %v112 = vld [vmem:[%s1 + $0x148] sm:$0xf]
  %v113 = vld [vmem:[%s1 + $0x14c] sm:$0xf]
  %v114 = vld [vmem:[%s1 + $0x150] sm:$0xf]
  %v115 = vld [vmem:[%s1 + $0x154] sm:$0xf]
  %v116 = vld [vmem:[%s1 + $0x158] sm:$0xf]
  %v117 = vld [vmem:[%s1 + $0x15c] sm:$0xf]
  %v118 = vld [vmem:[%s1 + $0x160] sm:$0xf]
  %v119 = vld [vmem:[%s1 + $0x164] sm:$0xf]
  %v120 = vld [vmem:[%s1 + $0x168] sm:$0xf]
  %v121 = vld [vmem:[%s1 + $0x16c] sm:$0xf]
  %v122 = vld [vmem:[%s1 + $0x170] sm:$0xf]
  %v123 = vld [vmem:[%s1 + $0x174] sm:$0xf]
  %v124 = vld [vmem:[%s1 + $0x178] sm:$0xf]
  %v125 = vld [vmem:[%s1 + $0x17c] sm:$0xf]
  %v126 = vld [vmem:[%s1 + $0x180] sm:$0xf]
  %v127 = vld [vmem:[%s1 + $0x184] sm:$0xf]
  %v128 = vld [vmem:[%s1 + $0x188] sm:$0xf]
  %v129 = vld [vmem:[%s1 + $0x18c] sm:$0xf]
  %v130 = vld [vmem:[%s1 + $0x190] sm:$0xf]
  %v131 = vld [vmem:[%s1 + $0x194] sm:$0xf]
  %v132 = vld [vmem:[%s1 + $0x198] sm:$0xf]
  %v133 = vld [vmem:[%s1 + $0x19c] sm:$0xf]
  %v134 = vld [vmem:[%s1 + $0x1a0] sm:$0xf]
  %v135 = vld [vmem:[%s1 + $0x1a4] sm:$0xf]
  %v136 = vld [vmem:[%s1 + $0x1a8] sm:$0xf]
  %v137 = vld [vmem:[%s1 + $0x1ac] sm:$0xf]
  %v138 = vld [vmem:[%s1 + $0x1b0] sm:$0xf]
  %v139 = vld [vmem:[%s1 + $0x1b4] sm:$0xf]
  %v140 = vld [vmem:[%s1 + $0x1b8] sm:$0xf]
  %v141 = vld [vmem:[%s1 + $0x1bc] sm:$0xf]
  %v142 = vld [vmem:[%s1 + $0x1c0] sm:$0xf]
  %v143 = vld [vmem:[%s1 + $0x1c4] sm:$0xf]
  %v144 = vld [vmem:[%s1 + $0x1c8] sm:$0xf]
  %v145 = vld [vmem:[%s1 + $0x1cc] sm:$0xf]
  %v146 = vld [vmem:[%s1 + $0x1d0] sm:$0xf]
  %v147 = vld [vmem:[%s1 + $0x1d4] sm:$0xf]
  %v148 = vld [vmem:[%s1 + $0x1d8] sm:$0xf]
  %v149 = vld [vmem:[%s1 + $0x1dc] sm:$0xf]
  %v150 = vld [vmem:[%s1 + $0x1e0] sm:$0xf]
  %v151 = vld [vmem:[%s1 + $0x1e4] sm:$0xf]
  %v152 = vld [vmem:[%s1 + $0x1e8] sm:$0xf]
  %v153 = vld [vmem:[%s1 + $0x1ec] sm:$0xf]
  %v154 = vld [vmem:[%s1 + $0x1f0] sm:$0xf]
  %v155 = vld [vmem:[%s1 + $0x1f4] sm:$0xf]
  %v156 = vld [vmem:[%s1 + $0x1f8] sm:$0xf]
  %v157 = vld [vmem:[%s1 + $0x1fc] sm:$0xf]
  %v158 = vld [vmem:[%s1 + $0x200] sm:$0xf]
  %v159 = vld [vmem:[%s1 + $0x204] sm:$0xf]
  %v160 = vld [vmem:[%s1 + $0x208] sm:$0xf]
  %v161 = vld [vmem:[%s1 + $0x20c] sm:$0xf]
  %v162 = vld [vmem:[%s1 + $0x210] sm:$0xf]
  %v163 = vld [vmem:[%s1 + $0x214] sm:$0xf]
  %v164 = vld [vmem:[%s1 + $0x218] sm:$0xf]
  %v165 = vld [vmem:[%s1 + $0x21c] sm:$0xf]
  %v166 = vld [vmem:[%s1 + $0x220] sm:$0xf]
  %v167 = vld [vmem:[%s1 + $0x224] sm:$0xf]
  %v168 = vld [vmem:[%s1 + $0x228] sm:$0xf]
  %v169 = vld [vmem:[%s1 + $0x22c] sm:$0xf]
  %v170 = vld [vmem:[%s1 + $0x230] sm:$0xf]
  %v171 = vld [vmem:[%s1 + $0x234] sm:$0xf]
  %v172 = vld [vmem:[%s1 + $0x238] sm:$0xf]
  %v173 = vld [vmem:[%s1 + $0x23c] sm:$0xf]
  %v174 = vld [vmem:[%s1 + $0x240] sm:$0xf]
  %v175 = vld [vmem:[%s1 + $0x244] sm:$0xf]
  %v176 = vld [vmem:[%s1 + $0x248] sm:$0xf]
  %v177 = vld [vmem:[%s1 + $0x24c] sm:$0xf]
  %v178 = vld [vmem:[%s1 + $0x250] sm:$0xf]
  %v179 = vld [vmem:[%s1 + $0x254] sm:$0xf]
  %v180 = vld [vmem:[%s1 + $0x258] sm:$0xf]
  %v181 = vld [vmem:[%s1 + $0x25c] sm:$0xf]
  %v182 = vld [vmem:[%s1 + $0x260] sm:$0xf]
  %v183 = vld [vmem:[%s1 + $0x264] sm:$0xf]
  %v184 = vld [vmem:[%s1 + $0x268] sm:$0xf]
  %v185 = vld [vmem:[%s1 + $0x26c] sm:$0xf]
  %v186 = vld [vmem:[%s1 + $0x270] sm:$0xf]
  %v187 = vld [vmem:[%s1 + $0x274] sm:$0xf]
  %v188 = vld [vmem:[%s1 + $0x278] sm:$0xf]
  %v189 = vld [vmem:[%s1 + $0x27c] sm:$0xf]
  %v190 = vld [vmem:[%s1 + $0x280] sm:$0xf]
  %v191 = vld [vmem:[%s1 + $0x284] sm:$0xf]
  %v192 = vld [vmem:[%s1 + $0x288] sm:$0xf]
  %v193 = vld [vmem:[%s1 + $0x28c] sm:$0xf]
  %v194 = vld [vmem:[%s1 + $0x290] sm:$0xf]
  %v195 = vld [vmem:[%s1 + $0x294] sm:$0xf]
  %v196 = vld [vmem:[%s1 + $0x298] sm:$0xf]
  %v197 = vld [vmem:[%s1 + $0x29c] sm:$0xf]
  %v198 = vld [vmem:[%s1 + $0x2a0] sm:$0xf]
  %v199 = vld [vmem:[%s1 + $0x2a4] sm:$0xf]
  %v200 = vld [vmem:[%s1 + $0x2a8] sm:$0xf]
  %v201 = vld [vmem:[%s1 + $0x2ac] sm:$0xf]
  %v202 = vld [vmem:[%s1 + $0x2b0] sm:$0xf]
  %v203 = vld [vmem:[%s1 + $0x2b4] sm:$0xf]
  %v204 = vld [vmem:[%s1 + $0x2b8] sm:$0xf]
  %v205 = vld [vmem:[%s1 + $0x2bc] sm:$0xf]
  %v206 = vld [vmem:[%s1 + $0x2c0] sm:$0xf]
  %v207 = vld [vmem:[%s1 + $0x2c4] sm:$0xf]
  %v208 = vld [vmem:[%s1 + $0x2c8] sm:$0xf]
  %v209 = vld [vmem:[%s1 + $0x2cc] sm:$0xf]
  %v210 = vld [vmem:[%s1 + $0x2d0] sm:$0xf]
  %v211 = vld [vmem:[%s1 + $0x2d4] sm:$0xf]
  %v212 = vld [vmem:[%s1 + $0x2d8] sm:$0xf]
  %v213 = vld [vmem:[%s1 + $0x2dc] sm:$0xf]
  %v214 = vld [vmem:[%s1 + $0x2e0] sm:$0xf]
  %v215 = vld [vmem:[%s1 + $0x2e4] sm:$0xf]
  %v216 = vld [vmem:[%s1 + $0x2e8] sm:$0xf]
  %v217 = vld [vmem:[%s1 + $0x2ec] sm:$0xf]
  %v218 = vld [vmem:[%s1 + $0x2f0] sm:$0xf]
  %v219 = vld [vmem:[%s1 + $0x2f4] sm:$0xf]
  %v220 = vld [vmem:[%s1 + $0x2f8] sm:$0xf]
  %v221 = vld [vmem:[%s1 + $0x2fc] sm:$0xf]
  %v222 = vld [vmem:[%s1 + $0x300] sm:$0xf]
  %v223 = vld [vmem:[%s1 + $0x304] sm:$0xf]
  %v224 = vld [vmem:[%s1 + $0x308] sm:$0xf]
  %v225 = vld [vmem:[%s1 + $0x30c] sm:$0xf]
  %v226 = vld [vmem:[%s1 + $0x310] sm:$0xf]
  %v227 = vld [vmem:[%s1 + $0x314] sm:$0xf]
  %v228 = vld [vmem:[%s1 + $0x318] sm:$0xf]
  %v229 = vld [vmem:[%s1 + $0x31c] sm:$0xf]
  %v230 = vld [vmem:[%s1 + $0x320] sm:$0xf]
  %v231 = vld [vmem:[%s1 + $0x324] sm:$0xf]
  %v232 = vld [vmem:[%s1 + $0x328] sm:$0xf]
  %v233 = vld [vmem:[%s1 + $0x32c] sm:$0xf]
  %v234 = vld [vmem:[%s1 + $0x330] sm:$0xf]
  %v235 = vld [vmem:[%s1 + $0x334] sm:$0xf]
  %v236 = vld [vmem:[%s1 + $0x338] sm:$0xf]
  %v237 = vld [vmem:[%s1 + $0x33c] sm:$0xf]
  %v238 = vld [vmem:[%s1 + $0x340] sm:$0xf]
  %v239 = vld [vmem:[%s1 + $0x344] sm:$0xf]
  %v240 = vld [vmem:[%s1 + $0x348] sm:$0xf]
  %v241 = vld [vmem:[%s1 + $0x34c] sm:$0xf]
  %v242 = vld [vmem:[%s1 + $0x350] sm:$0xf]
  %v243 = vld [vmem:[%s1 + $0x354] sm:$0xf]
  %v244 = vld [vmem:[%s1 + $0x358] sm:$0xf]
  %v245 = vld [vmem:[%s1 + $0x35c] sm:$0xf]
  %v246 = vld [vmem:[%s1 + $0x360] sm:$0xf]
  %v247 = vld [vmem:[%s1 + $0x364] sm:$0xf]
  %v248 = vld [vmem:[%s1 + $0x368] sm:$0xf]
  %v249 = vld [vmem:[%s1 + $0x36c] sm:$0xf]
  %v250 = vld [vmem:[%s1 + $0x370] sm:$0xf]
  %v251 = vld [vmem:[%s1 + $0x374] sm:$0xf]
  %v252 = vld [vmem:[%s1 + $0x378] sm:$0xf]
  %v253 = vld [vmem:[%s1 + $0x37c] sm:$0xf]
  %v254 = vld [vmem:[%s1 + $0x380] sm:$0xf]
  %v255 = vld [vmem:[%s1 + $0x384] sm:$0xf]
  %v256 = vld [vmem:[%s1 + $0x388] sm:$0xf]
  %v257 = vld [vmem:[%s1 + $0x38c] sm:$0xf]
  %v258 = vld [vmem:[%s1 + $0x390] sm:$0xf]
  %v259 = vld [vmem:[%s1 + $0x394] sm:$0xf]
  %v260 = vld [vmem:[%s1 + $0x398] sm:$0xf]
  %v261 = vld [vmem:[%s1 + $0x39c] sm:$0xf]
  %v262 = vld [vmem:[%s1 + $0x3a0] sm:$0xf]
  %v263 = vld [vmem:[%s1 + $0x3a4] sm:$0xf]
  %v264 = vld [vmem:[%s1 + $0x3a8] sm:$0xf]
  %v265 = vld [vmem:[%s1 + $0x3ac] sm:$0xf]
  %v266 = vld [vmem:[%s1 + $0x3b0] sm:$0xf]
  %v267 = vld [vmem:[%s1 + $0x3b4] sm:$0xf]
  %v268 = vld [vmem:[%s1 + $0x3b8] sm:$0xf]
  %v269 = vld [vmem:[%s1 + $0x3bc] sm:$0xf]
  %v270 = vld [vmem:[%s1 + $0x3c0] sm:$0xf]
  %v271 = vld [vmem:[%s1 + $0x3c4] sm:$0xf]
  %v272 = vld [vmem:[%s1 + $0x3c8] sm:$0xf]
  %v273 = vld [vmem:[%s1 + $0x3cc] sm:$0xf]
  %v274 = vld [vmem:[%s1 + $0x3d0] sm:$0xf]
  %v275 = vld [vmem:[%s1 + $0x3d4] sm:$0xf]
  %v276 = vld [vmem:[%s1 + $0x3d8] sm:$0xf]
  %v277 = vld [vmem:[%s1 + $0x3dc] sm:$0xf]
  %v278 = vld [vmem:[%s1 + $0x3e0] sm:$0xf]
  %v279 = vld [vmem:[%s1 + $0x3e4] sm:$0xf]
  %v280 = vld [vmem:[%s1 + $0x3e8] sm:$0xf]
  %v281 = vld [vmem:[%s1 + $0x3ec] sm:$0xf]
  %v282 = vld [vmem:[%s1 + $0x3f0] sm:$0xf]
  %v283 = vld [vmem:[%s1 + $0x3f4] sm:$0xf]
  %v284 = vld [vmem:[%s1 + $0x3f8] sm:$0xf]
  %v285 = vld [vmem:[%s1 + $0x3fc] sm:$0xf]
  %v286 = vld [vmem:[%s1 + $0x400] sm:$0xf]
  %v287 = vld [vmem:[%s1 + $0x404] sm:$0xf]
  %v288 = vld [vmem:[%s1 + $0x408] sm:$0xf]
  %v289 = vld [vmem:[%s1 + $0x40c] sm:$0xf]
  %v290 = vld [vmem:[%s1 + $0x410] sm:$0xf]
  %v291 = vld [vmem:[%s1 + $0x414] sm:$0xf]
  %v292 = vld [vmem:[%s1 + $0x418] sm:$0xf]
  %v293 = vld [vmem:[%s1 + $0x41c] sm:$0xf]
  %v294 = vld [vmem:[%s1 + $0x420] sm:$0xf]
  %v295 = vld [vmem:[%s1 + $0x424] sm:$0xf]
  %v296 = vld [vmem:[%s1 + $0x428] sm:$0xf]
  %v297 = vld [vmem:[%s1 + $0x42c] sm:$0xf]
  %v298 = vld [vmem:[%s1 + $0x430] sm:$0xf]
  %v299 = vld [vmem:[%s1 + $0x434] sm:$0xf]
  %v300 = vld [vmem:[%s1 + $0x438] sm:$0xf]
  %v301 = vld [vmem:[%s1 + $0x43c] sm:$0xf]
  %v302 = vld [vmem:[%s1 + $0x440] sm:$0xf]
  %v303 = vld [vmem:[%s1 + $0x444] sm:$0xf]
  %v304 = vld [vmem:[%s1 + $0x448] sm:$0xf]
  %v305 = vld [vmem:[%s1 + $0x44c] sm:$0xf]
  %v306 = vld [vmem:[%s1 + $0x450] sm:$0xf]
  %v307 = vld [vmem:[%s1 + $0x454] sm:$0xf]
  %v308 = vld [vmem:[%s1 + $0x458] sm:$0xf]
  %v309 = vld [vmem:[%s1 + $0x45c] sm:$0xf]
  %v310 = vld [vmem:[%s1 + $0x460] sm:$0xf]
  %v311 = vld [vmem:[%s1 + $0x464] sm:$0xf]
  %v312 = vld [vmem:[%s1 + $0x468] sm:$0xf]
  %v313 = vld [vmem:[%s1 + $0x46c] sm:$0xf]
  %v314 = vld [vmem:[%s1 + $0x470] sm:$0xf]
  %v315 = vld [vmem:[%s1 + $0x474] sm:$0xf]
  %v316 = vld [vmem:[%s1 + $0x478] sm:$0xf]
  %v317 = vld [vmem:[%s1 + $0x47c] sm:$0xf]
  %v318 = vld [vmem:[%s2] sm:$0x1]
  %v320 = vlaneseq
  %v321 = vshrl.u32 %v320, 7
  %v322 = vsub.s32 0, %v321
  %v323 = vrot.slane %v318, %v322
  %v334 = vunpack.c.l.b16 %v21
  %v335 = vunpack.c.h.b16 %v21
  %v336 = vunpack.c.l.b16 %v22
  %v337 = vunpack.c.h.b16 %v22
  %v338 = vunpack.c.l.b16 %v23
  %v339 = vunpack.c.h.b16 %v23
  %v340 = vunpack.c.l.b16 %v24
  %v341 = vunpack.c.h.b16 %v24
  %v342 = vunpack.c.l.b16 %v25
  %v343 = vunpack.c.h.b16 %v25
  %v344 = vunpack.c.l.b16 %v26
  %v345 = vunpack.c.h.b16 %v26
  %v346 = vunpack.c.l.b16 %v27
  %v347 = vunpack.c.h.b16 %v27
  %v348 = vunpack.c.l.b16 %v28
  %v349 = vunpack.c.h.b16 %v28
  %v350 = vunpack.c.l.b16 %v29
  %v351 = vunpack.c.h.b16 %v29
  %v352 = vpack.c.b16 %v334, %v334
  %v353 = vpack.c.b16 %v335, %v335
  %v354 = vpack.c.b16 %v336, %v336
  %v355 = vpack.c.b16 %v337, %v337
  %v356 = vpack.c.b16 %v338, %v338
  %v357 = vpack.c.b16 %v339, %v339
  %v358 = vpack.c.b16 %v340, %v340
  %v359 = vpack.c.b16 %v341, %v341
  %v360 = vpack.c.b16 %v342, %v342
  %v361 = vpack.c.b16 %v343, %v343
  %v362 = vpack.c.b16 %v344, %v344
  %v363 = vpack.c.b16 %v345, %v345
  %v364 = vpack.c.b16 %v346, %v346
  %v365 = vpack.c.b16 %v347, %v347
  %v366 = vpack.c.b16 %v348, %v348
  %v367 = vpack.c.b16 %v349, %v349
  %v368 = vpack.c.b16 %v350, %v350
  %v369 = vpack.c.b16 %v351, %v351
  %v676 = vunpack.c.l.b16 %v30
  %v677 = vunpack.c.l.b16 %v31
  %v678 = vunpack.c.l.b16 %v32
  %v679 = vunpack.c.l.b16 %v33
  %v680 = vunpack.c.l.b16 %v34
  %v681 = vunpack.c.l.b16 %v35
  %v682 = vunpack.c.l.b16 %v36
  %v683 = vunpack.c.l.b16 %v37
  %v684 = vunpack.c.l.b16 %v38
  %v685 = vunpack.c.l.b16 %v39
  %v686 = vunpack.c.l.b16 %v40
  %v687 = vunpack.c.l.b16 %v41
  %v688 = vunpack.c.l.b16 %v42
  %v689 = vunpack.c.l.b16 %v43
  %v690 = vunpack.c.l.b16 %v44
  %v691 = vunpack.c.l.b16 %v45
  %v692 = vunpack.c.l.b16 %v46
  %v693 = vunpack.c.l.b16 %v47
  %v694 = vunpack.c.l.b16 %v48
  %v695 = vunpack.c.l.b16 %v49
  %v696 = vunpack.c.l.b16 %v50
  %v697 = vunpack.c.l.b16 %v51
  %v698 = vunpack.c.l.b16 %v52
  %v699 = vunpack.c.l.b16 %v53
  %v700 = vunpack.c.l.b16 %v54
  %v701 = vunpack.c.l.b16 %v55
  %v702 = vunpack.c.l.b16 %v56
  %v703 = vunpack.c.l.b16 %v57
  %v704 = vunpack.c.l.b16 %v58
  %v705 = vunpack.c.l.b16 %v59
  %v706 = vunpack.c.l.b16 %v60
  %v707 = vunpack.c.l.b16 %v61
  %v708 = vunpack.c.l.b16 %v62
  %v709 = vunpack.c.l.b16 %v63
  %v710 = vunpack.c.l.b16 %v64
  %v711 = vunpack.c.l.b16 %v65
  %v712 = vunpack.c.l.b16 %v66
  %v713 = vunpack.c.l.b16 %v67
  %v714 = vunpack.c.l.b16 %v68
  %v715 = vunpack.c.l.b16 %v69
  %v716 = vunpack.c.l.b16 %v70
  %v717 = vunpack.c.l.b16 %v71
  %v718 = vunpack.c.l.b16 %v72
  %v719 = vunpack.c.l.b16 %v73
  %v720 = vunpack.c.l.b16 %v74
  %v721 = vunpack.c.l.b16 %v75
  %v722 = vunpack.c.l.b16 %v76
  %v723 = vunpack.c.l.b16 %v77
  %v724 = vunpack.c.l.b16 %v78
  %v725 = vunpack.c.l.b16 %v79
  %v726 = vunpack.c.l.b16 %v80
  %v727 = vunpack.c.l.b16 %v81
  %v728 = vunpack.c.l.b16 %v82
  %v729 = vunpack.c.l.b16 %v83
  %v730 = vunpack.c.l.b16 %v84
  %v731 = vunpack.c.l.b16 %v85
  %v732 = vunpack.c.l.b16 %v86
  %v733 = vunpack.c.l.b16 %v87
  %v734 = vunpack.c.l.b16 %v88
  %v735 = vunpack.c.l.b16 %v89
  %v736 = vunpack.c.l.b16 %v90
  %v737 = vunpack.c.l.b16 %v91
  %v738 = vunpack.c.l.b16 %v92
  %v739 = vunpack.c.l.b16 %v93
  %v740 = vunpack.c.l.b16 %v94
  %v741 = vunpack.c.l.b16 %v95
  %v742 = vunpack.c.l.b16 %v96
  %v743 = vunpack.c.l.b16 %v97
  %v744 = vunpack.c.l.b16 %v98
  %v745 = vunpack.c.l.b16 %v99
  %v746 = vunpack.c.l.b16 %v100
  %v747 = vunpack.c.l.b16 %v101
  %v748 = vunpack.c.l.b16 %v102
  %v749 = vunpack.c.l.b16 %v103
  %v750 = vunpack.c.l.b16 %v104
  %v751 = vunpack.c.l.b16 %v105
  %v752 = vunpack.c.l.b16 %v106
  %v753 = vunpack.c.l.b16 %v107
  %v754 = vunpack.c.l.b16 %v108
  %v755 = vunpack.c.l.b16 %v109
  %v756 = vunpack.c.l.b16 %v110
  %v757 = vunpack.c.l.b16 %v111
  %v758 = vunpack.c.l.b16 %v112
  %v759 = vunpack.c.l.b16 %v113
  %v760 = vunpack.c.l.b16 %v114
  %v761 = vunpack.c.l.b16 %v115
  %v762 = vunpack.c.l.b16 %v116
  %v763 = vunpack.c.l.b16 %v117
  %v764 = vunpack.c.l.b16 %v118
  %v765 = vunpack.c.l.b16 %v119
  %v766 = vunpack.c.l.b16 %v120
  %v767 = vunpack.c.l.b16 %v121
  %v768 = vunpack.c.l.b16 %v122
  %v769 = vunpack.c.l.b16 %v123
  %v770 = vunpack.c.l.b16 %v124
  %v771 = vunpack.c.l.b16 %v125
  %v772 = vunpack.c.l.b16 %v126
  %v773 = vunpack.c.l.b16 %v127
  %v774 = vunpack.c.l.b16 %v128
  %v775 = vunpack.c.l.b16 %v129
  %v776 = vunpack.c.l.b16 %v130
  %v777 = vunpack.c.l.b16 %v131
  %v778 = vunpack.c.l.b16 %v132
  %v779 = vunpack.c.l.b16 %v133
  %v780 = vunpack.c.l.b16 %v134
  %v781 = vunpack.c.l.b16 %v135
  %v782 = vunpack.c.l.b16 %v136
  %v783 = vunpack.c.l.b16 %v137
  %v784 = vunpack.c.l.b16 %v138
  %v785 = vunpack.c.l.b16 %v139
  %v786 = vunpack.c.l.b16 %v140
  %v787 = vunpack.c.l.b16 %v141
  %v788 = vunpack.c.l.b16 %v142
  %v789 = vunpack.c.l.b16 %v143
  %v790 = vunpack.c.l.b16 %v144
  %v791 = vunpack.c.l.b16 %v145
  %v792 = vunpack.c.l.b16 %v146
  %v793 = vunpack.c.l.b16 %v147
  %v794 = vunpack.c.l.b16 %v148
  %v795 = vunpack.c.l.b16 %v149
  %v796 = vunpack.c.l.b16 %v150
  %v797 = vunpack.c.l.b16 %v151
  %v798 = vunpack.c.l.b16 %v152
  %v799 = vunpack.c.l.b16 %v153
  %v800 = vunpack.c.l.b16 %v154
  %v801 = vunpack.c.l.b16 %v155
  %v802 = vunpack.c.l.b16 %v156
  %v803 = vunpack.c.l.b16 %v157
  %v804 = vunpack.c.l.b16 %v158
  %v805 = vunpack.c.l.b16 %v159
  %v806 = vunpack.c.l.b16 %v160
  %v807 = vunpack.c.l.b16 %v161
  %v808 = vunpack.c.l.b16 %v162
  %v809 = vunpack.c.l.b16 %v163
  %v810 = vunpack.c.l.b16 %v164
  %v811 = vunpack.c.l.b16 %v165
  %v812 = vunpack.c.l.b16 %v166
  %v813 = vunpack.c.l.b16 %v167
  %v814 = vunpack.c.l.b16 %v168
  %v815 = vunpack.c.l.b16 %v169
  %v816 = vunpack.c.l.b16 %v170
  %v817 = vunpack.c.l.b16 %v171
  %v818 = vunpack.c.l.b16 %v172
  %v819 = vunpack.c.l.b16 %v173
  %v820 = vunpack.c.l.b16 %v174
  %v821 = vunpack.c.l.b16 %v175
  %v822 = vunpack.c.l.b16 %v176
  %v823 = vunpack.c.l.b16 %v177
  %v824 = vunpack.c.l.b16 %v178
  %v825 = vunpack.c.l.b16 %v179
  %v826 = vunpack.c.l.b16 %v180
  %v827 = vunpack.c.l.b16 %v181
  %v828 = vunpack.c.l.b16 %v182
  %v829 = vunpack.c.l.b16 %v183
  %v830 = vunpack.c.l.b16 %v184
  %v831 = vunpack.c.l.b16 %v185
  %v832 = vunpack.c.l.b16 %v186
  %v833 = vunpack.c.l.b16 %v187
  %v834 = vunpack.c.l.b16 %v188
  %v835 = vunpack.c.l.b16 %v189
  %v836 = vunpack.c.l.b16 %v190
  %v837 = vunpack.c.l.b16 %v191
  %v838 = vunpack.c.l.b16 %v192
  %v839 = vunpack.c.l.b16 %v193
  %v840 = vunpack.c.l.b16 %v194
  %v841 = vunpack.c.l.b16 %v195
  %v842 = vunpack.c.l.b16 %v196
  %v843 = vunpack.c.l.b16 %v197
  %v844 = vunpack.c.l.b16 %v198
  %v845 = vunpack.c.l.b16 %v199
  %v846 = vunpack.c.l.b16 %v200
  %v847 = vunpack.c.l.b16 %v201
  %v848 = vunpack.c.l.b16 %v202
  %v849 = vunpack.c.l.b16 %v203
  %v850 = vunpack.c.l.b16 %v204
  %v851 = vunpack.c.l.b16 %v205
  %v852 = vunpack.c.l.b16 %v206
  %v853 = vunpack.c.l.b16 %v207
  %v854 = vunpack.c.l.b16 %v208
  %v855 = vunpack.c.l.b16 %v209
  %v856 = vunpack.c.l.b16 %v210
  %v857 = vunpack.c.l.b16 %v211
  %v858 = vunpack.c.l.b16 %v212
  %v859 = vunpack.c.l.b16 %v213
  %v860 = vunpack.c.l.b16 %v214
  %v861 = vunpack.c.l.b16 %v215
  %v862 = vunpack.c.l.b16 %v216
  %v863 = vunpack.c.l.b16 %v217
  %v864 = vunpack.c.l.b16 %v218
  %v865 = vunpack.c.l.b16 %v219
  %v866 = vunpack.c.l.b16 %v220
  %v867 = vunpack.c.l.b16 %v221
  %v868 = vunpack.c.l.b16 %v222
  %v869 = vunpack.c.l.b16 %v223
  %v870 = vunpack.c.l.b16 %v224
  %v871 = vunpack.c.l.b16 %v225
  %v872 = vunpack.c.l.b16 %v226
  %v873 = vunpack.c.l.b16 %v227
  %v874 = vunpack.c.l.b16 %v228
  %v875 = vunpack.c.l.b16 %v229
  %v876 = vunpack.c.l.b16 %v230
  %v877 = vunpack.c.l.b16 %v231
  %v878 = vunpack.c.l.b16 %v232
  %v879 = vunpack.c.l.b16 %v233
  %v880 = vunpack.c.l.b16 %v234
  %v881 = vunpack.c.l.b16 %v235
  %v882 = vunpack.c.l.b16 %v236
  %v883 = vunpack.c.l.b16 %v237
  %v884 = vunpack.c.l.b16 %v238
  %v885 = vunpack.c.l.b16 %v239
  %v886 = vunpack.c.l.b16 %v240
  %v887 = vunpack.c.l.b16 %v241
  %v888 = vunpack.c.l.b16 %v242
  %v889 = vunpack.c.l.b16 %v243
  %v890 = vunpack.c.l.b16 %v244
  %v891 = vunpack.c.l.b16 %v245
  %v892 = vunpack.c.l.b16 %v246
  %v893 = vunpack.c.l.b16 %v247
  %v894 = vunpack.c.l.b16 %v248
  %v895 = vunpack.c.l.b16 %v249
  %v896 = vunpack.c.l.b16 %v250
  %v897 = vunpack.c.l.b16 %v251
  %v898 = vunpack.c.l.b16 %v252
  %v899 = vunpack.c.l.b16 %v253
  %v900 = vunpack.c.l.b16 %v254
  %v901 = vunpack.c.l.b16 %v255
  %v902 = vunpack.c.l.b16 %v256
  %v903 = vunpack.c.l.b16 %v257
  %v904 = vunpack.c.l.b16 %v258
  %v905 = vunpack.c.l.b16 %v259
  %v906 = vunpack.c.l.b16 %v260
  %v907 = vunpack.c.l.b16 %v261
  %v908 = vunpack.c.l.b16 %v262
  %v909 = vunpack.c.l.b16 %v263
  %v910 = vunpack.c.l.b16 %v264
  %v911 = vunpack.c.l.b16 %v265
  %v912 = vunpack.c.l.b16 %v266
  %v913 = vunpack.c.l.b16 %v267
  %v914 = vunpack.c.l.b16 %v268
  %v915 = vunpack.c.l.b16 %v269
  %v916 = vunpack.c.l.b16 %v270
  %v917 = vunpack.c.l.b16 %v271
  %v918 = vunpack.c.l.b16 %v272
  %v919 = vunpack.c.l.b16 %v273
  %v920 = vunpack.c.l.b16 %v274
  %v921 = vunpack.c.l.b16 %v275
  %v922 = vunpack.c.l.b16 %v276
  %v923 = vunpack.c.l.b16 %v277
  %v924 = vunpack.c.l.b16 %v278
  %v925 = vunpack.c.l.b16 %v279
  %v926 = vunpack.c.l.b16 %v280
  %v927 = vunpack.c.l.b16 %v281
  %v928 = vunpack.c.l.b16 %v282
  %v929 = vunpack.c.l.b16 %v283
  %v930 = vunpack.c.l.b16 %v284
  %v931 = vunpack.c.l.b16 %v285
  %v932 = vunpack.c.l.b16 %v286
  %v933 = vunpack.c.l.b16 %v287
  %v934 = vunpack.c.l.b16 %v288
  %v935 = vunpack.c.l.b16 %v289
  %v936 = vunpack.c.l.b16 %v290
  %v937 = vunpack.c.l.b16 %v291
  %v938 = vunpack.c.l.b16 %v292
  %v939 = vunpack.c.l.b16 %v293
  %v940 = vunpack.c.l.b16 %v294
  %v941 = vunpack.c.l.b16 %v295
  %v942 = vunpack.c.l.b16 %v296
  %v943 = vunpack.c.l.b16 %v297
  %v944 = vunpack.c.l.b16 %v298
  %v945 = vunpack.c.l.b16 %v299
  %v946 = vunpack.c.l.b16 %v300
  %v947 = vunpack.c.l.b16 %v301
  %v948 = vunpack.c.l.b16 %v302
  %v949 = vunpack.c.l.b16 %v303
  %v950 = vunpack.c.l.b16 %v304
  %v951 = vunpack.c.l.b16 %v305
  %v952 = vunpack.c.l.b16 %v306
  %v953 = vunpack.c.l.b16 %v307
  %v954 = vunpack.c.l.b16 %v308
  %v955 = vunpack.c.l.b16 %v309
  %v956 = vunpack.c.l.b16 %v310
  %v957 = vunpack.c.l.b16 %v311
  %v958 = vunpack.c.l.b16 %v312
  %v959 = vunpack.c.l.b16 %v313
  %v960 = vunpack.c.l.b16 %v314
  %v961 = vunpack.c.l.b16 %v315
  %v962 = vunpack.c.l.b16 %v316
  %v963 = vunpack.c.l.b16 %v317
  %v964 = vpack.c.b16 %v677, %v676
  %v965 = vpack.c.b16 %v679, %v678
  %v966 = vpack.c.b16 %v681, %v680
  %v967 = vpack.c.b16 %v683, %v682
  %v968 = vpack.c.b16 %v685, %v684
  %v969 = vpack.c.b16 %v687, %v686
  %v970 = vpack.c.b16 %v689, %v688
  %v971 = vpack.c.b16 %v691, %v690
  %v972 = vpack.c.b16 %v693, %v692
  %v973 = vpack.c.b16 %v695, %v694
  %v974 = vpack.c.b16 %v697, %v696
  %v975 = vpack.c.b16 %v699, %v698
  %v976 = vpack.c.b16 %v701, %v700
  %v977 = vpack.c.b16 %v703, %v702
  %v978 = vpack.c.b16 %v705, %v704
  %v979 = vpack.c.b16 %v707, %v706
  %v980 = vpack.c.b16 %v709, %v708
  %v981 = vpack.c.b16 %v711, %v710
  %v982 = vpack.c.b16 %v713, %v712
  %v983 = vpack.c.b16 %v715, %v714
  %v984 = vpack.c.b16 %v717, %v716
  %v985 = vpack.c.b16 %v719, %v718
  %v986 = vpack.c.b16 %v721, %v720
  %v987 = vpack.c.b16 %v723, %v722
  %v988 = vpack.c.b16 %v725, %v724
  %v989 = vpack.c.b16 %v727, %v726
  %v990 = vpack.c.b16 %v729, %v728
  %v991 = vpack.c.b16 %v731, %v730
  %v992 = vpack.c.b16 %v733, %v732
  %v993 = vpack.c.b16 %v735, %v734
  %v994 = vpack.c.b16 %v737, %v736
  %v995 = vpack.c.b16 %v739, %v738
  %v996 = vpack.c.b16 %v741, %v740
  %v997 = vpack.c.b16 %v743, %v742
  %v998 = vpack.c.b16 %v745, %v744
  %v999 = vpack.c.b16 %v747, %v746
  %v1000 = vpack.c.b16 %v749, %v748
  %v1001 = vpack.c.b16 %v751, %v750
  %v1002 = vpack.c.b16 %v753, %v752
  %v1003 = vpack.c.b16 %v755, %v754
  %v1004 = vpack.c.b16 %v757, %v756
  %v1005 = vpack.c.b16 %v759, %v758
  %v1006 = vpack.c.b16 %v761, %v760
  %v1007 = vpack.c.b16 %v763, %v762
  %v1008 = vpack.c.b16 %v765, %v764
  %v1009 = vpack.c.b16 %v767, %v766
  %v1010 = vpack.c.b16 %v769, %v768
  %v1011 = vpack.c.b16 %v771, %v770
  %v1012 = vpack.c.b16 %v773, %v772
  %v1013 = vpack.c.b16 %v775, %v774
  %v1014 = vpack.c.b16 %v777, %v776
  %v1015 = vpack.c.b16 %v779, %v778
  %v1016 = vpack.c.b16 %v781, %v780
  %v1017 = vpack.c.b16 %v783, %v782
  %v1018 = vpack.c.b16 %v785, %v784
  %v1019 = vpack.c.b16 %v787, %v786
  %v1020 = vpack.c.b16 %v789, %v788
  %v1021 = vpack.c.b16 %v791, %v790
  %v1022 = vpack.c.b16 %v793, %v792
  %v1023 = vpack.c.b16 %v795, %v794
  %v1024 = vpack.c.b16 %v797, %v796
  %v1025 = vpack.c.b16 %v799, %v798
  %v1026 = vpack.c.b16 %v801, %v800
  %v1027 = vpack.c.b16 %v803, %v802
  %v1028 = vpack.c.b16 %v805, %v804
  %v1029 = vpack.c.b16 %v807, %v806
  %v1030 = vpack.c.b16 %v809, %v808
  %v1031 = vpack.c.b16 %v811, %v810
  %v1032 = vpack.c.b16 %v813, %v812
  %v1033 = vpack.c.b16 %v815, %v814
  %v1034 = vpack.c.b16 %v817, %v816
  %v1035 = vpack.c.b16 %v819, %v818
  %v1036 = vpack.c.b16 %v821, %v820
  %v1037 = vpack.c.b16 %v823, %v822
  %v1038 = vpack.c.b16 %v825, %v824
  %v1039 = vpack.c.b16 %v827, %v826
  %v1040 = vpack.c.b16 %v829, %v828
  %v1041 = vpack.c.b16 %v831, %v830
  %v1042 = vpack.c.b16 %v833, %v832
  %v1043 = vpack.c.b16 %v835, %v834
  %v1044 = vpack.c.b16 %v837, %v836
  %v1045 = vpack.c.b16 %v839, %v838
  %v1046 = vpack.c.b16 %v841, %v840
  %v1047 = vpack.c.b16 %v843, %v842
  %v1048 = vpack.c.b16 %v845, %v844
  %v1049 = vpack.c.b16 %v847, %v846
  %v1050 = vpack.c.b16 %v849, %v848
  %v1051 = vpack.c.b16 %v851, %v850
  %v1052 = vpack.c.b16 %v853, %v852
  %v1053 = vpack.c.b16 %v855, %v854
  %v1054 = vpack.c.b16 %v857, %v856
  %v1055 = vpack.c.b16 %v859, %v858
  %v1056 = vpack.c.b16 %v861, %v860
  %v1057 = vpack.c.b16 %v863, %v862
  %v1058 = vpack.c.b16 %v865, %v864
  %v1059 = vpack.c.b16 %v867, %v866
  %v1060 = vpack.c.b16 %v869, %v868
  %v1061 = vpack.c.b16 %v871, %v870
  %v1062 = vpack.c.b16 %v873, %v872
  %v1063 = vpack.c.b16 %v875, %v874
  %v1064 = vpack.c.b16 %v877, %v876
  %v1065 = vpack.c.b16 %v879, %v878
  %v1066 = vpack.c.b16 %v881, %v880
  %v1067 = vpack.c.b16 %v883, %v882
  %v1068 = vpack.c.b16 %v885, %v884
  %v1069 = vpack.c.b16 %v887, %v886
  %v1070 = vpack.c.b16 %v889, %v888
  %v1071 = vpack.c.b16 %v891, %v890
  %v1072 = vpack.c.b16 %v893, %v892
  %v1073 = vpack.c.b16 %v895, %v894
  %v1074 = vpack.c.b16 %v897, %v896
  %v1075 = vpack.c.b16 %v899, %v898
  %v1076 = vpack.c.b16 %v901, %v900
  %v1077 = vpack.c.b16 %v903, %v902
  %v1078 = vpack.c.b16 %v905, %v904
  %v1079 = vpack.c.b16 %v907, %v906
  %v1080 = vpack.c.b16 %v909, %v908
  %v1081 = vpack.c.b16 %v911, %v910
  %v1082 = vpack.c.b16 %v913, %v912
  %v1083 = vpack.c.b16 %v915, %v914
  %v1084 = vpack.c.b16 %v917, %v916
  %v1085 = vpack.c.b16 %v919, %v918
  %v1086 = vpack.c.b16 %v921, %v920
  %v1087 = vpack.c.b16 %v923, %v922
  %v1088 = vpack.c.b16 %v925, %v924
  %v1089 = vpack.c.b16 %v927, %v926
  %v1090 = vpack.c.b16 %v929, %v928
  %v1091 = vpack.c.b16 %v931, %v930
  %v1092 = vpack.c.b16 %v933, %v932
  %v1093 = vpack.c.b16 %v935, %v934
  %v1094 = vpack.c.b16 %v937, %v936
  %v1095 = vpack.c.b16 %v939, %v938
  %v1096 = vpack.c.b16 %v941, %v940
  %v1097 = vpack.c.b16 %v943, %v942
  %v1098 = vpack.c.b16 %v945, %v944
  %v1099 = vpack.c.b16 %v947, %v946
  %v1100 = vpack.c.b16 %v949, %v948
  %v1101 = vpack.c.b16 %v951, %v950
  %v1102 = vpack.c.b16 %v953, %v952
  %v1103 = vpack.c.b16 %v955, %v954
  %v1104 = vpack.c.b16 %v957, %v956
  %v1105 = vpack.c.b16 %v959, %v958
  %v1106 = vpack.c.b16 %v961, %v960
  %v1107 = vpack.c.b16 %v963, %v962
  %1252 = vmatprep.subr.bf16.mxu0 0
  %1253 = vmatpush1.bf16.msra.mxu0 %v964
  %1254 = vmatprep.subr.bf16.mxu0 0
  %1255 = vmatpush1.bf16.msra.mxu0 %v965
  %1256 = vmatprep.subr.bf16.mxu0 0
  %1257 = vmatpush1.bf16.msra.mxu0 %v966
  %1258 = vmatprep.subr.bf16.mxu0 0
  %1259 = vmatpush1.bf16.msra.mxu0 %v967
  %1260 = vmatprep.subr.bf16.mxu0 0
  %1261 = vmatpush1.bf16.msra.mxu0 %v968
  %1262 = vmatprep.subr.bf16.mxu0 0
  %1263 = vmatpush1.bf16.msra.mxu0 %v969
  %1264 = vmatprep.subr.bf16.mxu0 0
  %1265 = vmatpush1.bf16.msra.mxu0 %v970
  %1266 = vmatprep.subr.bf16.mxu0 0
  %1267 = vmatpush1.bf16.msra.mxu0 %v971
  %1268 = vmatprep.subr.bf16.mxu0 0
  %1269 = vmatpush1.bf16.msra.mxu0 %v972
  %1270 = vmatprep.subr.bf16.mxu0 0
  %1271 = vmatpush1.bf16.msra.mxu0 %v973
  %1272 = vmatprep.subr.bf16.mxu0 0
  %1273 = vmatpush1.bf16.msra.mxu0 %v974
  %1274 = vmatprep.subr.bf16.mxu0 0
  %1275 = vmatpush1.bf16.msra.mxu0 %v975
  %1276 = vmatprep.subr.bf16.mxu0 0
  %1277 = vmatpush1.bf16.msra.mxu0 %v976
  %1278 = vmatprep.subr.bf16.mxu0 0
  %1279 = vmatpush1.bf16.msra.mxu0 %v977
  %1280 = vmatprep.subr.bf16.mxu0 0
  %1281 = vmatpush1.bf16.msra.mxu0 %v978
  %1282 = vmatprep.subr.bf16.mxu0 0
  %1283 = vmatpush1.bf16.msra.mxu0 %v979
  %1284 = vmatprep.mubr.bf16.mxu0 %v353
  %1285 = vmatmul.mubr.bf16.gmra.mrb[0].mxu0 %v352
  %v1286 = vpop.f32.mrb[0].mxu0
  %v1287 = vadd.f32 %v323, %v1286
  %v1288 = vpop.f32.mrb[0].mxu0
  %v1289 = vpop.f32.mrb[0].mxu0
  %v1290 = vpop.f32.mrb[0].mxu0
  %1291 = vdwg.mxu0
  %1292 = vmatprep.subr.bf16.mxu0 0
  %1293 = vmatpush1.bf16.msra.mxu0 %v980
  %1294 = vmatprep.subr.bf16.mxu0 0
  %1295 = vmatpush1.bf16.msra.mxu0 %v981
  %1296 = vmatprep.subr.bf16.mxu0 0
  %1297 = vmatpush1.bf16.msra.mxu0 %v982
  %1298 = vmatprep.subr.bf16.mxu0 0
  %1299 = vmatpush1.bf16.msra.mxu0 %v983
  %1300 = vmatprep.subr.bf16.mxu0 0
  %1301 = vmatpush1.bf16.msra.mxu0 %v984
  %1302 = vmatprep.subr.bf16.mxu0 0
  %1303 = vmatpush1.bf16.msra.mxu0 %v985
  %1304 = vmatprep.subr.bf16.mxu0 0
  %1305 = vmatpush1.bf16.msra.mxu0 %v986
  %1306 = vmatprep.subr.bf16.mxu0 0
  %1307 = vmatpush1.bf16.msra.mxu0 %v987
  %1308 = vmatprep.subr.bf16.mxu0 0
  %1309 = vmatpush1.bf16.msra.mxu0 %v988
  %1310 = vmatprep.subr.bf16.mxu0 0
  %1311 = vmatpush1.bf16.msra.mxu0 %v989
  %1312 = vmatprep.subr.bf16.mxu0 0
  %1313 = vmatpush1.bf16.msra.mxu0 %v990
  %1314 = vmatprep.subr.bf16.mxu0 0
  %1315 = vmatpush1.bf16.msra.mxu0 %v991
  %1316 = vmatprep.subr.bf16.mxu0 0
  %1317 = vmatpush1.bf16.msra.mxu0 %v992
  %1318 = vmatprep.subr.bf16.mxu0 0
  %1319 = vmatpush1.bf16.msra.mxu0 %v993
  %1320 = vmatprep.subr.bf16.mxu0 0
  %1321 = vmatpush1.bf16.msra.mxu0 %v994
  %1322 = vmatprep.subr.bf16.mxu0 0
  %1323 = vmatpush1.bf16.msra.mxu0 %v995
  %1324 = vmatprep.mubr.bf16.mxu0 %v355
  %1325 = vmatmul.mubr.bf16.gmra.mrb[0].mxu0 %v354
  %v1326 = vpop.f32.mrb[0].mxu0
  %v1327 = vadd.f32 %v1287, %v1326
  %v1328 = vpop.f32.mrb[0].mxu0
  %v1329 = vpop.f32.mrb[0].mxu0
  %v1330 = vpop.f32.mrb[0].mxu0
  %1331 = vdwg.mxu0
  %1332 = vmatprep.subr.bf16.mxu0 0
  %1333 = vmatpush1.bf16.msra.mxu0 %v996
  %1334 = vmatprep.subr.bf16.mxu0 0
  %1335 = vmatpush1.bf16.msra.mxu0 %v997
  %1336 = vmatprep.subr.bf16.mxu0 0
  %1337 = vmatpush1.bf16.msra.mxu0 %v998
  %1338 = vmatprep.subr.bf16.mxu0 0
  %1339 = vmatpush1.bf16.msra.mxu0 %v999
  %1340 = vmatprep.subr.bf16.mxu0 0
  %1341 = vmatpush1.bf16.msra.mxu0 %v1000
  %1342 = vmatprep.subr.bf16.mxu0 0
  %1343 = vmatpush1.bf16.msra.mxu0 %v1001
  %1344 = vmatprep.subr.bf16.mxu0 0
  %1345 = vmatpush1.bf16.msra.mxu0 %v1002
  %1346 = vmatprep.subr.bf16.mxu0 0
  %1347 = vmatpush1.bf16.msra.mxu0 %v1003
  %1348 = vmatprep.subr.bf16.mxu0 0
  %1349 = vmatpush1.bf16.msra.mxu0 %v1004
  %1350 = vmatprep.subr.bf16.mxu0 0
  %1351 = vmatpush1.bf16.msra.mxu0 %v1005
  %1352 = vmatprep.subr.bf16.mxu0 0
  %1353 = vmatpush1.bf16.msra.mxu0 %v1006
  %1354 = vmatprep.subr.bf16.mxu0 0
  %1355 = vmatpush1.bf16.msra.mxu0 %v1007
  %1356 = vmatprep.subr.bf16.mxu0 0
  %1357 = vmatpush1.bf16.msra.mxu0 %v1008
  %1358 = vmatprep.subr.bf16.mxu0 0
  %1359 = vmatpush1.bf16.msra.mxu0 %v1009
  %1360 = vmatprep.subr.bf16.mxu0 0
  %1361 = vmatpush1.bf16.msra.mxu0 %v1010
  %1362 = vmatprep.subr.bf16.mxu0 0
  %1363 = vmatpush1.bf16.msra.mxu0 %v1011
  %1364 = vmatprep.mubr.bf16.mxu0 %v357
  %1365 = vmatmul.mubr.bf16.gmra.mrb[0].mxu0 %v356
  %v1366 = vpop.f32.mrb[0].mxu0
  %v1367 = vadd.f32 %v1327, %v1366
  %v1368 = vpop.f32.mrb[0].mxu0
  %v1369 = vpop.f32.mrb[0].mxu0
  %v1370 = vpop.f32.mrb[0].mxu0
  %1371 = vdwg.mxu0
  %1372 = vmatprep.subr.bf16.mxu0 0
  %1373 = vmatpush1.bf16.msra.mxu0 %v1012
  %1374 = vmatprep.subr.bf16.mxu0 0
  %1375 = vmatpush1.bf16.msra.mxu0 %v1013
  %1376 = vmatprep.subr.bf16.mxu0 0
  %1377 = vmatpush1.bf16.msra.mxu0 %v1014
  %1378 = vmatprep.subr.bf16.mxu0 0
  %1379 = vmatpush1.bf16.msra.mxu0 %v1015
  %1380 = vmatprep.subr.bf16.mxu0 0
  %1381 = vmatpush1.bf16.msra.mxu0 %v1016
  %1382 = vmatprep.subr.bf16.mxu0 0
  %1383 = vmatpush1.bf16.msra.mxu0 %v1017
  %1384 = vmatprep.subr.bf16.mxu0 0
  %1385 = vmatpush1.bf16.msra.mxu0 %v1018
  %1386 = vmatprep.subr.bf16.mxu0 0
  %1387 = vmatpush1.bf16.msra.mxu0 %v1019
  %1388 = vmatprep.subr.bf16.mxu0 0
  %1389 = vmatpush1.bf16.msra.mxu0 %v1020
  %1390 = vmatprep.subr.bf16.mxu0 0
  %1391 = vmatpush1.bf16.msra.mxu0 %v1021
  %1392 = vmatprep.subr.bf16.mxu0 0
  %1393 = vmatpush1.bf16.msra.mxu0 %v1022
  %1394 = vmatprep.subr.bf16.mxu0 0
  %1395 = vmatpush1.bf16.msra.mxu0 %v1023
  %1396 = vmatprep.subr.bf16.mxu0 0
  %1397 = vmatpush1.bf16.msra.mxu0 %v1024
  %1398 = vmatprep.subr.bf16.mxu0 0
  %1399 = vmatpush1.bf16.msra.mxu0 %v1025
  %1400 = vmatprep.subr.bf16.mxu0 0
  %1401 = vmatpush1.bf16.msra.mxu0 %v1026
  %1402 = vmatprep.subr.bf16.mxu0 0
  %1403 = vmatpush1.bf16.msra.mxu0 %v1027
  %1404 = vmatprep.mubr.bf16.mxu0 %v359
  %1405 = vmatmul.mubr.bf16.gmra.mrb[0].mxu0 %v358
  %v1406 = vpop.f32.mrb[0].mxu0
  %v1407 = vadd.f32 %v1367, %v1406
  %v1408 = vpop.f32.mrb[0].mxu0
  %v1409 = vpop.f32.mrb[0].mxu0
  %v1410 = vpop.f32.mrb[0].mxu0
  %1411 = vdwg.mxu0
  %1412 = vmatprep.subr.bf16.mxu0 0
  %1413 = vmatpush1.bf16.msra.mxu0 %v1028
  %1414 = vmatprep.subr.bf16.mxu0 0
  %1415 = vmatpush1.bf16.msra.mxu0 %v1029
  %1416 = vmatprep.subr.bf16.mxu0 0
  %1417 = vmatpush1.bf16.msra.mxu0 %v1030
  %1418 = vmatprep.subr.bf16.mxu0 0
  %1419 = vmatpush1.bf16.msra.mxu0 %v1031
  %1420 = vmatprep.subr.bf16.mxu0 0
  %1421 = vmatpush1.bf16.msra.mxu0 %v1032
  %1422 = vmatprep.subr.bf16.mxu0 0
  %1423 = vmatpush1.bf16.msra.mxu0 %v1033
  %1424 = vmatprep.subr.bf16.mxu0 0
  %1425 = vmatpush1.bf16.msra.mxu0 %v1034
  %1426 = vmatprep.subr.bf16.mxu0 0
  %1427 = vmatpush1.bf16.msra.mxu0 %v1035
  %1428 = vmatprep.subr.bf16.mxu0 0
  %1429 = vmatpush1.bf16.msra.mxu0 %v1036
  %1430 = vmatprep.subr.bf16.mxu0 0
  %1431 = vmatpush1.bf16.msra.mxu0 %v1037
  %1432 = vmatprep.subr.bf16.mxu0 0
  %1433 = vmatpush1.bf16.msra.mxu0 %v1038
  %1434 = vmatprep.subr.bf16.mxu0 0
  %1435 = vmatpush1.bf16.msra.mxu0 %v1039
  %1436 = vmatprep.subr.bf16.mxu0 0
  %1437 = vmatpush1.bf16.msra.mxu0 %v1040
  %1438 = vmatprep.subr.bf16.mxu0 0
  %1439 = vmatpush1.bf16.msra.mxu0 %v1041
  %1440 = vmatprep.subr.bf16.mxu0 0
  %1441 = vmatpush1.bf16.msra.mxu0 %v1042
  %1442 = vmatprep.subr.bf16.mxu0 0
  %1443 = vmatpush1.bf16.msra.mxu0 %v1043
  %1444 = vmatprep.mubr.bf16.mxu0 %v361
  %1445 = vmatmul.mubr.bf16.gmra.mrb[0].mxu0 %v360
  %v1446 = vpop.f32.mrb[0].mxu0
  %v1447 = vadd.f32 %v1407, %v1446
  %v1448 = vpop.f32.mrb[0].mxu0
  %v1449 = vpop.f32.mrb[0].mxu0
  %v1450 = vpop.f32.mrb[0].mxu0
  %1451 = vdwg.mxu0
  %1452 = vmatprep.subr.bf16.mxu0 0
  %1453 = vmatpush1.bf16.msra.mxu0 %v1044
  %1454 = vmatprep.subr.bf16.mxu0 0
  %1455 = vmatpush1.bf16.msra.mxu0 %v1045
  %1456 = vmatprep.subr.bf16.mxu0 0
  %1457 = vmatpush1.bf16.msra.mxu0 %v1046
  %1458 = vmatprep.subr.bf16.mxu0 0
  %1459 = vmatpush1.bf16.msra.mxu0 %v1047
  %1460 = vmatprep.subr.bf16.mxu0 0
  %1461 = vmatpush1.bf16.msra.mxu0 %v1048
  %1462 = vmatprep.subr.bf16.mxu0 0
  %1463 = vmatpush1.bf16.msra.mxu0 %v1049
  %1464 = vmatprep.subr.bf16.mxu0 0
  %1465 = vmatpush1.bf16.msra.mxu0 %v1050
  %1466 = vmatprep.subr.bf16.mxu0 0
  %1467 = vmatpush1.bf16.msra.mxu0 %v1051
  %1468 = vmatprep.subr.bf16.mxu0 0
  %1469 = vmatpush1.bf16.msra.mxu0 %v1052
  %1470 = vmatprep.subr.bf16.mxu0 0
  %1471 = vmatpush1.bf16.msra.mxu0 %v1053
  %1472 = vmatprep.subr.bf16.mxu0 0
  %1473 = vmatpush1.bf16.msra.mxu0 %v1054
  %1474 = vmatprep.subr.bf16.mxu0 0
  %1475 = vmatpush1.bf16.msra.mxu0 %v1055
  %1476 = vmatprep.subr.bf16.mxu0 0
  %1477 = vmatpush1.bf16.msra.mxu0 %v1056
  %1478 = vmatprep.subr.bf16.mxu0 0
  %1479 = vmatpush1.bf16.msra.mxu0 %v1057
  %1480 = vmatprep.subr.bf16.mxu0 0
  %1481 = vmatpush1.bf16.msra.mxu0 %v1058
  %1482 = vmatprep.subr.bf16.mxu0 0
  %1483 = vmatpush1.bf16.msra.mxu0 %v1059
  %1484 = vmatprep.mubr.bf16.mxu0 %v363
  %1485 = vmatmul.mubr.bf16.gmra.mrb[0].mxu0 %v362
  %v1486 = vpop.f32.mrb[0].mxu0
  %v1487 = vadd.f32 %v1447, %v1486
  %v1488 = vpop.f32.mrb[0].mxu0
  %v1489 = vpop.f32.mrb[0].mxu0
  %v1490 = vpop.f32.mrb[0].mxu0
  %1491 = vdwg.mxu0
  %1492 = vmatprep.subr.bf16.mxu0 0
  %1493 = vmatpush1.bf16.msra.mxu0 %v1060
  %1494 = vmatprep.subr.bf16.mxu0 0
  %1495 = vmatpush1.bf16.msra.mxu0 %v1061
  %1496 = vmatprep.subr.bf16.mxu0 0
  %1497 = vmatpush1.bf16.msra.mxu0 %v1062
  %1498 = vmatprep.subr.bf16.mxu0 0
  %1499 = vmatpush1.bf16.msra.mxu0 %v1063
  %1500 = vmatprep.subr.bf16.mxu0 0
  %1501 = vmatpush1.bf16.msra.mxu0 %v1064
  %1502 = vmatprep.subr.bf16.mxu0 0
  %1503 = vmatpush1.bf16.msra.mxu0 %v1065
  %1504 = vmatprep.subr.bf16.mxu0 0
  %1505 = vmatpush1.bf16.msra.mxu0 %v1066
  %1506 = vmatprep.subr.bf16.mxu0 0
  %1507 = vmatpush1.bf16.msra.mxu0 %v1067
  %1508 = vmatprep.subr.bf16.mxu0 0
  %1509 = vmatpush1.bf16.msra.mxu0 %v1068
  %1510 = vmatprep.subr.bf16.mxu0 0
  %1511 = vmatpush1.bf16.msra.mxu0 %v1069
  %1512 = vmatprep.subr.bf16.mxu0 0
  %1513 = vmatpush1.bf16.msra.mxu0 %v1070
  %1514 = vmatprep.subr.bf16.mxu0 0
  %1515 = vmatpush1.bf16.msra.mxu0 %v1071
  %1516 = vmatprep.subr.bf16.mxu0 0
  %1517 = vmatpush1.bf16.msra.mxu0 %v1072
  %1518 = vmatprep.subr.bf16.mxu0 0
  %1519 = vmatpush1.bf16.msra.mxu0 %v1073
  %1520 = vmatprep.subr.bf16.mxu0 0
  %1521 = vmatpush1.bf16.msra.mxu0 %v1074
  %1522 = vmatprep.subr.bf16.mxu0 0
  %1523 = vmatpush1.bf16.msra.mxu0 %v1075
  %1524 = vmatprep.mubr.bf16.mxu0 %v365
  %1525 = vmatmul.mubr.bf16.gmra.mrb[0].mxu0 %v364
  %v1526 = vpop.f32.mrb[0].mxu0
  %v1527 = vadd.f32 %v1487, %v1526
  %v1528 = vpop.f32.mrb[0].mxu0
  %v1529 = vpop.f32.mrb[0].mxu0
  %v1530 = vpop.f32.mrb[0].mxu0
  %1531 = vdwg.mxu0
  %1532 = vmatprep.subr.bf16.mxu0 0
  %1533 = vmatpush1.bf16.msra.mxu0 %v1076
  %1534 = vmatprep.subr.bf16.mxu0 0
  %1535 = vmatpush1.bf16.msra.mxu0 %v1077
  %1536 = vmatprep.subr.bf16.mxu0 0
  %1537 = vmatpush1.bf16.msra.mxu0 %v1078
  %1538 = vmatprep.subr.bf16.mxu0 0
  %1539 = vmatpush1.bf16.msra.mxu0 %v1079
  %1540 = vmatprep.subr.bf16.mxu0 0
  %1541 = vmatpush1.bf16.msra.mxu0 %v1080
  %1542 = vmatprep.subr.bf16.mxu0 0
  %1543 = vmatpush1.bf16.msra.mxu0 %v1081
  %1544 = vmatprep.subr.bf16.mxu0 0
  %1545 = vmatpush1.bf16.msra.mxu0 %v1082
  %1546 = vmatprep.subr.bf16.mxu0 0
  %1547 = vmatpush1.bf16.msra.mxu0 %v1083
  %1548 = vmatprep.subr.bf16.mxu0 0
  %1549 = vmatpush1.bf16.msra.mxu0 %v1084
  %1550 = vmatprep.subr.bf16.mxu0 0
  %1551 = vmatpush1.bf16.msra.mxu0 %v1085
  %1552 = vmatprep.subr.bf16.mxu0 0
  %1553 = vmatpush1.bf16.msra.mxu0 %v1086
  %1554 = vmatprep.subr.bf16.mxu0 0
  %1555 = vmatpush1.bf16.msra.mxu0 %v1087
  %1556 = vmatprep.subr.bf16.mxu0 0
  %1557 = vmatpush1.bf16.msra.mxu0 %v1088
  %1558 = vmatprep.subr.bf16.mxu0 0
  %1559 = vmatpush1.bf16.msra.mxu0 %v1089
  %1560 = vmatprep.subr.bf16.mxu0 0
  %1561 = vmatpush1.bf16.msra.mxu0 %v1090
  %1562 = vmatprep.subr.bf16.mxu0 0
  %1563 = vmatpush1.bf16.msra.mxu0 %v1091
  %1564 = vmatprep.mubr.bf16.mxu0 %v367
  %1565 = vmatmul.mubr.bf16.gmra.mrb[0].mxu0 %v366
  %v1566 = vpop.f32.mrb[0].mxu0
  %v1567 = vadd.f32 %v1527, %v1566
  %v1568 = vpop.f32.mrb[0].mxu0
  %v1569 = vpop.f32.mrb[0].mxu0
  %v1570 = vpop.f32.mrb[0].mxu0
  %1571 = vdwg.mxu0
  %1572 = vmatprep.subr.bf16.mxu0 0
  %1573 = vmatpush1.bf16.msra.mxu0 %v1092
  %1574 = vmatprep.subr.bf16.mxu0 0
  %1575 = vmatpush1.bf16.msra.mxu0 %v1093
  %1576 = vmatprep.subr.bf16.mxu0 0
  %1577 = vmatpush1.bf16.msra.mxu0 %v1094
  %1578 = vmatprep.subr.bf16.mxu0 0
  %1579 = vmatpush1.bf16.msra.mxu0 %v1095
  %1580 = vmatprep.subr.bf16.mxu0 0
  %1581 = vmatpush1.bf16.msra.mxu0 %v1096
  %1582 = vmatprep.subr.bf16.mxu0 0
  %1583 = vmatpush1.bf16.msra.mxu0 %v1097
  %1584 = vmatprep.subr.bf16.mxu0 0
  %1585 = vmatpush1.bf16.msra.mxu0 %v1098
  %1586 = vmatprep.subr.bf16.mxu0 0
  %1587 = vmatpush1.bf16.msra.mxu0 %v1099
  %1588 = vmatprep.subr.bf16.mxu0 0
  %1589 = vmatpush1.bf16.msra.mxu0 %v1100
  %1590 = vmatprep.subr.bf16.mxu0 0
  %1591 = vmatpush1.bf16.msra.mxu0 %v1101
  %1592 = vmatprep.subr.bf16.mxu0 0
  %1593 = vmatpush1.bf16.msra.mxu0 %v1102
  %1594 = vmatprep.subr.bf16.mxu0 0
  %1595 = vmatpush1.bf16.msra.mxu0 %v1103
  %1596 = vmatprep.subr.bf16.mxu0 0
  %1597 = vmatpush1.bf16.msra.mxu0 %v1104
  %1598 = vmatprep.subr.bf16.mxu0 0
  %1599 = vmatpush1.bf16.msra.mxu0 %v1105
  %1600 = vmatprep.subr.bf16.mxu0 0
  %1601 = vmatpush1.bf16.msra.mxu0 %v1106
  %1602 = vmatprep.subr.bf16.mxu0 0
  %1603 = vmatpush1.bf16.msra.mxu0 %v1107
  %1604 = vmatprep.mubr.bf16.mxu0 %v369
  %1605 = vmatmul.mubr.bf16.gmra.mrb[0].mxu0 %v368
  %v1606 = vpop.f32.mrb[0].mxu0
  %v1607 = vadd.f32 %v1567, %v1606
  %v1608 = vpop.f32.mrb[0].mxu0
  %v1609 = vpop.f32.mrb[0].mxu0
  %v1610 = vpop.f32.mrb[0].mxu0
  %1611 = vdwg.mxu0
  %v1612 = vmax.f32 %v1607, 0.0
  %v1613 = vpack.c.bf16 %v1612, %v1612
  %v1614 = vld [vmem:[%s3] sm:$0xf]
  %v1615 = vld [vmem:[%s3 + $0x4] sm:$0xf]
  %v1616 = vld [vmem:[%s3 + $0x8] sm:$0xf]
  %v1617 = vld [vmem:[%s3 + $0xc] sm:$0xf]
  %v1618 = vld [vmem:[%s4] sm:$0x1]
  %v1620 = vlaneseq
  %v1621 = vshrl.u32 %v1620, 7
  %v1622 = vsub.s32 0, %v1621
  %v1623 = vrot.slane %v1618, %v1622
  %v1629 = vunpack.c.l.b16 %v1614
  %v1630 = vunpack.c.l.b16 %v1615
  %v1631 = vunpack.c.l.b16 %v1616
  %v1632 = vunpack.c.l.b16 %v1617
  %v1633 = vpack.c.b16 %v1630, %v1629
  %v1634 = vpack.c.b16 %v1632, %v1631
  %vm1637 = vcmask 261120
  %v1639 = vsel %vm1637, %v1613, 0
  %1641 = vmatprep.subr.bf16.mxu0 0
  %1642 = vmatpush1.bf16.msra.mxu0 %v1633
  %1643 = vmatprep.subr.bf16.mxu0 0
  %1644 = vmatpush1.bf16.msra.mxu0 %v1634
  %1645 = vmatprep.subr.bf16.mxu0 0
  %1646 = vmatpush1.bf16.msra.mxu0 0
  %1647 = vmatprep.subr.bf16.mxu0 0
  %1648 = vmatpush1.bf16.msra.mxu0 0
  %1649 = vmatprep.subr.bf16.mxu0 0
  %1650 = vmatpush1.bf16.msra.mxu0 0
  %1651 = vmatprep.subr.bf16.mxu0 0
  %1652 = vmatpush1.bf16.msra.mxu0 0
  %1653 = vmatprep.subr.bf16.mxu0 0
  %1654 = vmatpush1.bf16.msra.mxu0 0
  %1655 = vmatprep.subr.bf16.mxu0 0
  %1656 = vmatpush1.bf16.msra.mxu0 0
  %1657 = vmatprep.subr.bf16.mxu0 0
  %1658 = vmatpush1.bf16.msra.mxu0 0
  %1659 = vmatprep.subr.bf16.mxu0 0
  %1660 = vmatpush1.bf16.msra.mxu0 0
  %1661 = vmatprep.subr.bf16.mxu0 0
  %1662 = vmatpush1.bf16.msra.mxu0 0
  %1663 = vmatprep.subr.bf16.mxu0 0
  %1664 = vmatpush1.bf16.msra.mxu0 0
  %1665 = vmatprep.subr.bf16.mxu0 0
  %1666 = vmatpush1.bf16.msra.mxu0 0
  %1667 = vmatprep.subr.bf16.mxu0 0
  %1668 = vmatpush1.bf16.msra.mxu0 0
  %1669 = vmatprep.subr.bf16.mxu0 0
  %1670 = vmatpush1.bf16.msra.mxu0 0
  %1671 = vmatprep.subr.bf16.mxu0 0
  %1672 = vmatpush1.bf16.msra.mxu0 0
  %1673 = vmatprep.mubr.bf16.mxu0 0
  %1674 = vmatmul.mubr.bf16.gmra.mrb[0].mxu0 %v1639
  %v1675 = vpop.f32.mrb[0].mxu0
  %v1676 = vadd.f32 %v1623, %v1675
  %v1677 = vpop.f32.mrb[0].mxu0
  %v1678 = vpop.f32.mrb[0].mxu0
  %v1679 = vpop.f32.mrb[0].mxu0
  %1680 = vdwg.mxu0
  %vm1681 = vcmask 80896
  %v1682 = vsel %vm1681, %v1676, -inf
  %1683 = vmax.xlane.f32.xlu0 %v1682
  %v1684 = vpop.xlane.xlu0 %1683
  %v1685 = vsub.f32 %v1676, %v1684
  %v1686 = vmul.f32 %v1685, 1.442695
  %v1687 = vpow.pop %v1686
  %v1688 = vsel %vm1681, %v1687, 0.0
  %1689 = vadd.xlane.f32.xlu0 %v1688
  %v1690 = vpop.xlane.xlu0 %1689
  %v1691 = vlog2.pop %v1690
  %v1692 = vmul.f32 %v1691, 0.6931472
  %v1693 = vsub.f32 %v1685, %v1692
  %1694 = vst.msk [vmem:[%s5] sm:$0xff] %vm1681, %v1693
  // Predicated region
  $region22: #{forward.5} parent=0 // pred_check
    _
  $region23: #{forward.5} parent=0 // pred_check_branch
    %1696 = sbr.rel (0) target = $region25
  $region24: #{forward.5} parent=0 // pred_region
    _
  $region25: #{forward.5} parent=0 // pred_fallthru
    _
  // Predicated region
  $region26: #{forward.5} parent=0 // pred_check
    _
  $region27: #{forward.5} parent=0 // pred_check_branch
    %1698 = sbr.rel (0) target = $region29
  $region28: #{forward.5} parent=0 // pred_region
    _
  $region29: #{forward.5} parent=0 // pred_fallthru
    _

</llo_original>
